<compile_context>
chip_gen: v6e
topology: v6e:2x2x1
jax: 0.10.0
libtpu: 0.0.40
codegen_flags: <defaults>
</compile_context>

<pallas_src>
import functools
import math

import jax
import jax.numpy as jnp
from jax import lax
from jax.experimental import pallas as pl
from jax.experimental.pallas import tpu as pltpu

# Static geometry: Conv1d(k=3, s=2, p=1) chain 100 -> 50 -> 25 -> 13 -> 7.
_L_OUT = (50, 25, 13, 7)      # per-layer output lengths
_SEG = (64, 32, 16, 8)        # per-sample segment lengths (powers of 2, >= L_out + 1)
_LANES = 128
_SLOPE = 0.2                  # LeakyReLU negative slope


def _leaky_mask(y, seg, valid):
    """LeakyReLU(0.2); zero rows whose within-segment index is 0 or > valid."""
    ridx = lax.broadcasted_iota(jnp.int32, (y.shape[0], 1), 0)
    r = jnp.bitwise_and(ridx, seg - 1)            # row index inside the sample segment
    keep = jnp.logical_and(r >= 1, r <= valid)
    y = jnp.maximum(y, _SLOPE * y)
    return jnp.where(keep, y, 0.0)


def _disc_kernel(p_ref, w1_ref, b1_ref, w2_ref, b2_ref, w3_ref, b3_ref,
                 w4_ref, b4_ref, wfc_ref, bfc_ref, o_ref,
                 buf1, buf2, buf3, *, tb, cdt):
    f32 = jnp.float32

    # Zero guard rows 0..7 (taps may read rows 6/7).  Kept UNCONDITIONAL: with the
    # "parallel" grid each core owns its own scratch, so no step-0 gating.
    buf1[0:8, :] = jnp.zeros((8, _LANES), f32)
    buf2[0:8, :] = jnp.zeros((8, _LANES), f32)
    buf3[0:8, :] = jnp.zeros((8, _LANES), f32)

    lane = lax.broadcasted_iota(jnp.int32, (1, _LANES), 1)   # hoisted lane index

    # ---- conv1: 1 -> 16 (im2col patches from wrapper, K padded 3->8).  Output
    # channels are written replicated x3 at lanes [0:16),[16:32),[32:48) so conv2's
    # tap-packed LHS needs no lane rolls. -------------------------------------------
    y = jnp.dot(p_ref[...], w1_ref[...], preferred_element_type=f32) + b1_ref[...]
    buf1[8:8 + tb * _SEG[0], :] = _leaky_mask(y, _SEG[0], _L_OUT[0])

    def taps(src, n_rows):
        # Batched output row k <-> (sample k // seg_out, position (k % seg_out) - 1);
        # its three taps live at src rows 6 + t + 2k.
        t0 = src[pl.ds(6, n_rows, stride=2), :]
        t1 = src[pl.ds(7, n_rows, stride=2), :]
        t2 = src[pl.ds(8, n_rows, stride=2), :]
        return t0, t1, t2

    # ---- conv2: 16 -> 32, taps packed into K=48 -> ONE (M,128)x(128,128) matmul ----
    n2 = tb * _SEG[1]
    t0, t1, t2 = taps(buf1, n2)
    lhs = jnp.where(lane < 16, t0, jnp.where(lane < 32, t1, t2)).astype(cdt)
    y = jnp.dot(lhs, w2_ref[...], preferred_element_type=f32) + b2_ref[...]
    buf2[8:8 + n2, :] = _leaky_mask(y, _SEG[1], _L_OUT[1])    # 32 ch replicated x3

    # ---- conv3: 32 -> 64, taps packed into K=96 -> one matmul -----------------------
    n3 = tb * _SEG[2]
    t0, t1, t2 = taps(buf2, n3)
    lhs = jnp.where(lane < 32, t0, jnp.where(lane < 64, t1, t2)).astype(cdt)
    y = jnp.dot(lhs, w3_ref[...], preferred_element_type=f32) + b3_ref[...]
    buf3[8:8 + n3, :] = _leaky_mask(y, _SEG[2], _L_OUT[2])    # 64 ch replicated x2

    # ---- conv4: 64 -> 128, taps packed into K=192 (padded 256) -> one K=256 matmul --
    n4 = tb * _SEG[3]
    t0, t1, t2 = taps(buf3, n4)
    # first 128 lanes: tap0 chans (copy 0) | tap1 chans (copy 1); next 128: tap2.
    lhs = jnp.concatenate([jnp.where(lane < 64, t0, t1), t2], axis=1).astype(cdt)
    y = jnp.dot(lhs, w4_ref[...], preferred_element_type=f32) + b4_ref[...]
    a4 = _leaky_mask(y, _SEG[3], _L_OUT[3])                   # (tb*8, 128) f32

    # ---- adv_layer: Linear(128*7 -> 1) as VPU multiply + reduction (N=1 on the MXU
    # would be wasted); result written lane-dense as a (1, tb) row. -------------------
    prod = a4.reshape(tb, _SEG[3], _LANES) * wfc_ref[...]     # (tb, 8, 128)
    s2 = jnp.sum(prod, axis=2)                                # (tb, 8)
    s_row = jnp.sum(jnp.transpose(s2), axis=0, keepdims=True)  # (1, tb)
    o_ref[...] = s_row + bfc_ref[...]


def _make_patches(x2, bp):
    """conv1 im2col from strided slices (no gather). x2: (Bp, 100) -> (Bp*64, 8)."""
    # xf[j] == x_pad[j-2] of the k=3/p=1 conv (3 leading zeros, zeros on the right).
    xf = jnp.pad(x2, ((0, 0), (3, 2 * _SEG[0] + 1 - 100 - 3)))           # (Bp, 129)
    cols = [xf[:, t:t + 2 * _SEG[0]:2] for t in range(3)]                # 3 x (Bp, 64)
    p = jnp.stack(cols, axis=-1)                                         # (Bp, 64, 3)
    p = jnp.pad(p, ((0, 0), (0, 0), (0, 5)))                             # K: 3 -> 8
    return p.reshape(bp * _SEG[0], 8)


def _prep_params(params, cdt):
    """Reorder / replicate / zero-pad PyTorch-layout parameters into kernel operands."""
    f32 = jnp.float32

    def conv_w(w, rep, k_pad):                  # (Cout, Cin, 3) -> (k_pad, 128)
        cout, cin, _ = w.shape
        wt = jnp.transpose(w, (2, 1, 0)).reshape(3 * cin, cout)   # row = t*Cin + cin
        wt = jnp.tile(wt, (1, rep))                                # col = Cout*j + cout
        wt = jnp.pad(wt, ((0, k_pad - 3 * cin), (0, _LANES - rep * cout)))
        return wt.astype(cdt)

    def conv_b(b, rep):
        bb = jnp.tile(b, rep)[None, :]
        return jnp.pad(bb, ((0, 0), (0, _LANES - bb.shape[1]))).astype(f32)

    # conv1: W1[t, 16*j + c] = w1[c, 0, t]  (x3 output replication)
    w1 = jnp.transpose(params["conv1_w"][:, 0, :], (1, 0))               # (3, 16)
    w1 = jnp.tile(w1, (1, 3))                                            # (3, 48)
    w1 = jnp.pad(w1, ((0, 5), (0, _LANES - 48))).astype(cdt)             # (8, 128)
    b1 = conv_b(params["conv1_b"], 3)

    # torch .view(-1, 128*7) flattens channel-major: feature f = c*7 + l.
    wfc = params["fc_w"][:, 0].reshape(_LANES, 7).T                      # (7, 128)
    wfc = jnp.pad(wfc, ((1, 0), (0, 0))).astype(f32)                     # row 0 = pad row
    bfc = params["fc_b"].reshape(1, 1).astype(f32)

    return (w1, b1,
            conv_w(params["conv2_w"], 3, 128), conv_b(params["conv2_b"], 3),
            conv_w(params["conv3_w"], 2, 128), conv_b(params["conv3_b"], 2),
            conv_w(params["conv4_w"], 1, 256), conv_b(params["conv4_b"], 1),
            wfc, bfc)


def _pick_tb(b):
    t = 8
    while t < min(b, 64):
        t *= 2
    return t


def discriminator_forward(params, x, *, tb=None, compute_dtype=jnp.bfloat16):
    """Forward of the PyTorch `discriminator`: x (B, 1, 100) -> (B, 1)."""
    b = x.shape[0]
    assert x.shape[1:] == (1, 100)
    if tb is None:
        tb = _pick_tb(b)                        # adaptive batch tile (up to 64; can pass 128)
    assert tb % 8 == 0 and tb >= 8
    bp = ((b + tb - 1) // tb) * tb
    nt = bp // tb

    x2 = jnp.pad(x.astype(jnp.float32).reshape(b, 100), ((0, bp - b), (0, 0)))
    patches = _make_patches(x2, bp).astype(compute_dtype)
    ops = _prep_params(params, compute_dtype)

    def wspec(shp):                             # weights resident across the grid
        return pl.BlockSpec(shp, lambda i: (0, 0))

    out = pl.pallas_call(
        functools.partial(_disc_kernel, tb=tb, cdt=compute_dtype),
        out_shape=jax.ShapeDtypeStruct((nt, tb), jnp.float32),
        grid=(nt,),
        in_specs=[
            pl.BlockSpec((tb * _SEG[0], 8), lambda i: (i, 0)),   # conv1 patches
            wspec((8, _LANES)), wspec((1, _LANES)),              # conv1 w, b
            wspec((_LANES, _LANES)), wspec((1, _LANES)),         # conv2 w, b
            wspec((_LANES, _LANES)), wspec((1, _LANES)),         # conv3 w, b
            wspec((2 * _LANES, _LANES)), wspec((1, _LANES)),     # conv4 w, b
            wspec((8, _LANES)), wspec((1, 1)),                   # fc w, b
        ],
        out_specs=pl.BlockSpec((1, tb), lambda i: (i, 0)),       # lane-dense output
        scratch_shapes=[
            pltpu.VMEM((8 + tb * _SEG[0], _LANES), jnp.float32),  # conv1 output
            pltpu.VMEM((8 + tb * _SEG[1], _LANES), jnp.float32),  # conv2 output
            pltpu.VMEM((8 + tb * _SEG[2], _LANES), jnp.float32),  # conv3 output
        ],
        compiler_params=pltpu.CompilerParams(
            dimension_semantics=("parallel",),
            vmem_limit_bytes=56 * 1024 * 1024),
    )(patches, *ops)
    return out.reshape(bp, 1)[:b]


def init_params(key):
    """Deterministic init mimicking PyTorch default (uniform +/- 1/sqrt(fan_in))."""
    params = {}
    for name, cin, cout in (("conv1", 1, 16), ("conv2", 16, 32),
                            ("conv3", 32, 64), ("conv4", 64, 128)):
        key, kw, kb = jax.random.split(key, 3)
        bound = 1.0 / math.sqrt(cin * 3)
        params[name + "_w"] = jax.random.uniform(kw, (cout, cin, 3), jnp.float32, -bound, bound)
        params[name + "_b"] = jax.random.uniform(kb, (cout,), jnp.float32, -bound, bound)
    key, kw, kb = jax.random.split(key, 3)
    bound = 1.0 / math.sqrt(128 * 7)
    params["fc_w"] = jax.random.uniform(kw, (128 * 7, 1), jnp.float32, -bound, bound)
    params["fc_b"] = jax.random.uniform(kb, (1,), jnp.float32, -bound, bound)
    return params


def _reference_forward(params, x):
    """Pure-JAX f32 reference (XLA conv, HIGHEST precision) for numerical cross-check."""
    y = x
    for name in ("conv1", "conv2", "conv3", "conv4"):
        y = lax.conv_general_dilated(y, params[name + "_w"], (2,), ((1, 1),),
                                     dimension_numbers=("NCH", "OIH", "NCH"),
                                     precision=lax.Precision.HIGHEST)
        y = y + params[name + "_b"][None, :, None]
        y = jnp.where(y >= 0, y, _SLOPE * y)
    y = y.reshape(y.shape[0], 128 * 7)
    return jnp.dot(y, params["fc_w"], precision=lax.Precision.HIGHEST) + params["fc_b"]


if __name__ == "__main__":
    key = jax.random.PRNGKey(0)
    kx, kp = jax.random.split(key)
    params = init_params(kp)

    fwd_f32 = jax.jit(functools.partial(discriminator_forward, compute_dtype=jnp.float32))
    fwd_bf16 = jax.jit(functools.partial(discriminator_forward, compute_dtype=jnp.bfloat16))

    for bsz in (2, 192):   # tiny smoke test + a batch that exercises the tuned tile size
        x = jax.random.normal(jax.random.fold_in(kx, bsz), (bsz, 1, 100), jnp.float32)
        ref = jax.block_until_ready(_reference_forward(params, x))

        out32 = jax.block_until_ready(fwd_f32(params, x))
        assert out32.shape == (bsz, 1)
        assert jnp.allclose(out32, ref, rtol=1e-2, atol=3e-4), (bsz, out32[:4], ref[:4])

        out16 = jax.block_until_ready(fwd_bf16(params, x))
        assert out16.shape == (bsz, 1)
        err = float(jnp.max(jnp.abs(out16 - ref)))
        tol = 7.5e-2 * float(jnp.max(jnp.abs(ref))) + 3e-3   # bf16-operand tolerance
        assert err <= tol, (bsz, err, tol)

    print("KERNEL_OK")
</pallas_src>

<mosaic_0001>
module attributes {stable_mosaic.version = 11 : i64} {
  func.func @_disc_kernel(%arg0: i32, %arg1: memref<512x8xf32, #tpu.memory_space<vmem>>, %arg2: memref<8x128xf32, #tpu.memory_space<vmem>>, %arg3: memref<1x128xf32, #tpu.memory_space<vmem>>, %arg4: memref<128x128xf32, #tpu.memory_space<vmem>>, %arg5: memref<1x128xf32, #tpu.memory_space<vmem>>, %arg6: memref<128x128xf32, #tpu.memory_space<vmem>>, %arg7: memref<1x128xf32, #tpu.memory_space<vmem>>, %arg8: memref<256x128xf32, #tpu.memory_space<vmem>>, %arg9: memref<1x128xf32, #tpu.memory_space<vmem>>, %arg10: memref<8x128xf32, #tpu.memory_space<vmem>>, %arg11: memref<1x1xf32, #tpu.memory_space<vmem>>, %arg12: memref<1x8xf32, #tpu.memory_space<vmem>>, %arg13: memref<520x128xf32, #tpu.memory_space<vmem>>, %arg14: memref<264x128xf32, #tpu.memory_space<vmem>>, %arg15: memref<136x128xf32, #tpu.memory_space<vmem>>) attributes {dimension_semantics = [#tpu.dimension_semantics<parallel>], iteration_bounds = array<i64: 1>, scalar_prefetch = 0 : i64, scratch_operands = 3 : i64, tpu.core_type = #tpu.core_type<tc>, window_params = [{transform_indices = @transform_0, window_bounds = array<i64: 512, 8>}, {pipeline_mode = #tpu.pipeline_mode<synchronous>, transform_indices = @transform_1, window_bounds = array<i64: 8, 128>}, {pipeline_mode = #tpu.pipeline_mode<synchronous>, transform_indices = @transform_2, window_bounds = array<i64: 1, 128>}, {pipeline_mode = #tpu.pipeline_mode<synchronous>, transform_indices = @transform_3, window_bounds = array<i64: 128, 128>}, {pipeline_mode = #tpu.pipeline_mode<synchronous>, transform_indices = @transform_4, window_bounds = array<i64: 1, 128>}, {pipeline_mode = #tpu.pipeline_mode<synchronous>, transform_indices = @transform_5, window_bounds = array<i64: 128, 128>}, {pipeline_mode = #tpu.pipeline_mode<synchronous>, transform_indices = @transform_6, window_bounds = array<i64: 1, 128>}, {pipeline_mode = #tpu.pipeline_mode<synchronous>, transform_indices = @transform_7, window_bounds = array<i64: 256, 128>}, {pipeline_mode = #tpu.pipeline_mode<synchronous>, transform_indices = @transform_8, window_bounds = array<i64: 1, 128>}, {pipeline_mode = #tpu.pipeline_mode<synchronous>, transform_indices = @transform_9, window_bounds = array<i64: 8, 128>}, {pipeline_mode = #tpu.pipeline_mode<synchronous>, transform_indices = @transform_10, window_bounds = array<i64: 1, 1>}, {transform_indices = @transform_11, window_bounds = array<i64: 1, 8>}]} {
    %cst = arith.constant 0.000000e+00 : f32
    %0 = vector.broadcast %cst : f32 to vector<8x128xf32>
    %c0 = arith.constant 0 : index
    %c0_0 = arith.constant 0 : index
    %1 = vector.load %arg13[%c0, %c0_0] : memref<520x128xf32, #tpu.memory_space<vmem>>, vector<8x128xf32>
    tpu.vector_store %arg13[%c0, %c0_0], %0 {strides = array<i32>} : memref<520x128xf32, #tpu.memory_space<vmem>>, vector<8x128xf32>,
    %cst_1 = arith.constant 0.000000e+00 : f32
    %2 = vector.broadcast %cst_1 : f32 to vector<8x128xf32>
    %c0_2 = arith.constant 0 : index
    %c0_3 = arith.constant 0 : index
    %3 = vector.load %arg14[%c0_2, %c0_3] : memref<264x128xf32, #tpu.memory_space<vmem>>, vector<8x128xf32>
    tpu.vector_store %arg14[%c0_2, %c0_3], %2 {strides = array<i32>} : memref<264x128xf32, #tpu.memory_space<vmem>>, vector<8x128xf32>,
    %cst_4 = arith.constant 0.000000e+00 : f32
    %4 = vector.broadcast %cst_4 : f32 to vector<8x128xf32>
    %c0_5 = arith.constant 0 : index
    %c0_6 = arith.constant 0 : index
    %5 = vector.load %arg15[%c0_5, %c0_6] : memref<136x128xf32, #tpu.memory_space<vmem>>, vector<8x128xf32>
    tpu.vector_store %arg15[%c0_5, %c0_6], %4 {strides = array<i32>} : memref<136x128xf32, #tpu.memory_space<vmem>>, vector<8x128xf32>,
    %6 = tpu.iota {dimensions = array<i32: 1>} : vector<1x128xi32>
    %c0_7 = arith.constant 0 : index
    %c0_8 = arith.constant 0 : index
    %7 = vector.load %arg1[%c0_7, %c0_8] : memref<512x8xf32, #tpu.memory_space<vmem>>, vector<512x8xf32>
    %c0_9 = arith.constant 0 : index
    %c0_10 = arith.constant 0 : index
    %8 = vector.load %arg2[%c0_9, %c0_10] : memref<8x128xf32, #tpu.memory_space<vmem>>, vector<8x128xf32>
    %cst_11 = arith.constant dense<0.000000e+00> : vector<512x128xf32>
    %9 = tpu.matmul %7, %8, %cst_11 {dimension_numbers = #tpu.dot_dimension_numbers<[1], [0], [0], [1], [0, 0, 1, 1], [], []>} : vector<512x8xf32>, vector<8x128xf32>, vector<512x128xf32> -> vector<512x128xf32>
    %c0_12 = arith.constant 0 : index
    %c0_13 = arith.constant 0 : index
    %10 = vector.load %arg3[%c0_12, %c0_13] : memref<1x128xf32, #tpu.memory_space<vmem>>, vector<1x128xf32>
    %11 = vector.broadcast %10 : vector<1x128xf32> to vector<512x128xf32>
    %12 = arith.addf %9, %11 : vector<512x128xf32>
    %13 = tpu.iota {dimensions = array<i32: 0>} : vector<512x1xi32>
    %c63_i32 = arith.constant 63 : i32
    %14 = vector.broadcast %c63_i32 : i32 to vector<512x1xi32>
    %15 = arith.andi %13, %14 : vector<512x1xi32>
    %c1_i32 = arith.constant 1 : i32
    %16 = vector.broadcast %c1_i32 : i32 to vector<512x1xi32>
    %17 = arith.cmpi sge, %15, %16 : vector<512x1xi32>
    %c50_i32 = arith.constant 50 : i32
    %18 = vector.broadcast %c50_i32 : i32 to vector<512x1xi32>
    %19 = arith.cmpi sle, %15, %18 : vector<512x1xi32>
    %20 = arith.andi %17, %19 : vector<512x1xi1>
    %cst_14 = arith.constant 2.000000e-01 : f32
    %21 = vector.broadcast %cst_14 : f32 to vector<512x128xf32>
    %22 = arith.mulf %21, %12 : vector<512x128xf32>
    %23 = arith.maximumf %12, %22 : vector<512x128xf32>
    %cst_15 = arith.constant 0.000000e+00 : f32
    %24 = vector.shape_cast %20 : vector<512x1xi1> to vector<512x1xi1>
    %25 = vector.broadcast %24 : vector<512x1xi1> to vector<512x128xi1>
    %26 = vector.broadcast %cst_15 : f32 to vector<512x128xf32>
    %27 = arith.select %25, %23, %26 : vector<512x128xi1>, vector<512x128xf32>
    %c8 = arith.constant 8 : index
    %c0_16 = arith.constant 0 : index
    %28 = vector.load %arg13[%c8, %c0_16] : memref<520x128xf32, #tpu.memory_space<vmem>>, vector<512x128xf32>
    tpu.vector_store %arg13[%c8, %c0_16], %27 {strides = array<i32>} : memref<520x128xf32, #tpu.memory_space<vmem>>, vector<512x128xf32>,
    %c6 = arith.constant 6 : index
    %c0_17 = arith.constant 0 : index
    %29 = tpu.strided_load %arg13[%c6, %c0_17] {strides = array<i32: 2, 1>} : memref<520x128xf32, #tpu.memory_space<vmem>>, vector<256x128xf32>
    %c7 = arith.constant 7 : index
    %c0_18 = arith.constant 0 : index
    %30 = tpu.strided_load %arg13[%c7, %c0_18] {strides = array<i32: 2, 1>} : memref<520x128xf32, #tpu.memory_space<vmem>>, vector<256x128xf32>
    %c8_19 = arith.constant 8 : index
    %c0_20 = arith.constant 0 : index
    %31 = tpu.strided_load %arg13[%c8_19, %c0_20] {strides = array<i32: 2, 1>} : memref<520x128xf32, #tpu.memory_space<vmem>>, vector<256x128xf32>
    %c16_i32 = arith.constant 16 : i32
    %32 = vector.broadcast %c16_i32 : i32 to vector<1x128xi32>
    %33 = arith.cmpi slt, %6, %32 : vector<1x128xi32>
    %c32_i32 = arith.constant 32 : i32
    %34 = vector.broadcast %c32_i32 : i32 to vector<1x128xi32>
    %35 = arith.cmpi slt, %6, %34 : vector<1x128xi32>
    %36 = vector.shape_cast %35 : vector<1x128xi1> to vector<1x128xi1>
    %37 = vector.broadcast %36 : vector<1x128xi1> to vector<256x128xi1>
    %38 = arith.select %37, %30, %31 : vector<256x128xi1>, vector<256x128xf32>
    %39 = vector.shape_cast %33 : vector<1x128xi1> to vector<1x128xi1>
    %40 = vector.broadcast %39 : vector<1x128xi1> to vector<256x128xi1>
    %41 = arith.select %40, %29, %38 : vector<256x128xi1>, vector<256x128xf32>
    %c0_21 = arith.constant 0 : index
    %c0_22 = arith.constant 0 : index
    %42 = vector.load %arg4[%c0_21, %c0_22] : memref<128x128xf32, #tpu.memory_space<vmem>>, vector<128x128xf32>
    %cst_23 = arith.constant dense<0.000000e+00> : vector<256x128xf32>
    %43 = tpu.matmul %41, %42, %cst_23 {dimension_numbers = #tpu.dot_dimension_numbers<[1], [0], [0], [1], [0, 0, 1, 1], [], []>} : vector<256x128xf32>, vector<128x128xf32>, vector<256x128xf32> -> vector<256x128xf32>
    %c0_24 = arith.constant 0 : index
    %c0_25 = arith.constant 0 : index
    %44 = vector.load %arg5[%c0_24, %c0_25] : memref<1x128xf32, #tpu.memory_space<vmem>>, vector<1x128xf32>
    %45 = vector.broadcast %44 : vector<1x128xf32> to vector<256x128xf32>
    %46 = arith.addf %43, %45 : vector<256x128xf32>
    %47 = tpu.iota {dimensions = array<i32: 0>} : vector<256x1xi32>
    %c31_i32 = arith.constant 31 : i32
    %48 = vector.broadcast %c31_i32 : i32 to vector<256x1xi32>
    %49 = arith.andi %47, %48 : vector<256x1xi32>
    %c1_i32_26 = arith.constant 1 : i32
    %50 = vector.broadcast %c1_i32_26 : i32 to vector<256x1xi32>
    %51 = arith.cmpi sge, %49, %50 : vector<256x1xi32>
    %c25_i32 = arith.constant 25 : i32
    %52 = vector.broadcast %c25_i32 : i32 to vector<256x1xi32>
    %53 = arith.cmpi sle, %49, %52 : vector<256x1xi32>
    %54 = arith.andi %51, %53 : vector<256x1xi1>
    %cst_27 = arith.constant 2.000000e-01 : f32
    %55 = vector.broadcast %cst_27 : f32 to vector<256x128xf32>
    %56 = arith.mulf %55, %46 : vector<256x128xf32>
    %57 = arith.maximumf %46, %56 : vector<256x128xf32>
    %cst_28 = arith.constant 0.000000e+00 : f32
    %58 = vector.shape_cast %54 : vector<256x1xi1> to vector<256x1xi1>
    %59 = vector.broadcast %58 : vector<256x1xi1> to vector<256x128xi1>
    %60 = vector.broadcast %cst_28 : f32 to vector<256x128xf32>
    %61 = arith.select %59, %57, %60 : vector<256x128xi1>, vector<256x128xf32>
    %c8_29 = arith.constant 8 : index
    %c0_30 = arith.constant 0 : index
    %62 = vector.load %arg14[%c8_29, %c0_30] : memref<264x128xf32, #tpu.memory_space<vmem>>, vector<256x128xf32>
    tpu.vector_store %arg14[%c8_29, %c0_30], %61 {strides = array<i32>} : memref<264x128xf32, #tpu.memory_space<vmem>>, vector<256x128xf32>,
    %c6_31 = arith.constant 6 : index
    %c0_32 = arith.constant 0 : index
    %63 = tpu.strided_load %arg14[%c6_31, %c0_32] {strides = array<i32: 2, 1>} : memref<264x128xf32, #tpu.memory_space<vmem>>, vector<128x128xf32>
    %c7_33 = arith.constant 7 : index
    %c0_34 = arith.constant 0 : index
    %64 = tpu.strided_load %arg14[%c7_33, %c0_34] {strides = array<i32: 2, 1>} : memref<264x128xf32, #tpu.memory_space<vmem>>, vector<128x128xf32>
    %c8_35 = arith.constant 8 : index
    %c0_36 = arith.constant 0 : index
    %65 = tpu.strided_load %arg14[%c8_35, %c0_36] {strides = array<i32: 2, 1>} : memref<264x128xf32, #tpu.memory_space<vmem>>, vector<128x128xf32>
    %c32_i32_37 = arith.constant 32 : i32
    %66 = vector.broadcast %c32_i32_37 : i32 to vector<1x128xi32>
    %67 = arith.cmpi slt, %6, %66 : vector<1x128xi32>
    %c64_i32 = arith.constant 64 : i32
    %68 = vector.broadcast %c64_i32 : i32 to vector<1x128xi32>
    %69 = arith.cmpi slt, %6, %68 : vector<1x128xi32>
    %70 = vector.shape_cast %69 : vector<1x128xi1> to vector<1x128xi1>
    %71 = vector.broadcast %70 : vector<1x128xi1> to vector<128x128xi1>
    %72 = arith.select %71, %64, %65 : vector<128x128xi1>, vector<128x128xf32>
    %73 = vector.shape_cast %67 : vector<1x128xi1> to vector<1x128xi1>
    %74 = vector.broadcast %73 : vector<1x128xi1> to vector<128x128xi1>
    %75 = arith.select %74, %63, %72 : vector<128x128xi1>, vector<128x128xf32>
    %c0_38 = arith.constant 0 : index
    %c0_39 = arith.constant 0 : index
    %76 = vector.load %arg6[%c0_38, %c0_39] : memref<128x128xf32, #tpu.memory_space<vmem>>, vector<128x128xf32>
    %cst_40 = arith.constant dense<0.000000e+00> : vector<128x128xf32>
    %77 = tpu.matmul %75, %76, %cst_40 {dimension_numbers = #tpu.dot_dimension_numbers<[1], [0], [0], [1], [0, 0, 1, 1], [], []>} : vector<128x128xf32>, vector<128x128xf32>, vector<128x128xf32> -> vector<128x128xf32>
    %c0_41 = arith.constant 0 : index
    %c0_42 = arith.constant 0 : index
    %78 = vector.load %arg7[%c0_41, %c0_42] : memref<1x128xf32, #tpu.memory_space<vmem>>, vector<1x128xf32>
    %79 = vector.broadcast %78 : vector<1x128xf32> to vector<128x128xf32>
    %80 = arith.addf %77, %79 : vector<128x128xf32>
    %81 = tpu.iota {dimensions = array<i32: 0>} : vector<128x1xi32>
    %c15_i32 = arith.constant 15 : i32
    %82 = vector.broadcast %c15_i32 : i32 to vector<128x1xi32>
    %83 = arith.andi %81, %82 : vector<128x1xi32>
    %c1_i32_43 = arith.constant 1 : i32
    %84 = vector.broadcast %c1_i32_43 : i32 to vector<128x1xi32>
    %85 = arith.cmpi sge, %83, %84 : vector<128x1xi32>
    %c13_i32 = arith.constant 13 : i32
    %86 = vector.broadcast %c13_i32 : i32 to vector<128x1xi32>
    %87 = arith.cmpi sle, %83, %86 : vector<128x1xi32>
    %88 = arith.andi %85, %87 : vector<128x1xi1>
    %cst_44 = arith.constant 2.000000e-01 : f32
    %89 = vector.broadcast %cst_44 : f32 to vector<128x128xf32>
    %90 = arith.mulf %89, %80 : vector<128x128xf32>
    %91 = arith.maximumf %80, %90 : vector<128x128xf32>
    %cst_45 = arith.constant 0.000000e+00 : f32
    %92 = vector.shape_cast %88 : vector<128x1xi1> to vector<128x1xi1>
    %93 = vector.broadcast %92 : vector<128x1xi1> to vector<128x128xi1>
    %94 = vector.broadcast %cst_45 : f32 to vector<128x128xf32>
    %95 = arith.select %93, %91, %94 : vector<128x128xi1>, vector<128x128xf32>
    %c8_46 = arith.constant 8 : index
    %c0_47 = arith.constant 0 : index
    %96 = vector.load %arg15[%c8_46, %c0_47] : memref<136x128xf32, #tpu.memory_space<vmem>>, vector<128x128xf32>
    tpu.vector_store %arg15[%c8_46, %c0_47], %95 {strides = array<i32>} : memref<136x128xf32, #tpu.memory_space<vmem>>, vector<128x128xf32>,
    %c6_48 = arith.constant 6 : index
    %c0_49 = arith.constant 0 : index
    %97 = tpu.strided_load %arg15[%c6_48, %c0_49] {strides = array<i32: 2, 1>} : memref<136x128xf32, #tpu.memory_space<vmem>>, vector<64x128xf32>
    %c7_50 = arith.constant 7 : index
    %c0_51 = arith.constant 0 : index
    %98 = tpu.strided_load %arg15[%c7_50, %c0_51] {strides = array<i32: 2, 1>} : memref<136x128xf32, #tpu.memory_space<vmem>>, vector<64x128xf32>
    %c8_52 = arith.constant 8 : index
    %c0_53 = arith.constant 0 : index
    %99 = tpu.strided_load %arg15[%c8_52, %c0_53] {strides = array<i32: 2, 1>} : memref<136x128xf32, #tpu.memory_space<vmem>>, vector<64x128xf32>
    %c64_i32_54 = arith.constant 64 : i32
    %100 = vector.broadcast %c64_i32_54 : i32 to vector<1x128xi32>
    %101 = arith.cmpi slt, %6, %100 : vector<1x128xi32>
    %102 = vector.shape_cast %101 : vector<1x128xi1> to vector<1x128xi1>
    %103 = vector.broadcast %102 : vector<1x128xi1> to vector<64x128xi1>
    %104 = arith.select %103, %97, %98 : vector<64x128xi1>, vector<64x128xf32>
    %105 = tpu.concatenate %104, %99 in 1 : vector<64x128xf32>, vector<64x128xf32> -> vector<64x256xf32>
    %c0_55 = arith.constant 0 : index
    %c0_56 = arith.constant 0 : index
    %106 = vector.load %arg8[%c0_55, %c0_56] : memref<256x128xf32, #tpu.memory_space<vmem>>, vector<256x128xf32>
    %cst_57 = arith.constant dense<0.000000e+00> : vector<64x128xf32>
    %107 = tpu.matmul %105, %106, %cst_57 {dimension_numbers = #tpu.dot_dimension_numbers<[1], [0], [0], [1], [0, 0, 1, 1], [], []>} : vector<64x256xf32>, vector<256x128xf32>, vector<64x128xf32> -> vector<64x128xf32>
    %c0_58 = arith.constant 0 : index
    %c0_59 = arith.constant 0 : index
    %108 = vector.load %arg9[%c0_58, %c0_59] : memref<1x128xf32, #tpu.memory_space<vmem>>, vector<1x128xf32>
    %109 = vector.broadcast %108 : vector<1x128xf32> to vector<64x128xf32>
    %110 = arith.addf %107, %109 : vector<64x128xf32>
    %111 = tpu.iota {dimensions = array<i32: 0>} : vector<64x1xi32>
    %c7_i32 = arith.constant 7 : i32
    %112 = vector.broadcast %c7_i32 : i32 to vector<64x1xi32>
    %113 = arith.andi %111, %112 : vector<64x1xi32>
    %c1_i32_60 = arith.constant 1 : i32
    %114 = vector.broadcast %c1_i32_60 : i32 to vector<64x1xi32>
    %115 = arith.cmpi sge, %113, %114 : vector<64x1xi32>
    %c7_i32_61 = arith.constant 7 : i32
    %116 = vector.broadcast %c7_i32_61 : i32 to vector<64x1xi32>
    %117 = arith.cmpi sle, %113, %116 : vector<64x1xi32>
    %118 = arith.andi %115, %117 : vector<64x1xi1>
    %cst_62 = arith.constant 2.000000e-01 : f32
    %119 = vector.broadcast %cst_62 : f32 to vector<64x128xf32>
    %120 = arith.mulf %119, %110 : vector<64x128xf32>
    %121 = arith.maximumf %110, %120 : vector<64x128xf32>
    %cst_63 = arith.constant 0.000000e+00 : f32
    %122 = vector.shape_cast %118 : vector<64x1xi1> to vector<64x1xi1>
    %123 = vector.broadcast %122 : vector<64x1xi1> to vector<64x128xi1>
    %124 = vector.broadcast %cst_63 : f32 to vector<64x128xf32>
    %125 = arith.select %123, %121, %124 : vector<64x128xi1>, vector<64x128xf32>
    %126 = vector.shape_cast %125 : vector<64x128xf32> to vector<8x8x128xf32>
    %c0_64 = arith.constant 0 : index
    %c0_65 = arith.constant 0 : index
    %127 = vector.load %arg10[%c0_64, %c0_65] : memref<8x128xf32, #tpu.memory_space<vmem>>, vector<8x128xf32>
    %128 = vector.shape_cast %127 : vector<8x128xf32> to vector<1x8x128xf32>
    %129 = vector.broadcast %128 : vector<1x8x128xf32> to vector<8x8x128xf32>
    %130 = arith.mulf %126, %129 : vector<8x8x128xf32>
    %cst_66 = arith.constant dense<0.000000e+00> : vector<8x8xf32>
    %131 = vector.multi_reduction <add>, %130, %cst_66 [2] : vector<8x8x128xf32> to vector<8x8xf32>
    %132 = tpu.transpose %131, [1, 0] : vector<8x8xf32> -> vector<8x8xf32>
    %cst_67 = arith.constant dense<0.000000e+00> : vector<8xf32>
    %133 = vector.multi_reduction <add>, %132, %cst_67 [0] : vector<8x8xf32> to vector<8xf32>
    %134 = vector.shape_cast %133 : vector<8xf32> to vector<1x8xf32>
    %c0_68 = arith.constant 0 : index
    %c0_69 = arith.constant 0 : index
    %135 = vector.load %arg11[%c0_68, %c0_69] : memref<1x1xf32, #tpu.memory_space<vmem>>, vector<1x1xf32>
    %136 = vector.broadcast %135 : vector<1x1xf32> to vector<1x8xf32>
    %137 = arith.addf %134, %136 : vector<1x8xf32>
    %c0_70 = arith.constant 0 : index
    %c0_71 = arith.constant 0 : index
    %138 = vector.load %arg12[%c0_70, %c0_71] : memref<1x8xf32, #tpu.memory_space<vmem>>, vector<1x8xf32>
    tpu.vector_store %arg12[%c0_70, %c0_71], %137 {strides = array<i32>} : memref<1x8xf32, #tpu.memory_space<vmem>>, vector<1x8xf32>,
    return
  }
  func.func @transform_0(%arg0: i32) -> (i32, i32) {
    %c0_i32 = arith.constant 0 : i32
    %c0_i32_0 = arith.constant 0 : i32
    return %arg0, %c0_i32 : i32, i32
  }
  func.func @transform_1(%arg0: i32) -> (i32, i32) {
    %c0_i32 = arith.constant 0 : i32
    %c0_i32_0 = arith.constant 0 : i32
    %c0_i32_1 = arith.constant 0 : i32
    return %c0_i32, %c0_i32_0 : i32, i32
  }
  func.func @transform_2(%arg0: i32) -> (i32, i32) {
    %c0_i32 = arith.constant 0 : i32
    %c0_i32_0 = arith.constant 0 : i32
    %c0_i32_1 = arith.constant 0 : i32
    return %c0_i32, %c0_i32_0 : i32, i32
  }
  func.func @transform_3(%arg0: i32) -> (i32, i32) {
    %c0_i32 = arith.constant 0 : i32
    %c0_i32_0 = arith.constant 0 : i32
    %c0_i32_1 = arith.constant 0 : i32
    return %c0_i32, %c0_i32_0 : i32, i32
  }
  func.func @transform_4(%arg0: i32) -> (i32, i32) {
    %c0_i32 = arith.constant 0 : i32
    %c0_i32_0 = arith.constant 0 : i32
    %c0_i32_1 = arith.constant 0 : i32
    return %c0_i32, %c0_i32_0 : i32, i32
  }
  func.func @transform_5(%arg0: i32) -> (i32, i32) {
    %c0_i32 = arith.constant 0 : i32
    %c0_i32_0 = arith.constant 0 : i32
    %c0_i32_1 = arith.constant 0 : i32
    return %c0_i32, %c0_i32_0 : i32, i32
  }
  func.func @transform_6(%arg0: i32) -> (i32, i32) {
    %c0_i32 = arith.constant 0 : i32
    %c0_i32_0 = arith.constant 0 : i32
    %c0_i32_1 = arith.constant 0 : i32
    return %c0_i32, %c0_i32_0 : i32, i32
  }
  func.func @transform_7(%arg0: i32) -> (i32, i32) {
    %c0_i32 = arith.constant 0 : i32
    %c0_i32_0 = arith.constant 0 : i32
    %c0_i32_1 = arith.constant 0 : i32
    return %c0_i32, %c0_i32_0 : i32, i32
  }
  func.func @transform_8(%arg0: i32) -> (i32, i32) {
    %c0_i32 = arith.constant 0 : i32
    %c0_i32_0 = arith.constant 0 : i32
    %c0_i32_1 = arith.constant 0 : i32
    return %c0_i32, %c0_i32_0 : i32, i32
  }
  func.func @transform_9(%arg0: i32) -> (i32, i32) {
    %c0_i32 = arith.constant 0 : i32
    %c0_i32_0 = arith.constant 0 : i32
    %c0_i32_1 = arith.constant 0 : i32
    return %c0_i32, %c0_i32_0 : i32, i32
  }
  func.func @transform_10(%arg0: i32) -> (i32, i32) {
    %c0_i32 = arith.constant 0 : i32
    %c0_i32_0 = arith.constant 0 : i32
    %c0_i32_1 = arith.constant 0 : i32
    return %c0_i32, %c0_i32_0 : i32, i32
  }
  func.func @transform_11(%arg0: i32) -> (i32, i32) {
    %c0_i32 = arith.constant 0 : i32
    %c0_i32_0 = arith.constant 0 : i32
    return %arg0, %c0_i32 : i32, i32
  }
}

</mosaic_0001>

<llo_original>
// kernel: squeeze.3
$region0: #{squeeze.3}
  %s0 = inlined_call_operand.vmem [shape: f32[896], index: 0, kind: input, shape index: {}]
  %s1 = inlined_call_operand.vmem [shape: f32[128,7], index: 1, kind: output, shape index: {}]
  %v2 = vld [vmem:[%s0] sm:$0x1]
  %vm3 = vcmask 56320
  %4 = vst.msk [vmem:[%s1] sm:$0x1] %vm3, %v2
  %s5 = scalar_lea.vmem %s0, 3
  %v6 = vld [vmem:[%s5] sm:$0x1]
  %7 = vrot.lane.b32.xlu0 %v6, 127
  %v8 = vpop.permute.xlu0 %7
  %vm9 = vcmask 56320
  %s10 = scalar_lea.vmem %s1, 55
  %11 = vst.msk [vmem:[%s10] sm:$0x1] %vm9, %v8
  %s12 = scalar_lea.vmem %s0, 6
  %v13 = vld [vmem:[%s12] sm:$0x1]
  %14 = vrot.lane.b32.xlu0 %v13, 126
  %v15 = vpop.permute.xlu0 %14
  %vm16 = vcmask 56320
  %s17 = scalar_lea.vmem %s1, 110
  %18 = vst.msk [vmem:[%s17] sm:$0x1] %vm16, %v15
  %s19 = scalar_lea.vmem %s0, 2
  %v20 = vld [vmem:[%s19] sm:$0x1]
  %21 = vrot.lane.b32.xlu0 %v20, 125
  %v22 = vpop.permute.xlu0 %21
  %vm23 = vcmask 56320
  %s24 = scalar_lea.vmem %s1, 37
  %25 = vst.msk [vmem:[%s24] sm:$0x1] %vm23, %v22
  %s26 = scalar_lea.vmem %s0, 5
  %v27 = vld [vmem:[%s26] sm:$0x1]
  %28 = vrot.lane.b32.xlu0 %v27, 124
  %v29 = vpop.permute.xlu0 %28
  %vm30 = vcmask 56320
  %s31 = scalar_lea.vmem %s1, 92
  %32 = vst.msk [vmem:[%s31] sm:$0x1] %vm30, %v29
  %s33 = scalar_lea.vmem %s0, 1
  %v34 = vld [vmem:[%s33] sm:$0x1]
  %35 = vrot.lane.b32.xlu0 %v34, 123
  %v36 = vpop.permute.xlu0 %35
  %vm37 = vcmask 56320
  %s38 = scalar_lea.vmem %s1, 19
  %39 = vst.msk [vmem:[%s38] sm:$0x1] %vm37, %v36
  %s40 = scalar_lea.vmem %s0, 4
  %v41 = vld [vmem:[%s40] sm:$0x1]
  %42 = vrot.lane.b32.xlu0 %v41, 122
  %v43 = vpop.permute.xlu0 %42
  %vm44 = vcmask 56320
  %s45 = scalar_lea.vmem %s1, 74
  %46 = vst.msk [vmem:[%s45] sm:$0x1] %vm44, %v43
  %v47 = vld [vmem:[%s0] sm:$0x1]
  %48 = vrot.lane.b32.xlu0 %v47, 121
  %v49 = vpop.permute.xlu0 %48
  %vm50 = vcmask 56320
  %s51 = scalar_lea.vmem %s1, 1
  %52 = vst.msk [vmem:[%s51] sm:$0x1] %vm50, %v49
  %s53 = scalar_lea.vmem %s0, 3
  %v54 = vld [vmem:[%s53] sm:$0x1]
  %55 = vrot.lane.b32.xlu0 %v54, 120
  %v56 = vpop.permute.xlu0 %55
  %vm57 = vcmask 56320
  %s58 = scalar_lea.vmem %s1, 56
  %59 = vst.msk [vmem:[%s58] sm:$0x1] %vm57, %v56
  %s60 = scalar_lea.vmem %s0, 6
  %v61 = vld [vmem:[%s60] sm:$0x1]
  %62 = vrot.lane.b32.xlu0 %v61, 119
  %v63 = vpop.permute.xlu0 %62
  %vm64 = vcmask 56320
  %s65 = scalar_lea.vmem %s1, 111
  %66 = vst.msk [vmem:[%s65] sm:$0x1] %vm64, %v63
  %s67 = scalar_lea.vmem %s0, 2
  %v68 = vld [vmem:[%s67] sm:$0x1]
  %69 = vrot.lane.b32.xlu0 %v68, 118
  %v70 = vpop.permute.xlu0 %69
  %vm71 = vcmask 56320
  %s72 = scalar_lea.vmem %s1, 38
  %73 = vst.msk [vmem:[%s72] sm:$0x1] %vm71, %v70
  %s74 = scalar_lea.vmem %s0, 5
  %v75 = vld [vmem:[%s74] sm:$0x1]
  %76 = vrot.lane.b32.xlu0 %v75, 117
  %v77 = vpop.permute.xlu0 %76
  %vm78 = vcmask 56320
  %s79 = scalar_lea.vmem %s1, 93
  %80 = vst.msk [vmem:[%s79] sm:$0x1] %vm78, %v77
  %s81 = scalar_lea.vmem %s0, 1
  %v82 = vld [vmem:[%s81] sm:$0x1]
  %83 = vrot.lane.b32.xlu0 %v82, 116
  %v84 = vpop.permute.xlu0 %83
  %vm85 = vcmask 56320
  %s86 = scalar_lea.vmem %s1, 20
  %87 = vst.msk [vmem:[%s86] sm:$0x1] %vm85, %v84
  %s88 = scalar_lea.vmem %s0, 4
  %v89 = vld [vmem:[%s88] sm:$0x1]
  %90 = vrot.lane.b32.xlu0 %v89, 115
  %v91 = vpop.permute.xlu0 %90
  %vm92 = vcmask 56320
  %s93 = scalar_lea.vmem %s1, 75
  %94 = vst.msk [vmem:[%s93] sm:$0x1] %vm92, %v91
  %v95 = vld [vmem:[%s0] sm:$0x1]
  %96 = vrot.lane.b32.xlu0 %v95, 114
  %v97 = vpop.permute.xlu0 %96
  %vm98 = vcmask 56320
  %s99 = scalar_lea.vmem %s1, 2
  %100 = vst.msk [vmem:[%s99] sm:$0x1] %vm98, %v97
  %s101 = scalar_lea.vmem %s0, 3
  %v102 = vld [vmem:[%s101] sm:$0x1]
  %103 = vrot.lane.b32.xlu0 %v102, 113
  %v104 = vpop.permute.xlu0 %103
  %vm105 = vcmask 56320
  %s106 = scalar_lea.vmem %s1, 57
  %107 = vst.msk [vmem:[%s106] sm:$0x1] %vm105, %v104
  %s108 = scalar_lea.vmem %s0, 6
  %v109 = vld [vmem:[%s108] sm:$0x1]
  %110 = vrot.lane.b32.xlu0 %v109, 112
  %v111 = vpop.permute.xlu0 %110
  %vm112 = vcmask 56320
  %s113 = scalar_lea.vmem %s1, 112
  %114 = vst.msk [vmem:[%s113] sm:$0x1] %vm112, %v111
  %s115 = scalar_lea.vmem %s0, 2
  %v116 = vld [vmem:[%s115] sm:$0x1]
  %117 = vrot.lane.b32.xlu0 %v116, 111
  %v118 = vpop.permute.xlu0 %117
  %vm119 = vcmask 56320
  %s120 = scalar_lea.vmem %s1, 39
  %121 = vst.msk [vmem:[%s120] sm:$0x1] %vm119, %v118
  %s122 = scalar_lea.vmem %s0, 5
  %v123 = vld [vmem:[%s122] sm:$0x1]
  %124 = vrot.lane.b32.xlu0 %v123, 110
  %v125 = vpop.permute.xlu0 %124
  %vm126 = vcmask 56320
  %s127 = scalar_lea.vmem %s1, 94
  %128 = vst.msk [vmem:[%s127] sm:$0x1] %vm126, %v125
  %s129 = scalar_lea.vmem %s0, 1
  %v130 = vld [vmem:[%s129] sm:$0x1]
  %131 = vrot.lane.b32.xlu0 %v130, 109
  %v132 = vpop.permute.xlu0 %131
  %vm133 = vcmask 56320
  %s134 = scalar_lea.vmem %s1, 21
  %135 = vst.msk [vmem:[%s134] sm:$0x1] %vm133, %v132
  %s136 = scalar_lea.vmem %s0, 4
  %v137 = vld [vmem:[%s136] sm:$0x1]
  %138 = vrot.lane.b32.xlu0 %v137, 108
  %v139 = vpop.permute.xlu0 %138
  %vm140 = vcmask 56320
  %s141 = scalar_lea.vmem %s1, 76
  %142 = vst.msk [vmem:[%s141] sm:$0x1] %vm140, %v139
  %v143 = vld [vmem:[%s0] sm:$0x1]
  %144 = vrot.lane.b32.xlu0 %v143, 107
  %v145 = vpop.permute.xlu0 %144
  %vm146 = vcmask 56320
  %s147 = scalar_lea.vmem %s1, 3
  %148 = vst.msk [vmem:[%s147] sm:$0x1] %vm146, %v145
  %s149 = scalar_lea.vmem %s0, 3
  %v150 = vld [vmem:[%s149] sm:$0x1]
  %151 = vrot.lane.b32.xlu0 %v150, 106
  %v152 = vpop.permute.xlu0 %151
  %vm153 = vcmask 56320
  %s154 = scalar_lea.vmem %s1, 58
  %155 = vst.msk [vmem:[%s154] sm:$0x1] %vm153, %v152
  %s156 = scalar_lea.vmem %s0, 6
  %v157 = vld [vmem:[%s156] sm:$0x1]
  %158 = vrot.lane.b32.xlu0 %v157, 105
  %v159 = vpop.permute.xlu0 %158
  %vm160 = vcmask 56320
  %s161 = scalar_lea.vmem %s1, 113
  %162 = vst.msk [vmem:[%s161] sm:$0x1] %vm160, %v159
  %s163 = scalar_lea.vmem %s0, 2
  %v164 = vld [vmem:[%s163] sm:$0x1]
  %165 = vrot.lane.b32.xlu0 %v164, 104
  %v166 = vpop.permute.xlu0 %165
  %vm167 = vcmask 56320
  %s168 = scalar_lea.vmem %s1, 40
  %169 = vst.msk [vmem:[%s168] sm:$0x1] %vm167, %v166
  %s170 = scalar_lea.vmem %s0, 5
  %v171 = vld [vmem:[%s170] sm:$0x1]
  %172 = vrot.lane.b32.xlu0 %v171, 103
  %v173 = vpop.permute.xlu0 %172
  %vm174 = vcmask 56320
  %s175 = scalar_lea.vmem %s1, 95
  %176 = vst.msk [vmem:[%s175] sm:$0x1] %vm174, %v173
  %s177 = scalar_lea.vmem %s0, 1
  %v178 = vld [vmem:[%s177] sm:$0x1]
  %179 = vrot.lane.b32.xlu0 %v178, 102
  %v180 = vpop.permute.xlu0 %179
  %vm181 = vcmask 56320
  %s182 = scalar_lea.vmem %s1, 22
  %183 = vst.msk [vmem:[%s182] sm:$0x1] %vm181, %v180
  %s184 = scalar_lea.vmem %s0, 4
  %v185 = vld [vmem:[%s184] sm:$0x1]
  %186 = vrot.lane.b32.xlu0 %v185, 101
  %v187 = vpop.permute.xlu0 %186
  %vm188 = vcmask 56320
  %s189 = scalar_lea.vmem %s1, 77
  %190 = vst.msk [vmem:[%s189] sm:$0x1] %vm188, %v187
  %v191 = vld [vmem:[%s0] sm:$0x1]
  %192 = vrot.lane.b32.xlu0 %v191, 100
  %v193 = vpop.permute.xlu0 %192
  %vm194 = vcmask 56320
  %s195 = scalar_lea.vmem %s1, 4
  %196 = vst.msk [vmem:[%s195] sm:$0x1] %vm194, %v193
  %s197 = scalar_lea.vmem %s0, 3
  %v198 = vld [vmem:[%s197] sm:$0x1]
  %199 = vrot.lane.b32.xlu0 %v198, 99
  %v200 = vpop.permute.xlu0 %199
  %vm201 = vcmask 56320
  %s202 = scalar_lea.vmem %s1, 59
  %203 = vst.msk [vmem:[%s202] sm:$0x1] %vm201, %v200
  %s204 = scalar_lea.vmem %s0, 6
  %v205 = vld [vmem:[%s204] sm:$0x1]
  %206 = vrot.lane.b32.xlu0 %v205, 98
  %v207 = vpop.permute.xlu0 %206
  %vm208 = vcmask 56320
  %s209 = scalar_lea.vmem %s1, 114
  %210 = vst.msk [vmem:[%s209] sm:$0x1] %vm208, %v207
  %s211 = scalar_lea.vmem %s0, 2
  %v212 = vld [vmem:[%s211] sm:$0x1]
  %213 = vrot.lane.b32.xlu0 %v212, 97
  %v214 = vpop.permute.xlu0 %213
  %vm215 = vcmask 56320
  %s216 = scalar_lea.vmem %s1, 41
  %217 = vst.msk [vmem:[%s216] sm:$0x1] %vm215, %v214
  %s218 = scalar_lea.vmem %s0, 5
  %v219 = vld [vmem:[%s218] sm:$0x1]
  %220 = vrot.lane.b32.xlu0 %v219, 96
  %v221 = vpop.permute.xlu0 %220
  %vm222 = vcmask 56320
  %s223 = scalar_lea.vmem %s1, 96
  %224 = vst.msk [vmem:[%s223] sm:$0x1] %vm222, %v221
  %s225 = scalar_lea.vmem %s0, 1
  %v226 = vld [vmem:[%s225] sm:$0x1]
  %227 = vrot.lane.b32.xlu0 %v226, 95
  %v228 = vpop.permute.xlu0 %227
  %vm229 = vcmask 56320
  %s230 = scalar_lea.vmem %s1, 23
  %231 = vst.msk [vmem:[%s230] sm:$0x1] %vm229, %v228
  %s232 = scalar_lea.vmem %s0, 4
  %v233 = vld [vmem:[%s232] sm:$0x1]
  %234 = vrot.lane.b32.xlu0 %v233, 94
  %v235 = vpop.permute.xlu0 %234
  %vm236 = vcmask 56320
  %s237 = scalar_lea.vmem %s1, 78
  %238 = vst.msk [vmem:[%s237] sm:$0x1] %vm236, %v235
  %v239 = vld [vmem:[%s0] sm:$0x1]
  %240 = vrot.lane.b32.xlu0 %v239, 93
  %v241 = vpop.permute.xlu0 %240
  %vm242 = vcmask 56320
  %s243 = scalar_lea.vmem %s1, 5
  %244 = vst.msk [vmem:[%s243] sm:$0x1] %vm242, %v241
  %s245 = scalar_lea.vmem %s0, 3
  %v246 = vld [vmem:[%s245] sm:$0x1]
  %247 = vrot.lane.b32.xlu0 %v246, 92
  %v248 = vpop.permute.xlu0 %247
  %vm249 = vcmask 56320
  %s250 = scalar_lea.vmem %s1, 60
  %251 = vst.msk [vmem:[%s250] sm:$0x1] %vm249, %v248
  %s252 = scalar_lea.vmem %s0, 6
  %v253 = vld [vmem:[%s252] sm:$0x1]
  %254 = vrot.lane.b32.xlu0 %v253, 91
  %v255 = vpop.permute.xlu0 %254
  %vm256 = vcmask 56320
  %s257 = scalar_lea.vmem %s1, 115
  %258 = vst.msk [vmem:[%s257] sm:$0x1] %vm256, %v255
  %s259 = scalar_lea.vmem %s0, 2
  %v260 = vld [vmem:[%s259] sm:$0x1]
  %261 = vrot.lane.b32.xlu0 %v260, 90
  %v262 = vpop.permute.xlu0 %261
  %vm263 = vcmask 56320
  %s264 = scalar_lea.vmem %s1, 42
  %265 = vst.msk [vmem:[%s264] sm:$0x1] %vm263, %v262
  %s266 = scalar_lea.vmem %s0, 5
  %v267 = vld [vmem:[%s266] sm:$0x1]
  %268 = vrot.lane.b32.xlu0 %v267, 89
  %v269 = vpop.permute.xlu0 %268
  %vm270 = vcmask 56320
  %s271 = scalar_lea.vmem %s1, 97
  %272 = vst.msk [vmem:[%s271] sm:$0x1] %vm270, %v269
  %s273 = scalar_lea.vmem %s0, 1
  %v274 = vld [vmem:[%s273] sm:$0x1]
  %275 = vrot.lane.b32.xlu0 %v274, 88
  %v276 = vpop.permute.xlu0 %275
  %vm277 = vcmask 56320
  %s278 = scalar_lea.vmem %s1, 24
  %279 = vst.msk [vmem:[%s278] sm:$0x1] %vm277, %v276
  %s280 = scalar_lea.vmem %s0, 4
  %v281 = vld [vmem:[%s280] sm:$0x1]
  %282 = vrot.lane.b32.xlu0 %v281, 87
  %v283 = vpop.permute.xlu0 %282
  %vm284 = vcmask 56320
  %s285 = scalar_lea.vmem %s1, 79
  %286 = vst.msk [vmem:[%s285] sm:$0x1] %vm284, %v283
  %v287 = vld [vmem:[%s0] sm:$0x1]
  %288 = vrot.lane.b32.xlu0 %v287, 86
  %v289 = vpop.permute.xlu0 %288
  %vm290 = vcmask 56320
  %s291 = scalar_lea.vmem %s1, 6
  %292 = vst.msk [vmem:[%s291] sm:$0x1] %vm290, %v289
  %s293 = scalar_lea.vmem %s0, 3
  %v294 = vld [vmem:[%s293] sm:$0x1]
  %295 = vrot.lane.b32.xlu0 %v294, 85
  %v296 = vpop.permute.xlu0 %295
  %vm297 = vcmask 56320
  %s298 = scalar_lea.vmem %s1, 61
  %299 = vst.msk [vmem:[%s298] sm:$0x1] %vm297, %v296
  %s300 = scalar_lea.vmem %s0, 6
  %v301 = vld [vmem:[%s300] sm:$0x1]
  %302 = vrot.lane.b32.xlu0 %v301, 84
  %v303 = vpop.permute.xlu0 %302
  %vm304 = vcmask 56320
  %s305 = scalar_lea.vmem %s1, 116
  %306 = vst.msk [vmem:[%s305] sm:$0x1] %vm304, %v303
  %s307 = scalar_lea.vmem %s0, 2
  %v308 = vld [vmem:[%s307] sm:$0x1]
  %309 = vrot.lane.b32.xlu0 %v308, 83
  %v310 = vpop.permute.xlu0 %309
  %vm311 = vcmask 56320
  %s312 = scalar_lea.vmem %s1, 43
  %313 = vst.msk [vmem:[%s312] sm:$0x1] %vm311, %v310
  %s314 = scalar_lea.vmem %s0, 5
  %v315 = vld [vmem:[%s314] sm:$0x1]
  %316 = vrot.lane.b32.xlu0 %v315, 82
  %v317 = vpop.permute.xlu0 %316
  %vm318 = vcmask 56320
  %s319 = scalar_lea.vmem %s1, 98
  %320 = vst.msk [vmem:[%s319] sm:$0x1] %vm318, %v317
  %s321 = scalar_lea.vmem %s0, 1
  %v322 = vld [vmem:[%s321] sm:$0x1]
  %323 = vrot.lane.b32.xlu0 %v322, 81
  %v324 = vpop.permute.xlu0 %323
  %vm325 = vcmask 56320
  %s326 = scalar_lea.vmem %s1, 25
  %327 = vst.msk [vmem:[%s326] sm:$0x1] %vm325, %v324
  %s328 = scalar_lea.vmem %s0, 4
  %v329 = vld [vmem:[%s328] sm:$0x1]
  %330 = vrot.lane.b32.xlu0 %v329, 80
  %v331 = vpop.permute.xlu0 %330
  %vm332 = vcmask 56320
  %s333 = scalar_lea.vmem %s1, 80
  %334 = vst.msk [vmem:[%s333] sm:$0x1] %vm332, %v331
  %v335 = vld [vmem:[%s0] sm:$0x1]
  %336 = vrot.lane.b32.xlu0 %v335, 79
  %v337 = vpop.permute.xlu0 %336
  %vm338 = vcmask 56320
  %s339 = scalar_lea.vmem %s1, 7
  %340 = vst.msk [vmem:[%s339] sm:$0x1] %vm338, %v337
  %s341 = scalar_lea.vmem %s0, 3
  %v342 = vld [vmem:[%s341] sm:$0x1]
  %343 = vrot.lane.b32.xlu0 %v342, 78
  %v344 = vpop.permute.xlu0 %343
  %vm345 = vcmask 56320
  %s346 = scalar_lea.vmem %s1, 62
  %347 = vst.msk [vmem:[%s346] sm:$0x1] %vm345, %v344
  %s348 = scalar_lea.vmem %s0, 6
  %v349 = vld [vmem:[%s348] sm:$0x1]
  %350 = vrot.lane.b32.xlu0 %v349, 77
  %v351 = vpop.permute.xlu0 %350
  %vm352 = vcmask 56320
  %s353 = scalar_lea.vmem %s1, 117
  %354 = vst.msk [vmem:[%s353] sm:$0x1] %vm352, %v351
  %s355 = scalar_lea.vmem %s0, 2
  %v356 = vld [vmem:[%s355] sm:$0x1]
  %357 = vrot.lane.b32.xlu0 %v356, 76
  %v358 = vpop.permute.xlu0 %357
  %vm359 = vcmask 56320
  %s360 = scalar_lea.vmem %s1, 44
  %361 = vst.msk [vmem:[%s360] sm:$0x1] %vm359, %v358
  %s362 = scalar_lea.vmem %s0, 5
  %v363 = vld [vmem:[%s362] sm:$0x1]
  %364 = vrot.lane.b32.xlu0 %v363, 75
  %v365 = vpop.permute.xlu0 %364
  %vm366 = vcmask 56320
  %s367 = scalar_lea.vmem %s1, 99
  %368 = vst.msk [vmem:[%s367] sm:$0x1] %vm366, %v365
  %s369 = scalar_lea.vmem %s0, 1
  %v370 = vld [vmem:[%s369] sm:$0x1]
  %371 = vrot.lane.b32.xlu0 %v370, 74
  %v372 = vpop.permute.xlu0 %371
  %vm373 = vcmask 56320
  %s374 = scalar_lea.vmem %s1, 26
  %375 = vst.msk [vmem:[%s374] sm:$0x1] %vm373, %v372
  %s376 = scalar_lea.vmem %s0, 4
  %v377 = vld [vmem:[%s376] sm:$0x1]
  %378 = vrot.lane.b32.xlu0 %v377, 73
  %v379 = vpop.permute.xlu0 %378
  %vm380 = vcmask 56320
  %s381 = scalar_lea.vmem %s1, 81
  %382 = vst.msk [vmem:[%s381] sm:$0x1] %vm380, %v379
  %v383 = vld [vmem:[%s0] sm:$0x1]
  %384 = vrot.lane.b32.xlu0 %v383, 72
  %v385 = vpop.permute.xlu0 %384
  %vm386 = vcmask 56320
  %s387 = scalar_lea.vmem %s1, 8
  %388 = vst.msk [vmem:[%s387] sm:$0x1] %vm386, %v385
  %s389 = scalar_lea.vmem %s0, 3
  %v390 = vld [vmem:[%s389] sm:$0x1]
  %391 = vrot.lane.b32.xlu0 %v390, 71
  %v392 = vpop.permute.xlu0 %391
  %vm393 = vcmask 56320
  %s394 = scalar_lea.vmem %s1, 63
  %395 = vst.msk [vmem:[%s394] sm:$0x1] %vm393, %v392
  %s396 = scalar_lea.vmem %s0, 6
  %v397 = vld [vmem:[%s396] sm:$0x1]
  %398 = vrot.lane.b32.xlu0 %v397, 70
  %v399 = vpop.permute.xlu0 %398
  %vm400 = vcmask 56320
  %s401 = scalar_lea.vmem %s1, 118
  %402 = vst.msk [vmem:[%s401] sm:$0x1] %vm400, %v399
  %s403 = scalar_lea.vmem %s0, 2
  %v404 = vld [vmem:[%s403] sm:$0x1]
  %405 = vrot.lane.b32.xlu0 %v404, 69
  %v406 = vpop.permute.xlu0 %405
  %vm407 = vcmask 56320
  %s408 = scalar_lea.vmem %s1, 45
  %409 = vst.msk [vmem:[%s408] sm:$0x1] %vm407, %v406
  %s410 = scalar_lea.vmem %s0, 5
  %v411 = vld [vmem:[%s410] sm:$0x1]
  %412 = vrot.lane.b32.xlu0 %v411, 68
  %v413 = vpop.permute.xlu0 %412
  %vm414 = vcmask 56320
  %s415 = scalar_lea.vmem %s1, 100
  %416 = vst.msk [vmem:[%s415] sm:$0x1] %vm414, %v413
  %s417 = scalar_lea.vmem %s0, 1
  %v418 = vld [vmem:[%s417] sm:$0x1]
  %419 = vrot.lane.b32.xlu0 %v418, 67
  %v420 = vpop.permute.xlu0 %419
  %vm421 = vcmask 56320
  %s422 = scalar_lea.vmem %s1, 27
  %423 = vst.msk [vmem:[%s422] sm:$0x1] %vm421, %v420
  %s424 = scalar_lea.vmem %s0, 4
  %v425 = vld [vmem:[%s424] sm:$0x1]
  %426 = vrot.lane.b32.xlu0 %v425, 66
  %v427 = vpop.permute.xlu0 %426
  %vm428 = vcmask 56320
  %s429 = scalar_lea.vmem %s1, 82
  %430 = vst.msk [vmem:[%s429] sm:$0x1] %vm428, %v427
  %v431 = vld [vmem:[%s0] sm:$0x1]
  %432 = vrot.lane.b32.xlu0 %v431, 65
  %v433 = vpop.permute.xlu0 %432
  %vm434 = vcmask 56320
  %s435 = scalar_lea.vmem %s1, 9
  %436 = vst.msk [vmem:[%s435] sm:$0x1] %vm434, %v433
  %s437 = scalar_lea.vmem %s0, 3
  %v438 = vld [vmem:[%s437] sm:$0x1]
  %439 = vrot.lane.b32.xlu0 %v438, 64
  %v440 = vpop.permute.xlu0 %439
  %vm441 = vcmask 56320
  %s442 = scalar_lea.vmem %s1, 64
  %443 = vst.msk [vmem:[%s442] sm:$0x1] %vm441, %v440
  %s444 = scalar_lea.vmem %s0, 6
  %v445 = vld [vmem:[%s444] sm:$0x1]
  %446 = vrot.lane.b32.xlu0 %v445, 63
  %v447 = vpop.permute.xlu0 %446
  %vm448 = vcmask 56320
  %s449 = scalar_lea.vmem %s1, 119
  %450 = vst.msk [vmem:[%s449] sm:$0x1] %vm448, %v447
  %s451 = scalar_lea.vmem %s0, 2
  %v452 = vld [vmem:[%s451] sm:$0x1]
  %453 = vrot.lane.b32.xlu0 %v452, 62
  %v454 = vpop.permute.xlu0 %453
  %vm455 = vcmask 56320
  %s456 = scalar_lea.vmem %s1, 46
  %457 = vst.msk [vmem:[%s456] sm:$0x1] %vm455, %v454
  %s458 = scalar_lea.vmem %s0, 5
  %v459 = vld [vmem:[%s458] sm:$0x1]
  %460 = vrot.lane.b32.xlu0 %v459, 61
  %v461 = vpop.permute.xlu0 %460
  %vm462 = vcmask 56320
  %s463 = scalar_lea.vmem %s1, 101
  %464 = vst.msk [vmem:[%s463] sm:$0x1] %vm462, %v461
  %s465 = scalar_lea.vmem %s0, 1
  %v466 = vld [vmem:[%s465] sm:$0x1]
  %467 = vrot.lane.b32.xlu0 %v466, 60
  %v468 = vpop.permute.xlu0 %467
  %vm469 = vcmask 56320
  %s470 = scalar_lea.vmem %s1, 28
  %471 = vst.msk [vmem:[%s470] sm:$0x1] %vm469, %v468
  %s472 = scalar_lea.vmem %s0, 4
  %v473 = vld [vmem:[%s472] sm:$0x1]
  %474 = vrot.lane.b32.xlu0 %v473, 59
  %v475 = vpop.permute.xlu0 %474
  %vm476 = vcmask 56320
  %s477 = scalar_lea.vmem %s1, 83
  %478 = vst.msk [vmem:[%s477] sm:$0x1] %vm476, %v475
  %v479 = vld [vmem:[%s0] sm:$0x1]
  %480 = vrot.lane.b32.xlu0 %v479, 58
  %v481 = vpop.permute.xlu0 %480
  %vm482 = vcmask 56320
  %s483 = scalar_lea.vmem %s1, 10
  %484 = vst.msk [vmem:[%s483] sm:$0x1] %vm482, %v481
  %s485 = scalar_lea.vmem %s0, 3
  %v486 = vld [vmem:[%s485] sm:$0x1]
  %487 = vrot.lane.b32.xlu0 %v486, 57
  %v488 = vpop.permute.xlu0 %487
  %vm489 = vcmask 56320
  %s490 = scalar_lea.vmem %s1, 65
  %491 = vst.msk [vmem:[%s490] sm:$0x1] %vm489, %v488
  %s492 = scalar_lea.vmem %s0, 6
  %v493 = vld [vmem:[%s492] sm:$0x1]
  %494 = vrot.lane.b32.xlu0 %v493, 56
  %v495 = vpop.permute.xlu0 %494
  %vm496 = vcmask 56320
  %s497 = scalar_lea.vmem %s1, 120
  %498 = vst.msk [vmem:[%s497] sm:$0x1] %vm496, %v495
  %s499 = scalar_lea.vmem %s0, 2
  %v500 = vld [vmem:[%s499] sm:$0x1]
  %501 = vrot.lane.b32.xlu0 %v500, 55
  %v502 = vpop.permute.xlu0 %501
  %vm503 = vcmask 56320
  %s504 = scalar_lea.vmem %s1, 47
  %505 = vst.msk [vmem:[%s504] sm:$0x1] %vm503, %v502
  %s506 = scalar_lea.vmem %s0, 5
  %v507 = vld [vmem:[%s506] sm:$0x1]
  %508 = vrot.lane.b32.xlu0 %v507, 54
  %v509 = vpop.permute.xlu0 %508
  %vm510 = vcmask 56320
  %s511 = scalar_lea.vmem %s1, 102
  %512 = vst.msk [vmem:[%s511] sm:$0x1] %vm510, %v509
  %s513 = scalar_lea.vmem %s0, 1
  %v514 = vld [vmem:[%s513] sm:$0x1]
  %515 = vrot.lane.b32.xlu0 %v514, 53
  %v516 = vpop.permute.xlu0 %515
  %vm517 = vcmask 56320
  %s518 = scalar_lea.vmem %s1, 29
  %519 = vst.msk [vmem:[%s518] sm:$0x1] %vm517, %v516
  %s520 = scalar_lea.vmem %s0, 4
  %v521 = vld [vmem:[%s520] sm:$0x1]
  %522 = vrot.lane.b32.xlu0 %v521, 52
  %v523 = vpop.permute.xlu0 %522
  %vm524 = vcmask 56320
  %s525 = scalar_lea.vmem %s1, 84
  %526 = vst.msk [vmem:[%s525] sm:$0x1] %vm524, %v523
  %v527 = vld [vmem:[%s0] sm:$0x1]
  %528 = vrot.lane.b32.xlu0 %v527, 51
  %v529 = vpop.permute.xlu0 %528
  %vm530 = vcmask 56320
  %s531 = scalar_lea.vmem %s1, 11
  %532 = vst.msk [vmem:[%s531] sm:$0x1] %vm530, %v529
  %s533 = scalar_lea.vmem %s0, 3
  %v534 = vld [vmem:[%s533] sm:$0x1]
  %535 = vrot.lane.b32.xlu0 %v534, 50
  %v536 = vpop.permute.xlu0 %535
  %vm537 = vcmask 56320
  %s538 = scalar_lea.vmem %s1, 66
  %539 = vst.msk [vmem:[%s538] sm:$0x1] %vm537, %v536
  %s540 = scalar_lea.vmem %s0, 6
  %v541 = vld [vmem:[%s540] sm:$0x1]
  %542 = vrot.lane.b32.xlu0 %v541, 49
  %v543 = vpop.permute.xlu0 %542
  %vm544 = vcmask 56320
  %s545 = scalar_lea.vmem %s1, 121
  %546 = vst.msk [vmem:[%s545] sm:$0x1] %vm544, %v543
  %s547 = scalar_lea.vmem %s0, 2
  %v548 = vld [vmem:[%s547] sm:$0x1]
  %549 = vrot.lane.b32.xlu0 %v548, 48
  %v550 = vpop.permute.xlu0 %549
  %vm551 = vcmask 56320
  %s552 = scalar_lea.vmem %s1, 48
  %553 = vst.msk [vmem:[%s552] sm:$0x1] %vm551, %v550
  %s554 = scalar_lea.vmem %s0, 5
  %v555 = vld [vmem:[%s554] sm:$0x1]
  %556 = vrot.lane.b32.xlu0 %v555, 47
  %v557 = vpop.permute.xlu0 %556
  %vm558 = vcmask 56320
  %s559 = scalar_lea.vmem %s1, 103
  %560 = vst.msk [vmem:[%s559] sm:$0x1] %vm558, %v557
  %s561 = scalar_lea.vmem %s0, 1
  %v562 = vld [vmem:[%s561] sm:$0x1]
  %563 = vrot.lane.b32.xlu0 %v562, 46
  %v564 = vpop.permute.xlu0 %563
  %vm565 = vcmask 56320
  %s566 = scalar_lea.vmem %s1, 30
  %567 = vst.msk [vmem:[%s566] sm:$0x1] %vm565, %v564
  %s568 = scalar_lea.vmem %s0, 4
  %v569 = vld [vmem:[%s568] sm:$0x1]
  %570 = vrot.lane.b32.xlu0 %v569, 45
  %v571 = vpop.permute.xlu0 %570
  %vm572 = vcmask 56320
  %s573 = scalar_lea.vmem %s1, 85
  %574 = vst.msk [vmem:[%s573] sm:$0x1] %vm572, %v571
  %v575 = vld [vmem:[%s0] sm:$0x1]
  %576 = vrot.lane.b32.xlu0 %v575, 44
  %v577 = vpop.permute.xlu0 %576
  %vm578 = vcmask 56320
  %s579 = scalar_lea.vmem %s1, 12
  %580 = vst.msk [vmem:[%s579] sm:$0x1] %vm578, %v577
  %s581 = scalar_lea.vmem %s0, 3
  %v582 = vld [vmem:[%s581] sm:$0x1]
  %583 = vrot.lane.b32.xlu0 %v582, 43
  %v584 = vpop.permute.xlu0 %583
  %vm585 = vcmask 56320
  %s586 = scalar_lea.vmem %s1, 67
  %587 = vst.msk [vmem:[%s586] sm:$0x1] %vm585, %v584
  %s588 = scalar_lea.vmem %s0, 6
  %v589 = vld [vmem:[%s588] sm:$0x1]
  %590 = vrot.lane.b32.xlu0 %v589, 42
  %v591 = vpop.permute.xlu0 %590
  %vm592 = vcmask 56320
  %s593 = scalar_lea.vmem %s1, 122
  %594 = vst.msk [vmem:[%s593] sm:$0x1] %vm592, %v591
  %s595 = scalar_lea.vmem %s0, 2
  %v596 = vld [vmem:[%s595] sm:$0x1]
  %597 = vrot.lane.b32.xlu0 %v596, 41
  %v598 = vpop.permute.xlu0 %597
  %vm599 = vcmask 56320
  %s600 = scalar_lea.vmem %s1, 49
  %601 = vst.msk [vmem:[%s600] sm:$0x1] %vm599, %v598
  %s602 = scalar_lea.vmem %s0, 5
  %v603 = vld [vmem:[%s602] sm:$0x1]
  %604 = vrot.lane.b32.xlu0 %v603, 40
  %v605 = vpop.permute.xlu0 %604
  %vm606 = vcmask 56320
  %s607 = scalar_lea.vmem %s1, 104
  %608 = vst.msk [vmem:[%s607] sm:$0x1] %vm606, %v605
  %s609 = scalar_lea.vmem %s0, 1
  %v610 = vld [vmem:[%s609] sm:$0x1]
  %611 = vrot.lane.b32.xlu0 %v610, 39
  %v612 = vpop.permute.xlu0 %611
  %vm613 = vcmask 56320
  %s614 = scalar_lea.vmem %s1, 31
  %615 = vst.msk [vmem:[%s614] sm:$0x1] %vm613, %v612
  %s616 = scalar_lea.vmem %s0, 4
  %v617 = vld [vmem:[%s616] sm:$0x1]
  %618 = vrot.lane.b32.xlu0 %v617, 38
  %v619 = vpop.permute.xlu0 %618
  %vm620 = vcmask 56320
  %s621 = scalar_lea.vmem %s1, 86
  %622 = vst.msk [vmem:[%s621] sm:$0x1] %vm620, %v619
  %v623 = vld [vmem:[%s0] sm:$0x1]
  %624 = vrot.lane.b32.xlu0 %v623, 37
  %v625 = vpop.permute.xlu0 %624
  %vm626 = vcmask 56320
  %s627 = scalar_lea.vmem %s1, 13
  %628 = vst.msk [vmem:[%s627] sm:$0x1] %vm626, %v625
  %s629 = scalar_lea.vmem %s0, 3
  %v630 = vld [vmem:[%s629] sm:$0x1]
  %631 = vrot.lane.b32.xlu0 %v630, 36
  %v632 = vpop.permute.xlu0 %631
  %vm633 = vcmask 56320
  %s634 = scalar_lea.vmem %s1, 68
  %635 = vst.msk [vmem:[%s634] sm:$0x1] %vm633, %v632
  %s636 = scalar_lea.vmem %s0, 6
  %v637 = vld [vmem:[%s636] sm:$0x1]
  %638 = vrot.lane.b32.xlu0 %v637, 35
  %v639 = vpop.permute.xlu0 %638
  %vm640 = vcmask 56320
  %s641 = scalar_lea.vmem %s1, 123
  %642 = vst.msk [vmem:[%s641] sm:$0x1] %vm640, %v639
  %s643 = scalar_lea.vmem %s0, 2
  %v644 = vld [vmem:[%s643] sm:$0x1]
  %645 = vrot.lane.b32.xlu0 %v644, 34
  %v646 = vpop.permute.xlu0 %645
  %vm647 = vcmask 56320
  %s648 = scalar_lea.vmem %s1, 50
  %649 = vst.msk [vmem:[%s648] sm:$0x1] %vm647, %v646
  %s650 = scalar_lea.vmem %s0, 5
  %v651 = vld [vmem:[%s650] sm:$0x1]
  %652 = vrot.lane.b32.xlu0 %v651, 33
  %v653 = vpop.permute.xlu0 %652
  %vm654 = vcmask 56320
  %s655 = scalar_lea.vmem %s1, 105
  %656 = vst.msk [vmem:[%s655] sm:$0x1] %vm654, %v653
  %s657 = scalar_lea.vmem %s0, 1
  %v658 = vld [vmem:[%s657] sm:$0x1]
  %659 = vrot.lane.b32.xlu0 %v658, 32
  %v660 = vpop.permute.xlu0 %659
  %vm661 = vcmask 56320
  %s662 = scalar_lea.vmem %s1, 32
  %663 = vst.msk [vmem:[%s662] sm:$0x1] %vm661, %v660
  %s664 = scalar_lea.vmem %s0, 4
  %v665 = vld [vmem:[%s664] sm:$0x1]
  %666 = vrot.lane.b32.xlu0 %v665, 31
  %v667 = vpop.permute.xlu0 %666
  %vm668 = vcmask 56320
  %s669 = scalar_lea.vmem %s1, 87
  %670 = vst.msk [vmem:[%s669] sm:$0x1] %vm668, %v667
  %v671 = vld [vmem:[%s0] sm:$0x1]
  %672 = vrot.lane.b32.xlu0 %v671, 30
  %v673 = vpop.permute.xlu0 %672
  %vm674 = vcmask 56320
  %s675 = scalar_lea.vmem %s1, 14
  %676 = vst.msk [vmem:[%s675] sm:$0x1] %vm674, %v673
  %s677 = scalar_lea.vmem %s0, 3
  %v678 = vld [vmem:[%s677] sm:$0x1]
  %679 = vrot.lane.b32.xlu0 %v678, 29
  %v680 = vpop.permute.xlu0 %679
  %vm681 = vcmask 56320
  %s682 = scalar_lea.vmem %s1, 69
  %683 = vst.msk [vmem:[%s682] sm:$0x1] %vm681, %v680
  %s684 = scalar_lea.vmem %s0, 6
  %v685 = vld [vmem:[%s684] sm:$0x1]
  %686 = vrot.lane.b32.xlu0 %v685, 28
  %v687 = vpop.permute.xlu0 %686
  %vm688 = vcmask 56320
  %s689 = scalar_lea.vmem %s1, 124
  %690 = vst.msk [vmem:[%s689] sm:$0x1] %vm688, %v687
  %s691 = scalar_lea.vmem %s0, 2
  %v692 = vld [vmem:[%s691] sm:$0x1]
  %693 = vrot.lane.b32.xlu0 %v692, 27
  %v694 = vpop.permute.xlu0 %693
  %vm695 = vcmask 56320
  %s696 = scalar_lea.vmem %s1, 51
  %697 = vst.msk [vmem:[%s696] sm:$0x1] %vm695, %v694
  %s698 = scalar_lea.vmem %s0, 5
  %v699 = vld [vmem:[%s698] sm:$0x1]
  %700 = vrot.lane.b32.xlu0 %v699, 26
  %v701 = vpop.permute.xlu0 %700
  %vm702 = vcmask 56320
  %s703 = scalar_lea.vmem %s1, 106
  %704 = vst.msk [vmem:[%s703] sm:$0x1] %vm702, %v701
  %s705 = scalar_lea.vmem %s0, 1
  %v706 = vld [vmem:[%s705] sm:$0x1]
  %707 = vrot.lane.b32.xlu0 %v706, 25
  %v708 = vpop.permute.xlu0 %707
  %vm709 = vcmask 56320
  %s710 = scalar_lea.vmem %s1, 33
  %711 = vst.msk [vmem:[%s710] sm:$0x1] %vm709, %v708
  %s712 = scalar_lea.vmem %s0, 4
  %v713 = vld [vmem:[%s712] sm:$0x1]
  %714 = vrot.lane.b32.xlu0 %v713, 24
  %v715 = vpop.permute.xlu0 %714
  %vm716 = vcmask 56320
  %s717 = scalar_lea.vmem %s1, 88
  %718 = vst.msk [vmem:[%s717] sm:$0x1] %vm716, %v715
  %v719 = vld [vmem:[%s0] sm:$0x1]
  %720 = vrot.lane.b32.xlu0 %v719, 23
  %v721 = vpop.permute.xlu0 %720
  %vm722 = vcmask 56320
  %s723 = scalar_lea.vmem %s1, 15
  %724 = vst.msk [vmem:[%s723] sm:$0x1] %vm722, %v721
  %s725 = scalar_lea.vmem %s0, 3
  %v726 = vld [vmem:[%s725] sm:$0x1]
  %727 = vrot.lane.b32.xlu0 %v726, 22
  %v728 = vpop.permute.xlu0 %727
  %vm729 = vcmask 56320
  %s730 = scalar_lea.vmem %s1, 70
  %731 = vst.msk [vmem:[%s730] sm:$0x1] %vm729, %v728
  %s732 = scalar_lea.vmem %s0, 6
  %v733 = vld [vmem:[%s732] sm:$0x1]
  %734 = vrot.lane.b32.xlu0 %v733, 21
  %v735 = vpop.permute.xlu0 %734
  %vm736 = vcmask 56320
  %s737 = scalar_lea.vmem %s1, 125
  %738 = vst.msk [vmem:[%s737] sm:$0x1] %vm736, %v735
  %s739 = scalar_lea.vmem %s0, 2
  %v740 = vld [vmem:[%s739] sm:$0x1]
  %741 = vrot.lane.b32.xlu0 %v740, 20
  %v742 = vpop.permute.xlu0 %741
  %vm743 = vcmask 56320
  %s744 = scalar_lea.vmem %s1, 52
  %745 = vst.msk [vmem:[%s744] sm:$0x1] %vm743, %v742
  %s746 = scalar_lea.vmem %s0, 5
  %v747 = vld [vmem:[%s746] sm:$0x1]
  %748 = vrot.lane.b32.xlu0 %v747, 19
  %v749 = vpop.permute.xlu0 %748
  %vm750 = vcmask 56320
  %s751 = scalar_lea.vmem %s1, 107
  %752 = vst.msk [vmem:[%s751] sm:$0x1] %vm750, %v749
  %s753 = scalar_lea.vmem %s0, 1
  %v754 = vld [vmem:[%s753] sm:$0x1]
  %755 = vrot.lane.b32.xlu0 %v754, 18
  %v756 = vpop.permute.xlu0 %755
  %vm757 = vcmask 56320
  %s758 = scalar_lea.vmem %s1, 34
  %759 = vst.msk [vmem:[%s758] sm:$0x1] %vm757, %v756
  %s760 = scalar_lea.vmem %s0, 4
  %v761 = vld [vmem:[%s760] sm:$0x1]
  %762 = vrot.lane.b32.xlu0 %v761, 17
  %v763 = vpop.permute.xlu0 %762
  %vm764 = vcmask 56320
  %s765 = scalar_lea.vmem %s1, 89
  %766 = vst.msk [vmem:[%s765] sm:$0x1] %vm764, %v763
  %v767 = vld [vmem:[%s0] sm:$0x1]
  %768 = vrot.lane.b32.xlu0 %v767, 16
  %v769 = vpop.permute.xlu0 %768
  %vm770 = vcmask 56320
  %s771 = scalar_lea.vmem %s1, 16
  %772 = vst.msk [vmem:[%s771] sm:$0x1] %vm770, %v769
  %s773 = scalar_lea.vmem %s0, 3
  %v774 = vld [vmem:[%s773] sm:$0x1]
  %775 = vrot.lane.b32.xlu0 %v774, 15
  %v776 = vpop.permute.xlu0 %775
  %vm777 = vcmask 56320
  %s778 = scalar_lea.vmem %s1, 71
  %779 = vst.msk [vmem:[%s778] sm:$0x1] %vm777, %v776
  %s780 = scalar_lea.vmem %s0, 6
  %v781 = vld [vmem:[%s780] sm:$0x1]
  %782 = vrot.lane.b32.xlu0 %v781, 14
  %v783 = vpop.permute.xlu0 %782
  %vm784 = vcmask 56320
  %s785 = scalar_lea.vmem %s1, 126
  %786 = vst.msk [vmem:[%s785] sm:$0x1] %vm784, %v783
  %s787 = scalar_lea.vmem %s0, 2
  %v788 = vld [vmem:[%s787] sm:$0x1]
  %789 = vrot.lane.b32.xlu0 %v788, 13
  %v790 = vpop.permute.xlu0 %789
  %vm791 = vcmask 56320
  %s792 = scalar_lea.vmem %s1, 53
  %793 = vst.msk [vmem:[%s792] sm:$0x1] %vm791, %v790
  %s794 = scalar_lea.vmem %s0, 5
  %v795 = vld [vmem:[%s794] sm:$0x1]
  %796 = vrot.lane.b32.xlu0 %v795, 12
  %v797 = vpop.permute.xlu0 %796
  %vm798 = vcmask 56320
  %s799 = scalar_lea.vmem %s1, 108
  %800 = vst.msk [vmem:[%s799] sm:$0x1] %vm798, %v797
  %s801 = scalar_lea.vmem %s0, 1
  %v802 = vld [vmem:[%s801] sm:$0x1]
  %803 = vrot.lane.b32.xlu0 %v802, 11
  %v804 = vpop.permute.xlu0 %803
  %vm805 = vcmask 56320
  %s806 = scalar_lea.vmem %s1, 35
  %807 = vst.msk [vmem:[%s806] sm:$0x1] %vm805, %v804
  %s808 = scalar_lea.vmem %s0, 4
  %v809 = vld [vmem:[%s808] sm:$0x1]
  %810 = vrot.lane.b32.xlu0 %v809, 10
  %v811 = vpop.permute.xlu0 %810
  %vm812 = vcmask 56320
  %s813 = scalar_lea.vmem %s1, 90
  %814 = vst.msk [vmem:[%s813] sm:$0x1] %vm812, %v811
  %v815 = vld [vmem:[%s0] sm:$0x1]
  %816 = vrot.lane.b32.xlu0 %v815, 9
  %v817 = vpop.permute.xlu0 %816
  %vm818 = vcmask 56320
  %s819 = scalar_lea.vmem %s1, 17
  %820 = vst.msk [vmem:[%s819] sm:$0x1] %vm818, %v817
  %s821 = scalar_lea.vmem %s0, 3
  %v822 = vld [vmem:[%s821] sm:$0x1]
  %823 = vrot.lane.b32.xlu0 %v822, 8
  %v824 = vpop.permute.xlu0 %823
  %vm825 = vcmask 56320
  %s826 = scalar_lea.vmem %s1, 72
  %827 = vst.msk [vmem:[%s826] sm:$0x1] %vm825, %v824
  %s828 = scalar_lea.vmem %s0, 6
  %v829 = vld [vmem:[%s828] sm:$0x1]
  %830 = vrot.lane.b32.xlu0 %v829, 7
  %v831 = vpop.permute.xlu0 %830
  %vm832 = vcmask 56320
  %s833 = scalar_lea.vmem %s1, 127
  %834 = vst.msk [vmem:[%s833] sm:$0x1] %vm832, %v831
  %s835 = scalar_lea.vmem %s0, 2
  %v836 = vld [vmem:[%s835] sm:$0x1]
  %s837 = scalar_lea.vmem %s0, 3
  %v838 = vld [vmem:[%s837] sm:$0x1]
  %vm839 = vcmask 998400
  %v840 = vsel %vm839, %v838, %v836
  %841 = vrot.lane.b32.xlu0 %v840, 6
  %v842 = vpop.permute.xlu0 %841
  %vm843 = vcmask 48128
  %s844 = scalar_lea.vmem %s1, 54
  %845 = vst.msk [vmem:[%s844] sm:$0x1] %vm843, %v842
  %vm846 = vcmask 56368
  %s847 = scalar_lea.vmem %s1, 54
  %848 = vst.msk [vmem:[%s847] sm:$0x1] %vm846, %v842
  %s849 = scalar_lea.vmem %s0, 5
  %v850 = vld [vmem:[%s849] sm:$0x1]
  %s851 = scalar_lea.vmem %s0, 6
  %v852 = vld [vmem:[%s851] sm:$0x1]
  %vm853 = vcmask 1006592
  %v854 = vsel %vm853, %v852, %v850
  %855 = vrot.lane.b32.xlu0 %v854, 5
  %v856 = vpop.permute.xlu0 %855
  %vm857 = vcmask 39936
  %s858 = scalar_lea.vmem %s1, 109
  %859 = vst.msk [vmem:[%s858] sm:$0x1] %vm857, %v856
  %vm860 = vcmask 56360
  %s861 = scalar_lea.vmem %s1, 109
  %862 = vst.msk [vmem:[%s861] sm:$0x1] %vm860, %v856
  %s863 = scalar_lea.vmem %s0, 1
  %v864 = vld [vmem:[%s863] sm:$0x1]
  %s865 = scalar_lea.vmem %s0, 2
  %v866 = vld [vmem:[%s865] sm:$0x1]
  %vm867 = vcmask 1014784
  %v868 = vsel %vm867, %v866, %v864
  %869 = vrot.lane.b32.xlu0 %v868, 4
  %v870 = vpop.permute.xlu0 %869
  %vm871 = vcmask 31744
  %s872 = scalar_lea.vmem %s1, 36
  %873 = vst.msk [vmem:[%s872] sm:$0x1] %vm871, %v870
  %vm874 = vcmask 56352
  %s875 = scalar_lea.vmem %s1, 36
  %876 = vst.msk [vmem:[%s875] sm:$0x1] %vm874, %v870
  %s877 = scalar_lea.vmem %s0, 4
  %v878 = vld [vmem:[%s877] sm:$0x1]
  %s879 = scalar_lea.vmem %s0, 5
  %v880 = vld [vmem:[%s879] sm:$0x1]
  %vm881 = vcmask 1022976
  %v882 = vsel %vm881, %v880, %v878
  %883 = vrot.lane.b32.xlu0 %v882, 3
  %v884 = vpop.permute.xlu0 %883
  %vm885 = vcmask 23552
  %s886 = scalar_lea.vmem %s1, 91
  %887 = vst.msk [vmem:[%s886] sm:$0x1] %vm885, %v884
  %vm888 = vcmask 56344
  %s889 = scalar_lea.vmem %s1, 91
  %890 = vst.msk [vmem:[%s889] sm:$0x1] %vm888, %v884
  %v891 = vld [vmem:[%s0] sm:$0x1]
  %s892 = scalar_lea.vmem %s0, 1
  %v893 = vld [vmem:[%s892] sm:$0x1]
  %vm894 = vcmask 1031168
  %v895 = vsel %vm894, %v893, %v891
  %896 = vrot.lane.b32.xlu0 %v895, 2
  %v897 = vpop.permute.xlu0 %896
  %vm898 = vcmask 15360
  %s899 = scalar_lea.vmem %s1, 18
  %900 = vst.msk [vmem:[%s899] sm:$0x1] %vm898, %v897
  %vm901 = vcmask 56336
  %s902 = scalar_lea.vmem %s1, 18
  %903 = vst.msk [vmem:[%s902] sm:$0x1] %vm901, %v897
  %s904 = scalar_lea.vmem %s0, 3
  %v905 = vld [vmem:[%s904] sm:$0x1]
  %s906 = scalar_lea.vmem %s0, 4
  %v907 = vld [vmem:[%s906] sm:$0x1]
  %vm908 = vcmask 1039360
  %v909 = vsel %vm908, %v907, %v905
  %910 = vrot.lane.b32.xlu0 %v909, 1
  %v911 = vpop.permute.xlu0 %910
  %vm912 = vcmask 7168
  %s913 = scalar_lea.vmem %s1, 73
  %914 = vst.msk [vmem:[%s913] sm:$0x1] %vm912, %v911
  %vm915 = vcmask 56328
  %s916 = scalar_lea.vmem %s1, 73
  %917 = vst.msk [vmem:[%s916] sm:$0x1] %vm915, %v911

// kernel: tile.33
$region0: #{tile.33}
  %s0 = inlined_call_operand.vmem [shape: f32[3,3,16], index: 0, kind: input, shape index: {}]
  %s1 = inlined_call_operand.vmem [shape: f32[3,48], index: 1, kind: output, shape index: {}]
  $region1: #{tile.33} parent=0
    #allocation0 [shape = 'u8[4096]{0}', space=vmem, size = 0x1000, scoped, tag = 'scoped mem for output reshape']
    #allocation1 [shape = 'u8[12288]{0}', space=vmem, size = 0x3000, scoped, tag = 'scoped mem for input reshape']
    %s3 = sshll.u32 1, 4
    %s4 = ssub.s32 %s3, 1
    %s5 = smul.addr 4, 2
    %s6 = scalar_lea.vmem %s0, %s5
    %v7 = vld [vmem:[%s6] sm:%s4]
    %s8 = scalar_lea.vmem [#allocation1], 16
    %9 = vst [vmem:[%s8] sm:%s4] %v7
    %s10 = scalar_lea.vmem %s0, 4
    %v11 = vld [vmem:[%s10] sm:%s4]
    %s12 = scalar_lea.vmem [#allocation1], 8
    %13 = vst [vmem:[%s12] sm:%s4] %v11
    %v14 = vld [vmem:[%s0] sm:%s4]
    %15 = vst [vmem:[#allocation1] sm:%s4] %v14
    %v16 = vld [vmem:[#allocation1] ss:$8 sm:$0x7]
    %vm17 = vcmask 130048
    %18 = vst.msk [vmem:[#allocation0] sm:$0x7] %vm17, %v16
    %s19 = scalar_lea.vmem [#allocation1], 2
    %v20 = vld [vmem:[%s19] ss:$8 sm:$0x7]
    %21 = vrot.lane.b32.xlu0 %v20, 32
    %v22 = vpop.permute.xlu0 %21
    %vm23 = vcmask 392448
    %24 = vst.msk [vmem:[#allocation0] sm:$0x7] %vm23, %v22
    %s25 = scalar_lea.vmem [#allocation1], 1
    %v26 = vld [vmem:[%s25] ss:$8 sm:$0x7]
    %27 = vrot.lane.b32.xlu0 %v26, 16
    %v28 = vpop.permute.xlu0 %27
    %vm29 = vcmask 261248
    %30 = vst.msk [vmem:[#allocation0] sm:$0x7] %vm29, %v28
    %s32 = sshll.u32 1, 4
    %s33 = ssub.s32 %s32, 1
    %v35 = vld [vmem:[#allocation0] sm:%s33]
    %s36 = sshll.u32 1, 4
    %s37 = ssub.s32 %s36, 1
    %38 = vst [vmem:[%s1] sm:%s37] %v35

// kernel: tile.46
$region0: #{tile.46}
  #allocation0 [shape = 's32[1]{0}', space=sflag, size = 0x4, scoped, tag = 'scoped memory for tile.46']
  %s0 = inlined_call_operand.vmem [shape: f32[32], index: 0, kind: input, shape index: {}]
  %s1 = inlined_call_operand.vmem [shape: f32[3,32], index: 1, kind: output, shape index: {}]
  // Predicated region
  $region2: #{tile.46} parent=0 // pred_check
    _
  $region3: #{tile.46} parent=0 // pred_check_branch
    %3 = sbr.rel (0) target = $region5
  $region4: #{tile.46} parent=0 // pred_region
    _
  $region5: #{tile.46} parent=0 // pred_fallthru
    _
  %v4 = vld [vmem:[%s0] ss:$0 sm:$0xff]
  %5 = vst [vmem:[%s1] sm:$0xf] %v4

// kernel: tile.47
$region0: #{tile.47}
  %s0 = inlined_call_operand.vmem [shape: f32[3,32], index: 0, kind: input, shape index: {}]
  %s1 = inlined_call_operand.vmem [shape: f32[1,96], index: 1, kind: output, shape index: {}]
  $region1: #{tile.47} parent=0
    #allocation0 [shape = 'u8[4096]{0}', space=vmem, size = 0x1000, scoped, tag = 'scoped mem for output reshape']
    #allocation1 [shape = 'u8[4096]{0}', space=vmem, size = 0x1000, scoped, tag = 'scoped mem for input reshape']
    %s3 = sshll.u32 1, 4
    %s4 = ssub.s32 %s3, 1
    %v5 = vld [vmem:[%s0] sm:%s4]
    %6 = vst [vmem:[#allocation1] sm:%s4] %v5
    %v7 = vld [vmem:[#allocation1] sm:$0x1]
    %vm8 = vcmask 261120
    %9 = vst.msk [vmem:[#allocation0] sm:$0x1] %vm8, %v7
    %s10 = scalar_lea.vmem [#allocation1], 2
    %v11 = vld [vmem:[%s10] sm:$0x1]
    %12 = vrot.lane.b32.xlu0 %v11, 64
    %v13 = vpop.permute.xlu0 %12
    %vm14 = vcmask 785920
    %15 = vst.msk [vmem:[#allocation0] sm:$0x1] %vm14, %v13
    %s16 = scalar_lea.vmem [#allocation1], 1
    %v17 = vld [vmem:[%s16] sm:$0x1]
    %18 = vrot.lane.b32.xlu0 %v17, 32
    %v19 = vpop.permute.xlu0 %18
    %vm20 = vcmask 523520
    %21 = vst.msk [vmem:[#allocation0] sm:$0x1] %vm20, %v19
    %s23 = sshll.u32 1, 1
    %s24 = ssub.s32 %s23, 1
    %v26 = vld [vmem:[#allocation0] sm:%s24]
    %s27 = sshll.u32 1, 1
    %s28 = ssub.s32 %s27, 1
    %29 = vst [vmem:[%s1] sm:%s28] %v26

// kernel: tile.37
$region0: #{tile.37}
  #allocation0 [shape = 's32[1]{0}', space=sflag, size = 0x4, scoped, tag = 'scoped memory for tile.37']
  %s0 = inlined_call_operand.vmem [shape: f32[16], index: 0, kind: input, shape index: {}]
  %s1 = inlined_call_operand.vmem [shape: f32[3,16], index: 1, kind: output, shape index: {}]
  // Predicated region
  $region2: #{tile.37} parent=0 // pred_check
    _
  $region3: #{tile.37} parent=0 // pred_check_branch
    %3 = sbr.rel (0) target = $region5
  $region4: #{tile.37} parent=0 // pred_region
    _
  $region5: #{tile.37} parent=0 // pred_fallthru
    _
  %v4 = vld [vmem:[%s0] ss:$0 sm:$0xff]
  %5 = vst [vmem:[%s1] sm:$0xf] %v4

// kernel: tile.38
$region0: #{tile.38}
  %s0 = inlined_call_operand.vmem [shape: f32[3,16], index: 0, kind: input, shape index: {}]
  %s1 = inlined_call_operand.vmem [shape: f32[1,48], index: 1, kind: output, shape index: {}]
  $region1: #{tile.38} parent=0
    #allocation0 [shape = 'u8[4096]{0}', space=vmem, size = 0x1000, scoped, tag = 'scoped mem for output reshape']
    #allocation1 [shape = 'u8[4096]{0}', space=vmem, size = 0x1000, scoped, tag = 'scoped mem for input reshape']
    %s3 = sshll.u32 1, 4
    %s4 = ssub.s32 %s3, 1
    %v5 = vld [vmem:[%s0] sm:%s4]
    %6 = vst [vmem:[#allocation1] sm:%s4] %v5
    %v7 = vld [vmem:[#allocation1] sm:$0x1]
    %vm8 = vcmask 130048
    %9 = vst.msk [vmem:[#allocation0] sm:$0x1] %vm8, %v7
    %s10 = scalar_lea.vmem [#allocation1], 2
    %v11 = vld [vmem:[%s10] sm:$0x1]
    %12 = vrot.lane.b32.xlu0 %v11, 32
    %v13 = vpop.permute.xlu0 %12
    %vm14 = vcmask 392448
    %15 = vst.msk [vmem:[#allocation0] sm:$0x1] %vm14, %v13
    %s16 = scalar_lea.vmem [#allocation1], 1
    %v17 = vld [vmem:[%s16] sm:$0x1]
    %18 = vrot.lane.b32.xlu0 %v17, 16
    %v19 = vpop.permute.xlu0 %18
    %vm20 = vcmask 261248
    %21 = vst.msk [vmem:[#allocation0] sm:$0x1] %vm20, %v19
    %s23 = sshll.u32 1, 1
    %s24 = ssub.s32 %s23, 1
    %v26 = vld [vmem:[#allocation0] sm:%s24]
    %s27 = sshll.u32 1, 1
    %s28 = ssub.s32 %s27, 1
    %29 = vst [vmem:[%s1] sm:%s28] %v26

// kernel: tile.55
$region0: #{tile.55}
  #allocation0 [shape = 's32[1]{0}', space=sflag, size = 0x4, scoped, tag = 'scoped memory for tile.55']
  %s0 = inlined_call_operand.vmem [shape: f32[64], index: 0, kind: input, shape index: {}]
  %s1 = inlined_call_operand.vmem [shape: f32[2,64], index: 1, kind: output, shape index: {}]
  // Predicated region
  $region2: #{tile.55} parent=0 // pred_check
    _
  $region3: #{tile.55} parent=0 // pred_check_branch
    %3 = sbr.rel (0) target = $region5
  $region4: #{tile.55} parent=0 // pred_region
    _
  $region5: #{tile.55} parent=0 // pred_fallthru
    _
  %v4 = vld [vmem:[%s0] ss:$0 sm:$0xff]
  %5 = vst [vmem:[%s1] sm:$0x3] %v4

// kernel: tile.56
$region0: #{tile.56}
  %s0 = inlined_call_operand.vmem [shape: f32[2,64], index: 0, kind: input, shape index: {}]
  %s1 = inlined_call_operand.vmem [shape: f32[1,128], index: 1, kind: output, shape index: {}]
  $region1: #{tile.56} parent=0
    #allocation0 [shape = 'u8[4096]{0}', space=vmem, size = 0x1000, scoped, tag = 'scoped mem for output reshape']
    #allocation1 [shape = 'u8[4096]{0}', space=vmem, size = 0x1000, scoped, tag = 'scoped mem for input reshape']
    %s3 = sshll.u32 1, 2
    %s4 = ssub.s32 %s3, 1
    %v5 = vld [vmem:[%s0] sm:%s4]
    %6 = vst [vmem:[#allocation1] sm:%s4] %v5
    %v7 = vld [vmem:[#allocation1] sm:$0x1]
    %vm8 = vcmask 523264
    %9 = vst.msk [vmem:[#allocation0] sm:$0x1] %vm8, %v7
    %s10 = scalar_lea.vmem [#allocation1], 1
    %v11 = vld [vmem:[%s10] sm:$0x1]
    %12 = vrot.lane.b32.xlu0 %v11, 64
    %v13 = vpop.permute.xlu0 %12
    %vm14 = vcmask 1048064
    %15 = vst.msk [vmem:[#allocation0] sm:$0x1] %vm14, %v13
    %s17 = sshll.u32 1, 1
    %s18 = ssub.s32 %s17, 1
    %v20 = vld [vmem:[#allocation0] sm:%s18]
    %s21 = sshll.u32 1, 1
    %s22 = ssub.s32 %s21, 1
    %23 = vst [vmem:[%s1] sm:%s22] %v20

// kernel: discriminator_forward.1
$region0: #{discriminator_forward.1}
  #allocation0 [shape = 'u32[]', space=smem, size = 0x4, offset = 0x4, fixed_abs, tag = 'smem constant byte address 0x4 - core index']
  #allocation1 [shape = 'u32[144,128]{1,0:T(1,128)}', space=vmem, size = 0x12000, scoped, tag = 'internal scratch']
  #allocation2 [shape = 'f32[520,128]{1,0:T(8,128)}', space=vmem, size = 0x41000, scoped, tag = 'scratch operand']
  #allocation3 [shape = 'f32[264,128]{1,0:T(8,128)}', space=vmem, size = 0x21000, scoped, tag = 'scratch operand']
  #allocation4 [shape = 'f32[136,128]{1,0:T(8,128)}', space=vmem, size = 0x11000, scoped, tag = 'scratch operand']
  #allocation5 [shape = 'f32[1,1]{1,0:T(1,128)S(1)}', space=vmem, size = 0x200, scoped, tag = 'scoped memory for discriminator_forward.1']
  %s0 = inlined_call_operand.vmem [shape: f32[512,8], index: 0, kind: input, shape index: {}]
  %s1 = inlined_call_operand.vmem [shape: f32[8,128], index: 1, kind: input, shape index: {}]
  %s2 = inlined_call_operand.vmem [shape: f32[1,128], index: 2, kind: input, shape index: {}]
  %s3 = inlined_call_operand.vmem [shape: f32[128,128], index: 3, kind: input, shape index: {}]
  %s4 = inlined_call_operand.vmem [shape: f32[1,128], index: 4, kind: input, shape index: {}]
  %s5 = inlined_call_operand.vmem [shape: f32[128,128], index: 5, kind: input, shape index: {}]
  %s6 = inlined_call_operand.vmem [shape: f32[1,128], index: 6, kind: input, shape index: {}]
  %s7 = inlined_call_operand.vmem [shape: f32[256,128], index: 7, kind: input, shape index: {}]
  %s8 = inlined_call_operand.vmem [shape: f32[1,128], index: 8, kind: input, shape index: {}]
  %s9 = inlined_call_operand.vmem [shape: f32[8,128], index: 9, kind: input, shape index: {}]
  %s10 = inlined_call_operand.<no memory space> [shape: f32[1,1], index: 10, kind: input, shape index: {}]
  %s11 = inlined_call_operand.vmem [shape: f32[1,8], index: 11, kind: output, shape index: {}]
  %s12 = sld [smem:[#allocation0]]
  $region54: #{discriminator_forward.1} parent=0
    _
  %s14 = ssub.s32 1, %s12
  %s15 = scalar_select 0, %s14, %s12
  %v16 = vstv %s10
  %17 = vst [vmem:[#allocation5] sm:$0x1] %v16
  // Predicated region
  $region2: #{discriminator_forward.1} parent=0 // pred_check
    _
  $region3: #{discriminator_forward.1} parent=0 // pred_check_branch
    %19 = sbr.rel (0) target = $region5
  $region4: #{discriminator_forward.1} parent=0 // pred_region
    _
  $region5: #{discriminator_forward.1} parent=0 // pred_fallthru
    _
  // Predicated region
  $region6: #{discriminator_forward.1} parent=0 // pred_check
    _
  $region7: #{discriminator_forward.1} parent=0 // pred_check_branch
    %21 = sbr.rel (0) target = $region9
  $region8: #{discriminator_forward.1} parent=0 // pred_region
    _
  $region9: #{discriminator_forward.1} parent=0 // pred_fallthru
    _
  // Predicated region
  $region10: #{discriminator_forward.1} parent=0 // pred_check
    _
  $region11: #{discriminator_forward.1} parent=0 // pred_check_branch
    %23 = sbr.rel (0) target = $region13
  $region12: #{discriminator_forward.1} parent=0 // pred_region
    _
  $region13: #{discriminator_forward.1} parent=0 // pred_fallthru
    _
  // Predicated region
  $region14: #{discriminator_forward.1} parent=0 // pred_check
    _
  $region15: #{discriminator_forward.1} parent=0 // pred_check_branch
    %25 = sbr.rel (0) target = $region17
  $region16: #{discriminator_forward.1} parent=0 // pred_region
    _
  $region17: #{discriminator_forward.1} parent=0 // pred_fallthru
    _
  // Predicated region
  $region18: #{discriminator_forward.1} parent=0 // pred_check
    _
  $region19: #{discriminator_forward.1} parent=0 // pred_check_branch
    %27 = sbr.rel (0) target = $region21
  $region20: #{discriminator_forward.1} parent=0 // pred_region
    _
  $region21: #{discriminator_forward.1} parent=0 // pred_fallthru
    _
  // Predicated region
  $region22: #{discriminator_forward.1} parent=0 // pred_check
    _
  $region23: #{discriminator_forward.1} parent=0 // pred_check_branch
    %29 = sbr.rel (0) target = $region25
  $region24: #{discriminator_forward.1} parent=0 // pred_region
    _
  $region25: #{discriminator_forward.1} parent=0 // pred_fallthru
    _
  // Predicated region
  $region26: #{discriminator_forward.1} parent=0 // pred_check
    _
  $region27: #{discriminator_forward.1} parent=0 // pred_check_branch
    %31 = sbr.rel (0) target = $region29
  $region28: #{discriminator_forward.1} parent=0 // pred_region
    _
  $region29: #{discriminator_forward.1} parent=0 // pred_fallthru
    _
  // Predicated region
  $region30: #{discriminator_forward.1} parent=0 // pred_check
    _
  $region31: #{discriminator_forward.1} parent=0 // pred_check_branch
    %33 = sbr.rel (0) target = $region33
  $region32: #{discriminator_forward.1} parent=0 // pred_region
    _
  $region33: #{discriminator_forward.1} parent=0 // pred_fallthru
    _
  // Predicated region
  $region34: #{discriminator_forward.1} parent=0 // pred_check
    _
  $region35: #{discriminator_forward.1} parent=0 // pred_check_branch
    %35 = sbr.rel (0) target = $region37
  $region36: #{discriminator_forward.1} parent=0 // pred_region
    _
  $region37: #{discriminator_forward.1} parent=0 // pred_fallthru
    _
  // Predicated region
  $region38: #{discriminator_forward.1} parent=0 // pred_check
    _
  $region39: #{discriminator_forward.1} parent=0 // pred_check_branch
    %37 = sbr.rel (0) target = $region41
  $region40: #{discriminator_forward.1} parent=0 // pred_region
    _
  $region41: #{discriminator_forward.1} parent=0 // pred_fallthru
    _
  // Predicated region
  $region42: #{discriminator_forward.1} parent=0 // pred_check
    _
  $region43: #{discriminator_forward.1} parent=0 // pred_check_branch
    %39 = sbr.rel (0) target = $region45
  $region44: #{discriminator_forward.1} parent=0 // pred_region
    _
  $region45: #{discriminator_forward.1} parent=0 // pred_fallthru
    _
  %40 = vst [vmem:[#allocation2] sm:$0xff] 0.0
  %41 = vst [vmem:[#allocation3] sm:$0xff] 0.0
  %42 = vst [vmem:[#allocation4] sm:$0xff] 0.0
  %v43 = vlaneseq
  %v44 = vand.u32 %v43, 127
  %v45 = vld [vmem:[%s0] sm:$0xff]
  %v46 = vld [vmem:[%s0 + $0x8] sm:$0xff]
  %v47 = vld [vmem:[%s0 + $0x10] sm:$0xff]
  %v48 = vld [vmem:[%s0 + $0x18] sm:$0xff]
  %v49 = vld [vmem:[%s0 + $0x20] sm:$0xff]
  %v50 = vld [vmem:[%s0 + $0x28] sm:$0xff]
  %v51 = vld [vmem:[%s0 + $0x30] sm:$0xff]
  %v52 = vld [vmem:[%s0 + $0x38] sm:$0xff]
  %v53 = vld [vmem:[%s0 + $0x40] sm:$0xff]
  %v54 = vld [vmem:[%s0 + $0x48] sm:$0xff]
  %v55 = vld [vmem:[%s0 + $0x50] sm:$0xff]
  %v56 = vld [vmem:[%s0 + $0x58] sm:$0xff]
  %v57 = vld [vmem:[%s0 + $0x60] sm:$0xff]
  %v58 = vld [vmem:[%s0 + $0x68] sm:$0xff]
  %v59 = vld [vmem:[%s0 + $0x70] sm:$0xff]
  %v60 = vld [vmem:[%s0 + $0x78] sm:$0xff]
  %v61 = vld [vmem:[%s0 + $0x80] sm:$0xff]
  %v62 = vld [vmem:[%s0 + $0x88] sm:$0xff]
  %v63 = vld [vmem:[%s0 + $0x90] sm:$0xff]
  %v64 = vld [vmem:[%s0 + $0x98] sm:$0xff]
  %v65 = vld [vmem:[%s0 + $0xa0] sm:$0xff]
  %v66 = vld [vmem:[%s0 + $0xa8] sm:$0xff]
  %v67 = vld [vmem:[%s0 + $0xb0] sm:$0xff]
  %v68 = vld [vmem:[%s0 + $0xb8] sm:$0xff]
  %v69 = vld [vmem:[%s0 + $0xc0] sm:$0xff]
  %v70 = vld [vmem:[%s0 + $0xc8] sm:$0xff]
  %v71 = vld [vmem:[%s0 + $0xd0] sm:$0xff]
  %v72 = vld [vmem:[%s0 + $0xd8] sm:$0xff]
  %v73 = vld [vmem:[%s0 + $0xe0] sm:$0xff]
  %v74 = vld [vmem:[%s0 + $0xe8] sm:$0xff]
  %v75 = vld [vmem:[%s0 + $0xf0] sm:$0xff]
  %v76 = vld [vmem:[%s0 + $0xf8] sm:$0xff]
  %v77 = vld [vmem:[%s0 + $0x100] sm:$0xff]
  %v78 = vld [vmem:[%s0 + $0x108] sm:$0xff]
  %v79 = vld [vmem:[%s0 + $0x110] sm:$0xff]
  %v80 = vld [vmem:[%s0 + $0x118] sm:$0xff]
  %v81 = vld [vmem:[%s0 + $0x120] sm:$0xff]
  %v82 = vld [vmem:[%s0 + $0x128] sm:$0xff]
  %v83 = vld [vmem:[%s0 + $0x130] sm:$0xff]
  %v84 = vld [vmem:[%s0 + $0x138] sm:$0xff]
  %v85 = vld [vmem:[%s0 + $0x140] sm:$0xff]
  %v86 = vld [vmem:[%s0 + $0x148] sm:$0xff]
  %v87 = vld [vmem:[%s0 + $0x150] sm:$0xff]
  %v88 = vld [vmem:[%s0 + $0x158] sm:$0xff]
  %v89 = vld [vmem:[%s0 + $0x160] sm:$0xff]
  %v90 = vld [vmem:[%s0 + $0x168] sm:$0xff]
  %v91 = vld [vmem:[%s0 + $0x170] sm:$0xff]
  %v92 = vld [vmem:[%s0 + $0x178] sm:$0xff]
  %v93 = vld [vmem:[%s0 + $0x180] sm:$0xff]
  %v94 = vld [vmem:[%s0 + $0x188] sm:$0xff]
  %v95 = vld [vmem:[%s0 + $0x190] sm:$0xff]
  %v96 = vld [vmem:[%s0 + $0x198] sm:$0xff]
  %v97 = vld [vmem:[%s0 + $0x1a0] sm:$0xff]
  %v98 = vld [vmem:[%s0 + $0x1a8] sm:$0xff]
  %v99 = vld [vmem:[%s0 + $0x1b0] sm:$0xff]
  %v100 = vld [vmem:[%s0 + $0x1b8] sm:$0xff]
  %v101 = vld [vmem:[%s0 + $0x1c0] sm:$0xff]
  %v102 = vld [vmem:[%s0 + $0x1c8] sm:$0xff]
  %v103 = vld [vmem:[%s0 + $0x1d0] sm:$0xff]
  %v104 = vld [vmem:[%s0 + $0x1d8] sm:$0xff]
  %v105 = vld [vmem:[%s0 + $0x1e0] sm:$0xff]
  %v106 = vld [vmem:[%s0 + $0x1e8] sm:$0xff]
  %v107 = vld [vmem:[%s0 + $0x1f0] sm:$0xff]
  %v108 = vld [vmem:[%s0 + $0x1f8] sm:$0xff]
  %v109 = vld [vmem:[%s1] sm:$0xff]
  %v110 = vld [vmem:[%s2] sm:$0x1]
  %v112 = vlaneseq
  %v113 = vshrl.u32 %v112, 7
  %v114 = vsub.s32 0, %v113
  %v115 = vrot.slane %v110, %v114
  %vm117 = vcmask 64512
  %v119 = vsel %vm117, %v45, 0
  %v122 = vsel %vm117, %v46, 0
  %v125 = vsel %vm117, %v47, 0
  %v128 = vsel %vm117, %v48, 0
  %v131 = vsel %vm117, %v49, 0
  %v134 = vsel %vm117, %v50, 0
  %v137 = vsel %vm117, %v51, 0
  %v140 = vsel %vm117, %v52, 0
  %v143 = vsel %vm117, %v53, 0
  %v146 = vsel %vm117, %v54, 0
  %v149 = vsel %vm117, %v55, 0
  %v152 = vsel %vm117, %v56, 0
  %v155 = vsel %vm117, %v57, 0
  %v158 = vsel %vm117, %v58, 0
  %v161 = vsel %vm117, %v59, 0
  %v164 = vsel %vm117, %v60, 0
  %v167 = vsel %vm117, %v61, 0
  %v170 = vsel %vm117, %v62, 0
  %v173 = vsel %vm117, %v63, 0
  %v176 = vsel %vm117, %v64, 0
  %v179 = vsel %vm117, %v65, 0
  %v182 = vsel %vm117, %v66, 0
  %v185 = vsel %vm117, %v67, 0
  %v188 = vsel %vm117, %v68, 0
  %v191 = vsel %vm117, %v69, 0
  %v194 = vsel %vm117, %v70, 0
  %v197 = vsel %vm117, %v71, 0
  %v200 = vsel %vm117, %v72, 0
  %v203 = vsel %vm117, %v73, 0
  %v206 = vsel %vm117, %v74, 0
  %v209 = vsel %vm117, %v75, 0
  %v212 = vsel %vm117, %v76, 0
  %v215 = vsel %vm117, %v77, 0
  %v218 = vsel %vm117, %v78, 0
  %v221 = vsel %vm117, %v79, 0
  %v224 = vsel %vm117, %v80, 0
  %v227 = vsel %vm117, %v81, 0
  %v230 = vsel %vm117, %v82, 0
  %v233 = vsel %vm117, %v83, 0
  %v236 = vsel %vm117, %v84, 0
  %v239 = vsel %vm117, %v85, 0
  %v242 = vsel %vm117, %v86, 0
  %v245 = vsel %vm117, %v87, 0
  %v248 = vsel %vm117, %v88, 0
  %v251 = vsel %vm117, %v89, 0
  %v254 = vsel %vm117, %v90, 0
  %v257 = vsel %vm117, %v91, 0
  %v260 = vsel %vm117, %v92, 0
  %v263 = vsel %vm117, %v93, 0
  %v266 = vsel %vm117, %v94, 0
  %v269 = vsel %vm117, %v95, 0
  %v272 = vsel %vm117, %v96, 0
  %v275 = vsel %vm117, %v97, 0
  %v278 = vsel %vm117, %v98, 0
  %v281 = vsel %vm117, %v99, 0
  %v284 = vsel %vm117, %v100, 0
  %v287 = vsel %vm117, %v101, 0
  %v290 = vsel %vm117, %v102, 0
  %v293 = vsel %vm117, %v103, 0
  %v296 = vsel %vm117, %v104, 0
  %v299 = vsel %vm117, %v105, 0
  %v302 = vsel %vm117, %v106, 0
  %v305 = vsel %vm117, %v107, 0
  %v308 = vsel %vm117, %v108, 0
  %310 = vmatprep.subr.mxu0 0.0
  %311 = vmatpush1.msra.mxu0 0.0
  %312 = vmatprep.subr.mxu0 0.0
  %313 = vmatpush1.msra.mxu0 0.0
  %314 = vmatprep.subr.mxu0 0.0
  %315 = vmatpush1.msra.mxu0 0.0
  %316 = vmatprep.subr.mxu0 0.0
  %317 = vmatpush1.msra.mxu0 0.0
  %318 = vmatprep.subr.mxu0 0.0
  %319 = vmatpush1.msra.mxu0 0.0
  %320 = vmatprep.subr.mxu0 0.0
  %321 = vmatpush1.msra.mxu0 0.0
  %322 = vmatprep.subr.mxu0 0.0
  %323 = vmatpush1.msra.mxu0 0.0
  %324 = vmatprep.subr.mxu0 0.0
  %325 = vmatpush1.msra.mxu0 0.0
  %326 = vmatprep.subr.mxu0 0.0
  %327 = vmatpush1.msra.mxu0 0.0
  %328 = vmatprep.subr.mxu0 0.0
  %329 = vmatpush1.msra.mxu0 0.0
  %330 = vmatprep.subr.mxu0 0.0
  %331 = vmatpush1.msra.mxu0 0.0
  %332 = vmatprep.subr.mxu0 0.0
  %333 = vmatpush1.msra.mxu0 0.0
  %334 = vmatprep.subr.mxu0 0.0
  %335 = vmatpush1.msra.mxu0 0.0
  %336 = vmatprep.subr.mxu0 0.0
  %337 = vmatpush1.msra.mxu0 0.0
  %338 = vmatprep.subr.mxu0 0.0
  %339 = vmatpush1.msra.mxu0 0.0
  %340 = vmatprep.subr.mxu0 0.0
  %341 = vmatpush1.msra.mxu0 %v109
  %342 = vmatprep.subr.mxu0 0.0
  %343 = vmatpush2.msra.mxu0 0.0
  %344 = vmatprep.subr.mxu0 0.0
  %345 = vmatpush2.msra.mxu0 0.0
  %346 = vmatprep.subr.mxu0 0.0
  %347 = vmatpush2.msra.mxu0 0.0
  %348 = vmatprep.subr.mxu0 0.0
  %349 = vmatpush2.msra.mxu0 0.0
  %350 = vmatprep.subr.mxu0 0.0
  %351 = vmatpush2.msra.mxu0 0.0
  %352 = vmatprep.subr.mxu0 0.0
  %353 = vmatpush2.msra.mxu0 0.0
  %354 = vmatprep.subr.mxu0 0.0
  %355 = vmatpush2.msra.mxu0 0.0
  %356 = vmatprep.subr.mxu0 0.0
  %357 = vmatpush2.msra.mxu0 0.0
  %358 = vmatprep.subr.mxu0 0.0
  %359 = vmatpush2.msra.mxu0 0.0
  %360 = vmatprep.subr.mxu0 0.0
  %361 = vmatpush2.msra.mxu0 0.0
  %362 = vmatprep.subr.mxu0 0.0
  %363 = vmatpush2.msra.mxu0 0.0
  %364 = vmatprep.subr.mxu0 0.0
  %365 = vmatpush2.msra.mxu0 0.0
  %366 = vmatprep.subr.mxu0 0.0
  %367 = vmatpush2.msra.mxu0 0.0
  %368 = vmatprep.subr.mxu0 0.0
  %369 = vmatpush2.msra.mxu0 0.0
  %370 = vmatprep.subr.mxu0 0.0
  %371 = vmatpush2.msra.mxu0 0.0
  %372 = vmatprep.subr.mxu0 0.0
  %373 = vmatpush2.msra.mxu0 0.0
  %374 = vmatprep.mubr.f32.mxu0 0.0
  %375 = vmatmul.mubr.f32.gmra.mxu0 %v119
  %v376 = vpop.f32.mrf.mxu0
  %v377 = vadd.f32 %v115, %v376
  %v378 = vpop.f32.mrf.mxu0
  %379 = vmatprep.mubr.f32.mxu0 0.0
  %380 = vmatmul.mubr.f32.gmra.mxu0 %v122
  %v381 = vpop.f32.mrf.mxu0
  %v382 = vadd.f32 %v115, %v381
  %v383 = vpop.f32.mrf.mxu0
  %384 = vmatprep.mubr.f32.mxu0 0.0
  %385 = vmatmul.mubr.f32.gmra.mxu0 %v125
  %v386 = vpop.f32.mrf.mxu0
  %v387 = vadd.f32 %v115, %v386
  %v388 = vpop.f32.mrf.mxu0
  %389 = vmatprep.mubr.f32.mxu0 0.0
  %390 = vmatmul.mubr.f32.gmra.mxu0 %v128
  %v391 = vpop.f32.mrf.mxu0
  %v392 = vadd.f32 %v115, %v391
  %v393 = vpop.f32.mrf.mxu0
  %394 = vmatprep.mubr.f32.mxu0 0.0
  %395 = vmatmul.mubr.f32.gmra.mxu0 %v131
  %v396 = vpop.f32.mrf.mxu0
  %v397 = vadd.f32 %v115, %v396
  %v398 = vpop.f32.mrf.mxu0
  %399 = vmatprep.mubr.f32.mxu0 0.0
  %400 = vmatmul.mubr.f32.gmra.mxu0 %v134
  %v401 = vpop.f32.mrf.mxu0
  %v402 = vadd.f32 %v115, %v401
  %v403 = vpop.f32.mrf.mxu0
  %404 = vmatprep.mubr.f32.mxu0 0.0
  %405 = vmatmul.mubr.f32.gmra.mxu0 %v137
  %v406 = vpop.f32.mrf.mxu0
  %v407 = vadd.f32 %v115, %v406
  %v408 = vpop.f32.mrf.mxu0
  %409 = vmatprep.mubr.f32.mxu0 0.0
  %410 = vmatmul.mubr.f32.gmra.mxu0 %v140
  %v411 = vpop.f32.mrf.mxu0
  %v412 = vadd.f32 %v115, %v411
  %v413 = vpop.f32.mrf.mxu0
  %414 = vmatprep.mubr.f32.mxu0 0.0
  %415 = vmatmul.mubr.f32.gmra.mxu0 %v143
  %v416 = vpop.f32.mrf.mxu0
  %v417 = vadd.f32 %v115, %v416
  %v418 = vpop.f32.mrf.mxu0
  %419 = vmatprep.mubr.f32.mxu0 0.0
  %420 = vmatmul.mubr.f32.gmra.mxu0 %v146
  %v421 = vpop.f32.mrf.mxu0
  %v422 = vadd.f32 %v115, %v421
  %v423 = vpop.f32.mrf.mxu0
  %424 = vmatprep.mubr.f32.mxu0 0.0
  %425 = vmatmul.mubr.f32.gmra.mxu0 %v149
  %v426 = vpop.f32.mrf.mxu0
  %v427 = vadd.f32 %v115, %v426
  %v428 = vpop.f32.mrf.mxu0
  %429 = vmatprep.mubr.f32.mxu0 0.0
  %430 = vmatmul.mubr.f32.gmra.mxu0 %v152
  %v431 = vpop.f32.mrf.mxu0
  %v432 = vadd.f32 %v115, %v431
  %v433 = vpop.f32.mrf.mxu0
  %434 = vmatprep.mubr.f32.mxu0 0.0
  %435 = vmatmul.mubr.f32.gmra.mxu0 %v155
  %v436 = vpop.f32.mrf.mxu0
  %v437 = vadd.f32 %v115, %v436
  %v438 = vpop.f32.mrf.mxu0
  %439 = vmatprep.mubr.f32.mxu0 0.0
  %440 = vmatmul.mubr.f32.gmra.mxu0 %v158
  %v441 = vpop.f32.mrf.mxu0
  %v442 = vadd.f32 %v115, %v441
  %v443 = vpop.f32.mrf.mxu0
  %444 = vmatprep.mubr.f32.mxu0 0.0
  %445 = vmatmul.mubr.f32.gmra.mxu0 %v161
  %v446 = vpop.f32.mrf.mxu0
  %v447 = vadd.f32 %v115, %v446
  %v448 = vpop.f32.mrf.mxu0
  %449 = vmatprep.mubr.f32.mxu0 0.0
  %450 = vmatmul.mubr.f32.gmra.mxu0 %v164
  %v451 = vpop.f32.mrf.mxu0
  %v452 = vadd.f32 %v115, %v451
  %v453 = vpop.f32.mrf.mxu0
  %454 = vmatprep.mubr.f32.mxu0 0.0
  %455 = vmatmul.mubr.f32.gmra.mxu0 %v167
  %v456 = vpop.f32.mrf.mxu0
  %v457 = vadd.f32 %v115, %v456
  %v458 = vpop.f32.mrf.mxu0
  %459 = vmatprep.mubr.f32.mxu0 0.0
  %460 = vmatmul.mubr.f32.gmra.mxu0 %v170
  %v461 = vpop.f32.mrf.mxu0
  %v462 = vadd.f32 %v115, %v461
  %v463 = vpop.f32.mrf.mxu0
  %464 = vmatprep.mubr.f32.mxu0 0.0
  %465 = vmatmul.mubr.f32.gmra.mxu0 %v173
  %v466 = vpop.f32.mrf.mxu0
  %v467 = vadd.f32 %v115, %v466
  %v468 = vpop.f32.mrf.mxu0
  %469 = vmatprep.mubr.f32.mxu0 0.0
  %470 = vmatmul.mubr.f32.gmra.mxu0 %v176
  %v471 = vpop.f32.mrf.mxu0
  %v472 = vadd.f32 %v115, %v471
  %v473 = vpop.f32.mrf.mxu0
  %474 = vmatprep.mubr.f32.mxu0 0.0
  %475 = vmatmul.mubr.f32.gmra.mxu0 %v179
  %v476 = vpop.f32.mrf.mxu0
  %v477 = vadd.f32 %v115, %v476
  %v478 = vpop.f32.mrf.mxu0
  %479 = vmatprep.mubr.f32.mxu0 0.0
  %480 = vmatmul.mubr.f32.gmra.mxu0 %v182
  %v481 = vpop.f32.mrf.mxu0
  %v482 = vadd.f32 %v115, %v481
  %v483 = vpop.f32.mrf.mxu0
  %484 = vmatprep.mubr.f32.mxu0 0.0
  %485 = vmatmul.mubr.f32.gmra.mxu0 %v185
  %v486 = vpop.f32.mrf.mxu0
  %v487 = vadd.f32 %v115, %v486
  %v488 = vpop.f32.mrf.mxu0
  %489 = vmatprep.mubr.f32.mxu0 0.0
  %490 = vmatmul.mubr.f32.gmra.mxu0 %v188
  %v491 = vpop.f32.mrf.mxu0
  %v492 = vadd.f32 %v115, %v491
  %v493 = vpop.f32.mrf.mxu0
  %494 = vmatprep.mubr.f32.mxu0 0.0
  %495 = vmatmul.mubr.f32.gmra.mxu0 %v191
  %v496 = vpop.f32.mrf.mxu0
  %v497 = vadd.f32 %v115, %v496
  %v498 = vpop.f32.mrf.mxu0
  %499 = vmatprep.mubr.f32.mxu0 0.0
  %500 = vmatmul.mubr.f32.gmra.mxu0 %v194
  %v501 = vpop.f32.mrf.mxu0
  %v502 = vadd.f32 %v115, %v501
  %v503 = vpop.f32.mrf.mxu0
  %504 = vmatprep.mubr.f32.mxu0 0.0
  %505 = vmatmul.mubr.f32.gmra.mxu0 %v197
  %v506 = vpop.f32.mrf.mxu0
  %v507 = vadd.f32 %v115, %v506
  %v508 = vpop.f32.mrf.mxu0
  %509 = vmatprep.mubr.f32.mxu0 0.0
  %510 = vmatmul.mubr.f32.gmra.mxu0 %v200
  %v511 = vpop.f32.mrf.mxu0
  %v512 = vadd.f32 %v115, %v511
  %v513 = vpop.f32.mrf.mxu0
  %514 = vmatprep.mubr.f32.mxu0 0.0
  %515 = vmatmul.mubr.f32.gmra.mxu0 %v203
  %v516 = vpop.f32.mrf.mxu0
  %v517 = vadd.f32 %v115, %v516
  %v518 = vpop.f32.mrf.mxu0
  %519 = vmatprep.mubr.f32.mxu0 0.0
  %520 = vmatmul.mubr.f32.gmra.mxu0 %v206
  %v521 = vpop.f32.mrf.mxu0
  %v522 = vadd.f32 %v115, %v521
  %v523 = vpop.f32.mrf.mxu0
  %524 = vmatprep.mubr.f32.mxu0 0.0
  %525 = vmatmul.mubr.f32.gmra.mxu0 %v209
  %v526 = vpop.f32.mrf.mxu0
  %v527 = vadd.f32 %v115, %v526
  %v528 = vpop.f32.mrf.mxu0
  %529 = vmatprep.mubr.f32.mxu0 0.0
  %530 = vmatmul.mubr.f32.gmra.mxu0 %v212
  %v531 = vpop.f32.mrf.mxu0
  %v532 = vadd.f32 %v115, %v531
  %v533 = vpop.f32.mrf.mxu0
  %534 = vmatprep.mubr.f32.mxu0 0.0
  %535 = vmatmul.mubr.f32.gmra.mxu0 %v215
  %v536 = vpop.f32.mrf.mxu0
  %v537 = vadd.f32 %v115, %v536
  %v538 = vpop.f32.mrf.mxu0
  %539 = vmatprep.mubr.f32.mxu0 0.0
  %540 = vmatmul.mubr.f32.gmra.mxu0 %v218
  %v541 = vpop.f32.mrf.mxu0
  %v542 = vadd.f32 %v115, %v541
  %v543 = vpop.f32.mrf.mxu0
  %544 = vmatprep.mubr.f32.mxu0 0.0
  %545 = vmatmul.mubr.f32.gmra.mxu0 %v221
  %v546 = vpop.f32.mrf.mxu0
  %v547 = vadd.f32 %v115, %v546
  %v548 = vpop.f32.mrf.mxu0
  %549 = vmatprep.mubr.f32.mxu0 0.0
  %550 = vmatmul.mubr.f32.gmra.mxu0 %v224
  %v551 = vpop.f32.mrf.mxu0
  %v552 = vadd.f32 %v115, %v551
  %v553 = vpop.f32.mrf.mxu0
  %554 = vmatprep.mubr.f32.mxu0 0.0
  %555 = vmatmul.mubr.f32.gmra.mxu0 %v227
  %v556 = vpop.f32.mrf.mxu0
  %v557 = vadd.f32 %v115, %v556
  %v558 = vpop.f32.mrf.mxu0
  %559 = vmatprep.mubr.f32.mxu0 0.0
  %560 = vmatmul.mubr.f32.gmra.mxu0 %v230
  %v561 = vpop.f32.mrf.mxu0
  %v562 = vadd.f32 %v115, %v561
  %v563 = vpop.f32.mrf.mxu0
  %564 = vmatprep.mubr.f32.mxu0 0.0
  %565 = vmatmul.mubr.f32.gmra.mxu0 %v233
  %v566 = vpop.f32.mrf.mxu0
  %v567 = vadd.f32 %v115, %v566
  %v568 = vpop.f32.mrf.mxu0
  %569 = vmatprep.mubr.f32.mxu0 0.0
  %570 = vmatmul.mubr.f32.gmra.mxu0 %v236
  %v571 = vpop.f32.mrf.mxu0
  %v572 = vadd.f32 %v115, %v571
  %v573 = vpop.f32.mrf.mxu0
  %574 = vmatprep.mubr.f32.mxu0 0.0
  %575 = vmatmul.mubr.f32.gmra.mxu0 %v239
  %v576 = vpop.f32.mrf.mxu0
  %v577 = vadd.f32 %v115, %v576
  %v578 = vpop.f32.mrf.mxu0
  %579 = vmatprep.mubr.f32.mxu0 0.0
  %580 = vmatmul.mubr.f32.gmra.mxu0 %v242
  %v581 = vpop.f32.mrf.mxu0
  %v582 = vadd.f32 %v115, %v581
  %v583 = vpop.f32.mrf.mxu0
  %584 = vmatprep.mubr.f32.mxu0 0.0
  %585 = vmatmul.mubr.f32.gmra.mxu0 %v245
  %v586 = vpop.f32.mrf.mxu0
  %v587 = vadd.f32 %v115, %v586
  %v588 = vpop.f32.mrf.mxu0
  %589 = vmatprep.mubr.f32.mxu0 0.0
  %590 = vmatmul.mubr.f32.gmra.mxu0 %v248
  %v591 = vpop.f32.mrf.mxu0
  %v592 = vadd.f32 %v115, %v591
  %v593 = vpop.f32.mrf.mxu0
  %594 = vmatprep.mubr.f32.mxu0 0.0
  %595 = vmatmul.mubr.f32.gmra.mxu0 %v251
  %v596 = vpop.f32.mrf.mxu0
  %v597 = vadd.f32 %v115, %v596
  %v598 = vpop.f32.mrf.mxu0
  %599 = vmatprep.mubr.f32.mxu0 0.0
  %600 = vmatmul.mubr.f32.gmra.mxu0 %v254
  %v601 = vpop.f32.mrf.mxu0
  %v602 = vadd.f32 %v115, %v601
  %v603 = vpop.f32.mrf.mxu0
  %604 = vmatprep.mubr.f32.mxu0 0.0
  %605 = vmatmul.mubr.f32.gmra.mxu0 %v257
  %v606 = vpop.f32.mrf.mxu0
  %v607 = vadd.f32 %v115, %v606
  %v608 = vpop.f32.mrf.mxu0
  %609 = vmatprep.mubr.f32.mxu0 0.0
  %610 = vmatmul.mubr.f32.gmra.mxu0 %v260
  %v611 = vpop.f32.mrf.mxu0
  %v612 = vadd.f32 %v115, %v611
  %v613 = vpop.f32.mrf.mxu0
  %614 = vmatprep.mubr.f32.mxu0 0.0
  %615 = vmatmul.mubr.f32.gmra.mxu0 %v263
  %v616 = vpop.f32.mrf.mxu0
  %v617 = vadd.f32 %v115, %v616
  %v618 = vpop.f32.mrf.mxu0
  %619 = vmatprep.mubr.f32.mxu0 0.0
  %620 = vmatmul.mubr.f32.gmra.mxu0 %v266
  %v621 = vpop.f32.mrf.mxu0
  %v622 = vadd.f32 %v115, %v621
  %v623 = vpop.f32.mrf.mxu0
  %624 = vmatprep.mubr.f32.mxu0 0.0
  %625 = vmatmul.mubr.f32.gmra.mxu0 %v269
  %v626 = vpop.f32.mrf.mxu0
  %v627 = vadd.f32 %v115, %v626
  %v628 = vpop.f32.mrf.mxu0
  %629 = vmatprep.mubr.f32.mxu0 0.0
  %630 = vmatmul.mubr.f32.gmra.mxu0 %v272
  %v631 = vpop.f32.mrf.mxu0
  %v632 = vadd.f32 %v115, %v631
  %v633 = vpop.f32.mrf.mxu0
  %634 = vmatprep.mubr.f32.mxu0 0.0
  %635 = vmatmul.mubr.f32.gmra.mxu0 %v275
  %v636 = vpop.f32.mrf.mxu0
  %v637 = vadd.f32 %v115, %v636
  %v638 = vpop.f32.mrf.mxu0
  %639 = vmatprep.mubr.f32.mxu0 0.0
  %640 = vmatmul.mubr.f32.gmra.mxu0 %v278
  %v641 = vpop.f32.mrf.mxu0
  %v642 = vadd.f32 %v115, %v641
  %v643 = vpop.f32.mrf.mxu0
  %644 = vmatprep.mubr.f32.mxu0 0.0
  %645 = vmatmul.mubr.f32.gmra.mxu0 %v281
  %v646 = vpop.f32.mrf.mxu0
  %v647 = vadd.f32 %v115, %v646
  %v648 = vpop.f32.mrf.mxu0
  %649 = vmatprep.mubr.f32.mxu0 0.0
  %650 = vmatmul.mubr.f32.gmra.mxu0 %v284
  %v651 = vpop.f32.mrf.mxu0
  %v652 = vadd.f32 %v115, %v651
  %v653 = vpop.f32.mrf.mxu0
  %654 = vmatprep.mubr.f32.mxu0 0.0
  %655 = vmatmul.mubr.f32.gmra.mxu0 %v287
  %v656 = vpop.f32.mrf.mxu0
  %v657 = vadd.f32 %v115, %v656
  %v658 = vpop.f32.mrf.mxu0
  %659 = vmatprep.mubr.f32.mxu0 0.0
  %660 = vmatmul.mubr.f32.gmra.mxu0 %v290
  %v661 = vpop.f32.mrf.mxu0
  %v662 = vadd.f32 %v115, %v661
  %v663 = vpop.f32.mrf.mxu0
  %664 = vmatprep.mubr.f32.mxu0 0.0
  %665 = vmatmul.mubr.f32.gmra.mxu0 %v293
  %v666 = vpop.f32.mrf.mxu0
  %v667 = vadd.f32 %v115, %v666
  %v668 = vpop.f32.mrf.mxu0
  %669 = vmatprep.mubr.f32.mxu0 0.0
  %670 = vmatmul.mubr.f32.gmra.mxu0 %v296
  %v671 = vpop.f32.mrf.mxu0
  %v672 = vadd.f32 %v115, %v671
  %v673 = vpop.f32.mrf.mxu0
  %674 = vmatprep.mubr.f32.mxu0 0.0
  %675 = vmatmul.mubr.f32.gmra.mxu0 %v299
  %v676 = vpop.f32.mrf.mxu0
  %v677 = vadd.f32 %v115, %v676
  %v678 = vpop.f32.mrf.mxu0
  %679 = vmatprep.mubr.f32.mxu0 0.0
  %680 = vmatmul.mubr.f32.gmra.mxu0 %v302
  %v681 = vpop.f32.mrf.mxu0
  %v682 = vadd.f32 %v115, %v681
  %v683 = vpop.f32.mrf.mxu0
  %684 = vmatprep.mubr.f32.mxu0 0.0
  %685 = vmatmul.mubr.f32.gmra.mxu0 %v305
  %v686 = vpop.f32.mrf.mxu0
  %v687 = vadd.f32 %v115, %v686
  %v688 = vpop.f32.mrf.mxu0
  %689 = vmatprep.mubr.f32.mxu0 0.0
  %690 = vmatmul.mubr.f32.gmra.mxu0 %v308
  %v691 = vpop.f32.mrf.mxu0
  %v692 = vadd.f32 %v115, %v691
  %v693 = vpop.f32.mrf.mxu0
  %694 = vdwg.mxu0
  %v695 = vlaneseq
  %v696 = vshrl.u32 %v695, 7
  %v697 = vadd.s32 %v696, 8
  %v698 = vadd.s32 %v696, 16
  %v699 = vadd.s32 %v696, 24
  %v700 = vadd.s32 %v696, 32
  %v701 = vadd.s32 %v696, 40
  %v702 = vadd.s32 %v696, 48
  %v703 = vadd.s32 %v696, 56
  %v704 = vadd.s32 %v696, 64
  %v705 = vadd.s32 %v696, 72
  %v706 = vadd.s32 %v696, 80
  %v707 = vadd.s32 %v696, 88
  %v708 = vadd.s32 %v696, 96
  %v709 = vadd.s32 %v696, 104
  %v710 = vadd.s32 %v696, 112
  %v711 = vadd.s32 %v696, 120
  %v712 = vadd.s32 %v696, 128
  %v713 = vadd.s32 %v696, 136
  %v714 = vadd.s32 %v696, 144
  %v715 = vadd.s32 %v696, 152
  %v716 = vadd.s32 %v696, 160
  %v717 = vadd.s32 %v696, 168
  %v718 = vadd.s32 %v696, 176
  %v719 = vadd.s32 %v696, 184
  %v720 = vadd.s32 %v696, 192
  %v721 = vadd.s32 %v696, 200
  %v722 = vadd.s32 %v696, 208
  %v723 = vadd.s32 %v696, 216
  %v724 = vadd.s32 %v696, 224
  %v725 = vadd.s32 %v696, 232
  %v726 = vadd.s32 %v696, 240
  %v727 = vadd.s32 %v696, 248
  %v728 = vadd.s32 %v696, 256
  %v729 = vadd.s32 %v696, 264
  %v730 = vadd.s32 %v696, 272
  %v731 = vadd.s32 %v696, 280
  %v732 = vadd.s32 %v696, 288
  %v733 = vadd.s32 %v696, 296
  %v734 = vadd.s32 %v696, 304
  %v735 = vadd.s32 %v696, 312
  %v736 = vadd.s32 %v696, 320
  %v737 = vadd.s32 %v696, 328
  %v738 = vadd.s32 %v696, 336
  %v739 = vadd.s32 %v696, 344
  %v740 = vadd.s32 %v696, 352
  %v741 = vadd.s32 %v696, 360
  %v742 = vadd.s32 %v696, 368
  %v743 = vadd.s32 %v696, 376
  %v744 = vadd.s32 %v696, 384
  %v745 = vadd.s32 %v696, 392
  %v746 = vadd.s32 %v696, 400
  %v747 = vadd.s32 %v696, 408
  %v748 = vadd.s32 %v696, 416
  %v749 = vadd.s32 %v696, 424
  %v750 = vadd.s32 %v696, 432
  %v751 = vadd.s32 %v696, 440
  %v752 = vadd.s32 %v696, 448
  %v753 = vadd.s32 %v696, 456
  %v754 = vadd.s32 %v696, 464
  %v755 = vadd.s32 %v696, 472
  %v756 = vadd.s32 %v696, 480
  %v757 = vadd.s32 %v696, 488
  %v758 = vadd.s32 %v696, 496
  %v759 = vadd.s32 %v696, 504
  %v760 = vand.u32 %v696, 63
  %v761 = vand.u32 %v697, 63
  %v762 = vand.u32 %v698, 63
  %v763 = vand.u32 %v699, 63
  %v764 = vand.u32 %v700, 63
  %v765 = vand.u32 %v701, 63
  %v766 = vand.u32 %v702, 63
  %v767 = vand.u32 %v703, 63
  %v768 = vand.u32 %v704, 63
  %v769 = vand.u32 %v705, 63
  %v770 = vand.u32 %v706, 63
  %v771 = vand.u32 %v707, 63
  %v772 = vand.u32 %v708, 63
  %v773 = vand.u32 %v709, 63
  %v774 = vand.u32 %v710, 63
  %v775 = vand.u32 %v711, 63
  %v776 = vand.u32 %v712, 63
  %v777 = vand.u32 %v713, 63
  %v778 = vand.u32 %v714, 63
  %v779 = vand.u32 %v715, 63
  %v780 = vand.u32 %v716, 63
  %v781 = vand.u32 %v717, 63
  %v782 = vand.u32 %v718, 63
  %v783 = vand.u32 %v719, 63
  %v784 = vand.u32 %v720, 63
  %v785 = vand.u32 %v721, 63
  %v786 = vand.u32 %v722, 63
  %v787 = vand.u32 %v723, 63
  %v788 = vand.u32 %v724, 63
  %v789 = vand.u32 %v725, 63
  %v790 = vand.u32 %v726, 63
  %v791 = vand.u32 %v727, 63
  %v792 = vand.u32 %v728, 63
  %v793 = vand.u32 %v729, 63
  %v794 = vand.u32 %v730, 63
  %v795 = vand.u32 %v731, 63
  %v796 = vand.u32 %v732, 63
  %v797 = vand.u32 %v733, 63
  %v798 = vand.u32 %v734, 63
  %v799 = vand.u32 %v735, 63
  %v800 = vand.u32 %v736, 63
  %v801 = vand.u32 %v737, 63
  %v802 = vand.u32 %v738, 63
  %v803 = vand.u32 %v739, 63
  %v804 = vand.u32 %v740, 63
  %v805 = vand.u32 %v741, 63
  %v806 = vand.u32 %v742, 63
  %v807 = vand.u32 %v743, 63
  %v808 = vand.u32 %v744, 63
  %v809 = vand.u32 %v745, 63
  %v810 = vand.u32 %v746, 63
  %v811 = vand.u32 %v747, 63
  %v812 = vand.u32 %v748, 63
  %v813 = vand.u32 %v749, 63
  %v814 = vand.u32 %v750, 63
  %v815 = vand.u32 %v751, 63
  %v816 = vand.u32 %v752, 63
  %v817 = vand.u32 %v753, 63
  %v818 = vand.u32 %v754, 63
  %v819 = vand.u32 %v755, 63
  %v820 = vand.u32 %v756, 63
  %v821 = vand.u32 %v757, 63
  %v822 = vand.u32 %v758, 63
  %v823 = vand.u32 %v759, 63
  %vm824 = vcmp.ge.s32.totalorder %v760, 1
  %vm825 = vcmp.ge.s32.totalorder %v761, 1
  %vm826 = vcmp.ge.s32.totalorder %v762, 1
  %vm827 = vcmp.ge.s32.totalorder %v763, 1
  %vm828 = vcmp.ge.s32.totalorder %v764, 1
  %vm829 = vcmp.ge.s32.totalorder %v765, 1
  %vm830 = vcmp.ge.s32.totalorder %v766, 1
  %vm831 = vcmp.ge.s32.totalorder %v767, 1
  %vm832 = vcmp.ge.s32.totalorder %v768, 1
  %vm833 = vcmp.ge.s32.totalorder %v769, 1
  %vm834 = vcmp.ge.s32.totalorder %v770, 1
  %vm835 = vcmp.ge.s32.totalorder %v771, 1
  %vm836 = vcmp.ge.s32.totalorder %v772, 1
  %vm837 = vcmp.ge.s32.totalorder %v773, 1
  %vm838 = vcmp.ge.s32.totalorder %v774, 1
  %vm839 = vcmp.ge.s32.totalorder %v775, 1
  %vm840 = vcmp.ge.s32.totalorder %v776, 1
  %vm841 = vcmp.ge.s32.totalorder %v777, 1
  %vm842 = vcmp.ge.s32.totalorder %v778, 1
  %vm843 = vcmp.ge.s32.totalorder %v779, 1
  %vm844 = vcmp.ge.s32.totalorder %v780, 1
  %vm845 = vcmp.ge.s32.totalorder %v781, 1
  %vm846 = vcmp.ge.s32.totalorder %v782, 1
  %vm847 = vcmp.ge.s32.totalorder %v783, 1
  %vm848 = vcmp.ge.s32.totalorder %v784, 1
  %vm849 = vcmp.ge.s32.totalorder %v785, 1
  %vm850 = vcmp.ge.s32.totalorder %v786, 1
  %vm851 = vcmp.ge.s32.totalorder %v787, 1
  %vm852 = vcmp.ge.s32.totalorder %v788, 1
  %vm853 = vcmp.ge.s32.totalorder %v789, 1
  %vm854 = vcmp.ge.s32.totalorder %v790, 1
  %vm855 = vcmp.ge.s32.totalorder %v791, 1
  %vm856 = vcmp.ge.s32.totalorder %v792, 1
  %vm857 = vcmp.ge.s32.totalorder %v793, 1
  %vm858 = vcmp.ge.s32.totalorder %v794, 1
  %vm859 = vcmp.ge.s32.totalorder %v795, 1
  %vm860 = vcmp.ge.s32.totalorder %v796, 1
  %vm861 = vcmp.ge.s32.totalorder %v797, 1
  %vm862 = vcmp.ge.s32.totalorder %v798, 1
  %vm863 = vcmp.ge.s32.totalorder %v799, 1
  %vm864 = vcmp.ge.s32.totalorder %v800, 1
  %vm865 = vcmp.ge.s32.totalorder %v801, 1
  %vm866 = vcmp.ge.s32.totalorder %v802, 1
  %vm867 = vcmp.ge.s32.totalorder %v803, 1
  %vm868 = vcmp.ge.s32.totalorder %v804, 1
  %vm869 = vcmp.ge.s32.totalorder %v805, 1
  %vm870 = vcmp.ge.s32.totalorder %v806, 1
  %vm871 = vcmp.ge.s32.totalorder %v807, 1
  %vm872 = vcmp.ge.s32.totalorder %v808, 1
  %vm873 = vcmp.ge.s32.totalorder %v809, 1
  %vm874 = vcmp.ge.s32.totalorder %v810, 1
  %vm875 = vcmp.ge.s32.totalorder %v811, 1
  %vm876 = vcmp.ge.s32.totalorder %v812, 1
  %vm877 = vcmp.ge.s32.totalorder %v813, 1
  %vm878 = vcmp.ge.s32.totalorder %v814, 1
  %vm879 = vcmp.ge.s32.totalorder %v815, 1
  %vm880 = vcmp.ge.s32.totalorder %v816, 1
  %vm881 = vcmp.ge.s32.totalorder %v817, 1
  %vm882 = vcmp.ge.s32.totalorder %v818, 1
  %vm883 = vcmp.ge.s32.totalorder %v819, 1
  %vm884 = vcmp.ge.s32.totalorder %v820, 1
  %vm885 = vcmp.ge.s32.totalorder %v821, 1
  %vm886 = vcmp.ge.s32.totalorder %v822, 1
  %vm887 = vcmp.ge.s32.totalorder %v823, 1
  %vm888 = vcmp.le.s32.totalorder %v760, 50
  %vm889 = vcmp.le.s32.totalorder %v761, 50
  %vm890 = vcmp.le.s32.totalorder %v762, 50
  %vm891 = vcmp.le.s32.totalorder %v763, 50
  %vm892 = vcmp.le.s32.totalorder %v764, 50
  %vm893 = vcmp.le.s32.totalorder %v765, 50
  %vm894 = vcmp.le.s32.totalorder %v766, 50
  %vm895 = vcmp.le.s32.totalorder %v767, 50
  %vm896 = vcmp.le.s32.totalorder %v768, 50
  %vm897 = vcmp.le.s32.totalorder %v769, 50
  %vm898 = vcmp.le.s32.totalorder %v770, 50
  %vm899 = vcmp.le.s32.totalorder %v771, 50
  %vm900 = vcmp.le.s32.totalorder %v772, 50
  %vm901 = vcmp.le.s32.totalorder %v773, 50
  %vm902 = vcmp.le.s32.totalorder %v774, 50
  %vm903 = vcmp.le.s32.totalorder %v775, 50
  %vm904 = vcmp.le.s32.totalorder %v776, 50
  %vm905 = vcmp.le.s32.totalorder %v777, 50
  %vm906 = vcmp.le.s32.totalorder %v778, 50
  %vm907 = vcmp.le.s32.totalorder %v779, 50
  %vm908 = vcmp.le.s32.totalorder %v780, 50
  %vm909 = vcmp.le.s32.totalorder %v781, 50
  %vm910 = vcmp.le.s32.totalorder %v782, 50
  %vm911 = vcmp.le.s32.totalorder %v783, 50
  %vm912 = vcmp.le.s32.totalorder %v784, 50
  %vm913 = vcmp.le.s32.totalorder %v785, 50
  %vm914 = vcmp.le.s32.totalorder %v786, 50
  %vm915 = vcmp.le.s32.totalorder %v787, 50
  %vm916 = vcmp.le.s32.totalorder %v788, 50
  %vm917 = vcmp.le.s32.totalorder %v789, 50
  %vm918 = vcmp.le.s32.totalorder %v790, 50
  %vm919 = vcmp.le.s32.totalorder %v791, 50
  %vm920 = vcmp.le.s32.totalorder %v792, 50
  %vm921 = vcmp.le.s32.totalorder %v793, 50
  %vm922 = vcmp.le.s32.totalorder %v794, 50
  %vm923 = vcmp.le.s32.totalorder %v795, 50
  %vm924 = vcmp.le.s32.totalorder %v796, 50
  %vm925 = vcmp.le.s32.totalorder %v797, 50
  %vm926 = vcmp.le.s32.totalorder %v798, 50
  %vm927 = vcmp.le.s32.totalorder %v799, 50
  %vm928 = vcmp.le.s32.totalorder %v800, 50
  %vm929 = vcmp.le.s32.totalorder %v801, 50
  %vm930 = vcmp.le.s32.totalorder %v802, 50
  %vm931 = vcmp.le.s32.totalorder %v803, 50
  %vm932 = vcmp.le.s32.totalorder %v804, 50
  %vm933 = vcmp.le.s32.totalorder %v805, 50
  %vm934 = vcmp.le.s32.totalorder %v806, 50
  %vm935 = vcmp.le.s32.totalorder %v807, 50
  %vm936 = vcmp.le.s32.totalorder %v808, 50
  %vm937 = vcmp.le.s32.totalorder %v809, 50
  %vm938 = vcmp.le.s32.totalorder %v810, 50
  %vm939 = vcmp.le.s32.totalorder %v811, 50
  %vm940 = vcmp.le.s32.totalorder %v812, 50
  %vm941 = vcmp.le.s32.totalorder %v813, 50
  %vm942 = vcmp.le.s32.totalorder %v814, 50
  %vm943 = vcmp.le.s32.totalorder %v815, 50
  %vm944 = vcmp.le.s32.totalorder %v816, 50
  %vm945 = vcmp.le.s32.totalorder %v817, 50
  %vm946 = vcmp.le.s32.totalorder %v818, 50
  %vm947 = vcmp.le.s32.totalorder %v819, 50
  %vm948 = vcmp.le.s32.totalorder %v820, 50
  %vm949 = vcmp.le.s32.totalorder %v821, 50
  %vm950 = vcmp.le.s32.totalorder %v822, 50
  %vm951 = vcmp.le.s32.totalorder %v823, 50
  %vm952 = vmand %vm824, %vm888
  %vm953 = vmand %vm825, %vm889
  %vm954 = vmand %vm826, %vm890
  %vm955 = vmand %vm827, %vm891
  %vm956 = vmand %vm828, %vm892
  %vm957 = vmand %vm829, %vm893
  %vm958 = vmand %vm830, %vm894
  %vm959 = vmand %vm831, %vm895
  %vm960 = vmand %vm832, %vm896
  %vm961 = vmand %vm833, %vm897
  %vm962 = vmand %vm834, %vm898
  %vm963 = vmand %vm835, %vm899
  %vm964 = vmand %vm836, %vm900
  %vm965 = vmand %vm837, %vm901
  %vm966 = vmand %vm838, %vm902
  %vm967 = vmand %vm839, %vm903
  %vm968 = vmand %vm840, %vm904
  %vm969 = vmand %vm841, %vm905
  %vm970 = vmand %vm842, %vm906
  %vm971 = vmand %vm843, %vm907
  %vm972 = vmand %vm844, %vm908
  %vm973 = vmand %vm845, %vm909
  %vm974 = vmand %vm846, %vm910
  %vm975 = vmand %vm847, %vm911
  %vm976 = vmand %vm848, %vm912
  %vm977 = vmand %vm849, %vm913
  %vm978 = vmand %vm850, %vm914
  %vm979 = vmand %vm851, %vm915
  %vm980 = vmand %vm852, %vm916
  %vm981 = vmand %vm853, %vm917
  %vm982 = vmand %vm854, %vm918
  %vm983 = vmand %vm855, %vm919
  %vm984 = vmand %vm856, %vm920
  %vm985 = vmand %vm857, %vm921
  %vm986 = vmand %vm858, %vm922
  %vm987 = vmand %vm859, %vm923
  %vm988 = vmand %vm860, %vm924
  %vm989 = vmand %vm861, %vm925
  %vm990 = vmand %vm862, %vm926
  %vm991 = vmand %vm863, %vm927
  %vm992 = vmand %vm864, %vm928
  %vm993 = vmand %vm865, %vm929
  %vm994 = vmand %vm866, %vm930
  %vm995 = vmand %vm867, %vm931
  %vm996 = vmand %vm868, %vm932
  %vm997 = vmand %vm869, %vm933
  %vm998 = vmand %vm870, %vm934
  %vm999 = vmand %vm871, %vm935
  %vm1000 = vmand %vm872, %vm936
  %vm1001 = vmand %vm873, %vm937
  %vm1002 = vmand %vm874, %vm938
  %vm1003 = vmand %vm875, %vm939
  %vm1004 = vmand %vm876, %vm940
  %vm1005 = vmand %vm877, %vm941
  %vm1006 = vmand %vm878, %vm942
  %vm1007 = vmand %vm879, %vm943
  %vm1008 = vmand %vm880, %vm944
  %vm1009 = vmand %vm881, %vm945
  %vm1010 = vmand %vm882, %vm946
  %vm1011 = vmand %vm883, %vm947
  %vm1012 = vmand %vm884, %vm948
  %vm1013 = vmand %vm885, %vm949
  %vm1014 = vmand %vm886, %vm950
  %vm1015 = vmand %vm887, %vm951
  %v1016 = vmul.f32 %v377, 0.2
  %v1017 = vmul.f32 %v382, 0.2
  %v1018 = vmul.f32 %v387, 0.2
  %v1019 = vmul.f32 %v392, 0.2
  %v1020 = vmul.f32 %v397, 0.2
  %v1021 = vmul.f32 %v402, 0.2
  %v1022 = vmul.f32 %v407, 0.2
  %v1023 = vmul.f32 %v412, 0.2
  %v1024 = vmul.f32 %v417, 0.2
  %v1025 = vmul.f32 %v422, 0.2
  %v1026 = vmul.f32 %v427, 0.2
  %v1027 = vmul.f32 %v432, 0.2
  %v1028 = vmul.f32 %v437, 0.2
  %v1029 = vmul.f32 %v442, 0.2
  %v1030 = vmul.f32 %v447, 0.2
  %v1031 = vmul.f32 %v452, 0.2
  %v1032 = vmul.f32 %v457, 0.2
  %v1033 = vmul.f32 %v462, 0.2
  %v1034 = vmul.f32 %v467, 0.2
  %v1035 = vmul.f32 %v472, 0.2
  %v1036 = vmul.f32 %v477, 0.2
  %v1037 = vmul.f32 %v482, 0.2
  %v1038 = vmul.f32 %v487, 0.2
  %v1039 = vmul.f32 %v492, 0.2
  %v1040 = vmul.f32 %v497, 0.2
  %v1041 = vmul.f32 %v502, 0.2
  %v1042 = vmul.f32 %v507, 0.2
  %v1043 = vmul.f32 %v512, 0.2
  %v1044 = vmul.f32 %v517, 0.2
  %v1045 = vmul.f32 %v522, 0.2
  %v1046 = vmul.f32 %v527, 0.2
  %v1047 = vmul.f32 %v532, 0.2
  %v1048 = vmul.f32 %v537, 0.2
  %v1049 = vmul.f32 %v542, 0.2
  %v1050 = vmul.f32 %v547, 0.2
  %v1051 = vmul.f32 %v552, 0.2
  %v1052 = vmul.f32 %v557, 0.2
  %v1053 = vmul.f32 %v562, 0.2
  %v1054 = vmul.f32 %v567, 0.2
  %v1055 = vmul.f32 %v572, 0.2
  %v1056 = vmul.f32 %v577, 0.2
  %v1057 = vmul.f32 %v582, 0.2
  %v1058 = vmul.f32 %v587, 0.2
  %v1059 = vmul.f32 %v592, 0.2
  %v1060 = vmul.f32 %v597, 0.2
  %v1061 = vmul.f32 %v602, 0.2
  %v1062 = vmul.f32 %v607, 0.2
  %v1063 = vmul.f32 %v612, 0.2
  %v1064 = vmul.f32 %v617, 0.2
  %v1065 = vmul.f32 %v622, 0.2
  %v1066 = vmul.f32 %v627, 0.2
  %v1067 = vmul.f32 %v632, 0.2
  %v1068 = vmul.f32 %v637, 0.2
  %v1069 = vmul.f32 %v642, 0.2
  %v1070 = vmul.f32 %v647, 0.2
  %v1071 = vmul.f32 %v652, 0.2
  %v1072 = vmul.f32 %v657, 0.2
  %v1073 = vmul.f32 %v662, 0.2
  %v1074 = vmul.f32 %v667, 0.2
  %v1075 = vmul.f32 %v672, 0.2
  %v1076 = vmul.f32 %v677, 0.2
  %v1077 = vmul.f32 %v682, 0.2
  %v1078 = vmul.f32 %v687, 0.2
  %v1079 = vmul.f32 %v692, 0.2
  %v1080 = vmax.f32 %v377, %v1016
  %v1081 = vmax.f32 %v382, %v1017
  %v1082 = vmax.f32 %v387, %v1018
  %v1083 = vmax.f32 %v392, %v1019
  %v1084 = vmax.f32 %v397, %v1020
  %v1085 = vmax.f32 %v402, %v1021
  %v1086 = vmax.f32 %v407, %v1022
  %v1087 = vmax.f32 %v412, %v1023
  %v1088 = vmax.f32 %v417, %v1024
  %v1089 = vmax.f32 %v422, %v1025
  %v1090 = vmax.f32 %v427, %v1026
  %v1091 = vmax.f32 %v432, %v1027
  %v1092 = vmax.f32 %v437, %v1028
  %v1093 = vmax.f32 %v442, %v1029
  %v1094 = vmax.f32 %v447, %v1030
  %v1095 = vmax.f32 %v452, %v1031
  %v1096 = vmax.f32 %v457, %v1032
  %v1097 = vmax.f32 %v462, %v1033
  %v1098 = vmax.f32 %v467, %v1034
  %v1099 = vmax.f32 %v472, %v1035
  %v1100 = vmax.f32 %v477, %v1036
  %v1101 = vmax.f32 %v482, %v1037
  %v1102 = vmax.f32 %v487, %v1038
  %v1103 = vmax.f32 %v492, %v1039
  %v1104 = vmax.f32 %v497, %v1040
  %v1105 = vmax.f32 %v502, %v1041
  %v1106 = vmax.f32 %v507, %v1042
  %v1107 = vmax.f32 %v512, %v1043
  %v1108 = vmax.f32 %v517, %v1044
  %v1109 = vmax.f32 %v522, %v1045
  %v1110 = vmax.f32 %v527, %v1046
  %v1111 = vmax.f32 %v532, %v1047
  %v1112 = vmax.f32 %v537, %v1048
  %v1113 = vmax.f32 %v542, %v1049
  %v1114 = vmax.f32 %v547, %v1050
  %v1115 = vmax.f32 %v552, %v1051
  %v1116 = vmax.f32 %v557, %v1052
  %v1117 = vmax.f32 %v562, %v1053
  %v1118 = vmax.f32 %v567, %v1054
  %v1119 = vmax.f32 %v572, %v1055
  %v1120 = vmax.f32 %v577, %v1056
  %v1121 = vmax.f32 %v582, %v1057
  %v1122 = vmax.f32 %v587, %v1058
  %v1123 = vmax.f32 %v592, %v1059
  %v1124 = vmax.f32 %v597, %v1060
  %v1125 = vmax.f32 %v602, %v1061
  %v1126 = vmax.f32 %v607, %v1062
  %v1127 = vmax.f32 %v612, %v1063
  %v1128 = vmax.f32 %v617, %v1064
  %v1129 = vmax.f32 %v622, %v1065
  %v1130 = vmax.f32 %v627, %v1066
  %v1131 = vmax.f32 %v632, %v1067
  %v1132 = vmax.f32 %v637, %v1068
  %v1133 = vmax.f32 %v642, %v1069
  %v1134 = vmax.f32 %v647, %v1070
  %v1135 = vmax.f32 %v652, %v1071
  %v1136 = vmax.f32 %v657, %v1072
  %v1137 = vmax.f32 %v662, %v1073
  %v1138 = vmax.f32 %v667, %v1074
  %v1139 = vmax.f32 %v672, %v1075
  %v1140 = vmax.f32 %v677, %v1076
  %v1141 = vmax.f32 %v682, %v1077
  %v1142 = vmax.f32 %v687, %v1078
  %v1143 = vmax.f32 %v692, %v1079
  %v1144 = vsel %vm952, 1, 0
  %v1145 = vsel %vm953, 1, 0
  %v1146 = vsel %vm954, 1, 0
  %v1147 = vsel %vm955, 1, 0
  %v1148 = vsel %vm956, 1, 0
  %v1149 = vsel %vm957, 1, 0
  %v1150 = vsel %vm958, 1, 0
  %v1151 = vsel %vm959, 1, 0
  %v1152 = vsel %vm960, 1, 0
  %v1153 = vsel %vm961, 1, 0
  %v1154 = vsel %vm962, 1, 0
  %v1155 = vsel %vm963, 1, 0
  %v1156 = vsel %vm964, 1, 0
  %v1157 = vsel %vm965, 1, 0
  %v1158 = vsel %vm966, 1, 0
  %v1159 = vsel %vm967, 1, 0
  %v1160 = vsel %vm968, 1, 0
  %v1161 = vsel %vm969, 1, 0
  %v1162 = vsel %vm970, 1, 0
  %v1163 = vsel %vm971, 1, 0
  %v1164 = vsel %vm972, 1, 0
  %v1165 = vsel %vm973, 1, 0
  %v1166 = vsel %vm974, 1, 0
  %v1167 = vsel %vm975, 1, 0
  %v1168 = vsel %vm976, 1, 0
  %v1169 = vsel %vm977, 1, 0
  %v1170 = vsel %vm978, 1, 0
  %v1171 = vsel %vm979, 1, 0
  %v1172 = vsel %vm980, 1, 0
  %v1173 = vsel %vm981, 1, 0
  %v1174 = vsel %vm982, 1, 0
  %v1175 = vsel %vm983, 1, 0
  %v1176 = vsel %vm984, 1, 0
  %v1177 = vsel %vm985, 1, 0
  %v1178 = vsel %vm986, 1, 0
  %v1179 = vsel %vm987, 1, 0
  %v1180 = vsel %vm988, 1, 0
  %v1181 = vsel %vm989, 1, 0
  %v1182 = vsel %vm990, 1, 0
  %v1183 = vsel %vm991, 1, 0
  %v1184 = vsel %vm992, 1, 0
  %v1185 = vsel %vm993, 1, 0
  %v1186 = vsel %vm994, 1, 0
  %v1187 = vsel %vm995, 1, 0
  %v1188 = vsel %vm996, 1, 0
  %v1189 = vsel %vm997, 1, 0
  %v1190 = vsel %vm998, 1, 0
  %v1191 = vsel %vm999, 1, 0
  %v1192 = vsel %vm1000, 1, 0
  %v1193 = vsel %vm1001, 1, 0
  %v1194 = vsel %vm1002, 1, 0
  %v1195 = vsel %vm1003, 1, 0
  %v1196 = vsel %vm1004, 1, 0
  %v1197 = vsel %vm1005, 1, 0
  %v1198 = vsel %vm1006, 1, 0
  %v1199 = vsel %vm1007, 1, 0
  %v1200 = vsel %vm1008, 1, 0
  %v1201 = vsel %vm1009, 1, 0
  %v1202 = vsel %vm1010, 1, 0
  %v1203 = vsel %vm1011, 1, 0
  %v1204 = vsel %vm1012, 1, 0
  %v1205 = vsel %vm1013, 1, 0
  %v1206 = vsel %vm1014, 1, 0
  %v1207 = vsel %vm1015, 1, 0
  %vm1208 = vcmp.eq.s32.totalorder %v1144, 1
  %vm1209 = vcmp.eq.s32.totalorder %v1145, 1
  %vm1210 = vcmp.eq.s32.totalorder %v1146, 1
  %vm1211 = vcmp.eq.s32.totalorder %v1147, 1
  %vm1212 = vcmp.eq.s32.totalorder %v1148, 1
  %vm1213 = vcmp.eq.s32.totalorder %v1149, 1
  %vm1214 = vcmp.eq.s32.totalorder %v1150, 1
  %vm1215 = vcmp.eq.s32.totalorder %v1151, 1
  %vm1216 = vcmp.eq.s32.totalorder %v1152, 1
  %vm1217 = vcmp.eq.s32.totalorder %v1153, 1
  %vm1218 = vcmp.eq.s32.totalorder %v1154, 1
  %vm1219 = vcmp.eq.s32.totalorder %v1155, 1
  %vm1220 = vcmp.eq.s32.totalorder %v1156, 1
  %vm1221 = vcmp.eq.s32.totalorder %v1157, 1
  %vm1222 = vcmp.eq.s32.totalorder %v1158, 1
  %vm1223 = vcmp.eq.s32.totalorder %v1159, 1
  %vm1224 = vcmp.eq.s32.totalorder %v1160, 1
  %vm1225 = vcmp.eq.s32.totalorder %v1161, 1
  %vm1226 = vcmp.eq.s32.totalorder %v1162, 1
  %vm1227 = vcmp.eq.s32.totalorder %v1163, 1
  %vm1228 = vcmp.eq.s32.totalorder %v1164, 1
  %vm1229 = vcmp.eq.s32.totalorder %v1165, 1
  %vm1230 = vcmp.eq.s32.totalorder %v1166, 1
  %vm1231 = vcmp.eq.s32.totalorder %v1167, 1
  %vm1232 = vcmp.eq.s32.totalorder %v1168, 1
  %vm1233 = vcmp.eq.s32.totalorder %v1169, 1
  %vm1234 = vcmp.eq.s32.totalorder %v1170, 1
  %vm1235 = vcmp.eq.s32.totalorder %v1171, 1
  %vm1236 = vcmp.eq.s32.totalorder %v1172, 1
  %vm1237 = vcmp.eq.s32.totalorder %v1173, 1
  %vm1238 = vcmp.eq.s32.totalorder %v1174, 1
  %vm1239 = vcmp.eq.s32.totalorder %v1175, 1
  %vm1240 = vcmp.eq.s32.totalorder %v1176, 1
  %vm1241 = vcmp.eq.s32.totalorder %v1177, 1
  %vm1242 = vcmp.eq.s32.totalorder %v1178, 1
  %vm1243 = vcmp.eq.s32.totalorder %v1179, 1
  %vm1244 = vcmp.eq.s32.totalorder %v1180, 1
  %vm1245 = vcmp.eq.s32.totalorder %v1181, 1
  %vm1246 = vcmp.eq.s32.totalorder %v1182, 1
  %vm1247 = vcmp.eq.s32.totalorder %v1183, 1
  %vm1248 = vcmp.eq.s32.totalorder %v1184, 1
  %vm1249 = vcmp.eq.s32.totalorder %v1185, 1
  %vm1250 = vcmp.eq.s32.totalorder %v1186, 1
  %vm1251 = vcmp.eq.s32.totalorder %v1187, 1
  %vm1252 = vcmp.eq.s32.totalorder %v1188, 1
  %vm1253 = vcmp.eq.s32.totalorder %v1189, 1
  %vm1254 = vcmp.eq.s32.totalorder %v1190, 1
  %vm1255 = vcmp.eq.s32.totalorder %v1191, 1
  %vm1256 = vcmp.eq.s32.totalorder %v1192, 1
  %vm1257 = vcmp.eq.s32.totalorder %v1193, 1
  %vm1258 = vcmp.eq.s32.totalorder %v1194, 1
  %vm1259 = vcmp.eq.s32.totalorder %v1195, 1
  %vm1260 = vcmp.eq.s32.totalorder %v1196, 1
  %vm1261 = vcmp.eq.s32.totalorder %v1197, 1
  %vm1262 = vcmp.eq.s32.totalorder %v1198, 1
  %vm1263 = vcmp.eq.s32.totalorder %v1199, 1
  %vm1264 = vcmp.eq.s32.totalorder %v1200, 1
  %vm1265 = vcmp.eq.s32.totalorder %v1201, 1
  %vm1266 = vcmp.eq.s32.totalorder %v1202, 1
  %vm1267 = vcmp.eq.s32.totalorder %v1203, 1
  %vm1268 = vcmp.eq.s32.totalorder %v1204, 1
  %vm1269 = vcmp.eq.s32.totalorder %v1205, 1
  %vm1270 = vcmp.eq.s32.totalorder %v1206, 1
  %vm1271 = vcmp.eq.s32.totalorder %v1207, 1
  %v1272 = vsel %vm1208, %v1080, 0.0
  %v1273 = vsel %vm1209, %v1081, 0.0
  %v1274 = vsel %vm1210, %v1082, 0.0
  %v1275 = vsel %vm1211, %v1083, 0.0
  %v1276 = vsel %vm1212, %v1084, 0.0
  %v1277 = vsel %vm1213, %v1085, 0.0
  %v1278 = vsel %vm1214, %v1086, 0.0
  %v1279 = vsel %vm1215, %v1087, 0.0
  %v1280 = vsel %vm1216, %v1088, 0.0
  %v1281 = vsel %vm1217, %v1089, 0.0
  %v1282 = vsel %vm1218, %v1090, 0.0
  %v1283 = vsel %vm1219, %v1091, 0.0
  %v1284 = vsel %vm1220, %v1092, 0.0
  %v1285 = vsel %vm1221, %v1093, 0.0
  %v1286 = vsel %vm1222, %v1094, 0.0
  %v1287 = vsel %vm1223, %v1095, 0.0
  %v1288 = vsel %vm1224, %v1096, 0.0
  %v1289 = vsel %vm1225, %v1097, 0.0
  %v1290 = vsel %vm1226, %v1098, 0.0
  %v1291 = vsel %vm1227, %v1099, 0.0
  %v1292 = vsel %vm1228, %v1100, 0.0
  %v1293 = vsel %vm1229, %v1101, 0.0
  %v1294 = vsel %vm1230, %v1102, 0.0
  %v1295 = vsel %vm1231, %v1103, 0.0
  %v1296 = vsel %vm1232, %v1104, 0.0
  %v1297 = vsel %vm1233, %v1105, 0.0
  %v1298 = vsel %vm1234, %v1106, 0.0
  %v1299 = vsel %vm1235, %v1107, 0.0
  %v1300 = vsel %vm1236, %v1108, 0.0
  %v1301 = vsel %vm1237, %v1109, 0.0
  %v1302 = vsel %vm1238, %v1110, 0.0
  %v1303 = vsel %vm1239, %v1111, 0.0
  %v1304 = vsel %vm1240, %v1112, 0.0
  %v1305 = vsel %vm1241, %v1113, 0.0
  %v1306 = vsel %vm1242, %v1114, 0.0
  %v1307 = vsel %vm1243, %v1115, 0.0
  %v1308 = vsel %vm1244, %v1116, 0.0
  %v1309 = vsel %vm1245, %v1117, 0.0
  %v1310 = vsel %vm1246, %v1118, 0.0
  %v1311 = vsel %vm1247, %v1119, 0.0
  %v1312 = vsel %vm1248, %v1120, 0.0
  %v1313 = vsel %vm1249, %v1121, 0.0
  %v1314 = vsel %vm1250, %v1122, 0.0
  %v1315 = vsel %vm1251, %v1123, 0.0
  %v1316 = vsel %vm1252, %v1124, 0.0
  %v1317 = vsel %vm1253, %v1125, 0.0
  %v1318 = vsel %vm1254, %v1126, 0.0
  %v1319 = vsel %vm1255, %v1127, 0.0
  %v1320 = vsel %vm1256, %v1128, 0.0
  %v1321 = vsel %vm1257, %v1129, 0.0
  %v1322 = vsel %vm1258, %v1130, 0.0
  %v1323 = vsel %vm1259, %v1131, 0.0
  %v1324 = vsel %vm1260, %v1132, 0.0
  %v1325 = vsel %vm1261, %v1133, 0.0
  %v1326 = vsel %vm1262, %v1134, 0.0
  %v1327 = vsel %vm1263, %v1135, 0.0
  %v1328 = vsel %vm1264, %v1136, 0.0
  %v1329 = vsel %vm1265, %v1137, 0.0
  %v1330 = vsel %vm1266, %v1138, 0.0
  %v1331 = vsel %vm1267, %v1139, 0.0
  %v1332 = vsel %vm1268, %v1140, 0.0
  %v1333 = vsel %vm1269, %v1141, 0.0
  %v1334 = vsel %vm1270, %v1142, 0.0
  %v1335 = vsel %vm1271, %v1143, 0.0
  %1336 = vst [vmem:[#allocation2 + $0x8] sm:$0xff] %v1272
  %1337 = vst [vmem:[#allocation2 + $0x10] sm:$0xff] %v1273
  %1338 = vst [vmem:[#allocation2 + $0x18] sm:$0xff] %v1274
  %1339 = vst [vmem:[#allocation2 + $0x20] sm:$0xff] %v1275
  %1340 = vst [vmem:[#allocation2 + $0x28] sm:$0xff] %v1276
  %1341 = vst [vmem:[#allocation2 + $0x30] sm:$0xff] %v1277
  %1342 = vst [vmem:[#allocation2 + $0x38] sm:$0xff] %v1278
  %1343 = vst [vmem:[#allocation2 + $0x40] sm:$0xff] %v1279
  %1344 = vst [vmem:[#allocation2 + $0x48] sm:$0xff] %v1280
  %1345 = vst [vmem:[#allocation2 + $0x50] sm:$0xff] %v1281
  %1346 = vst [vmem:[#allocation2 + $0x58] sm:$0xff] %v1282
  %1347 = vst [vmem:[#allocation2 + $0x60] sm:$0xff] %v1283
  %1348 = vst [vmem:[#allocation2 + $0x68] sm:$0xff] %v1284
  %1349 = vst [vmem:[#allocation2 + $0x70] sm:$0xff] %v1285
  %1350 = vst [vmem:[#allocation2 + $0x78] sm:$0xff] %v1286
  %1351 = vst [vmem:[#allocation2 + $0x80] sm:$0xff] %v1287
  %1352 = vst [vmem:[#allocation2 + $0x88] sm:$0xff] %v1288
  %1353 = vst [vmem:[#allocation2 + $0x90] sm:$0xff] %v1289
  %1354 = vst [vmem:[#allocation2 + $0x98] sm:$0xff] %v1290
  %1355 = vst [vmem:[#allocation2 + $0xa0] sm:$0xff] %v1291
  %1356 = vst [vmem:[#allocation2 + $0xa8] sm:$0xff] %v1292
  %1357 = vst [vmem:[#allocation2 + $0xb0] sm:$0xff] %v1293
  %1358 = vst [vmem:[#allocation2 + $0xb8] sm:$0xff] %v1294
  %1359 = vst [vmem:[#allocation2 + $0xc0] sm:$0xff] %v1295
  %1360 = vst [vmem:[#allocation2 + $0xc8] sm:$0xff] %v1296
  %1361 = vst [vmem:[#allocation2 + $0xd0] sm:$0xff] %v1297
  %1362 = vst [vmem:[#allocation2 + $0xd8] sm:$0xff] %v1298
  %1363 = vst [vmem:[#allocation2 + $0xe0] sm:$0xff] %v1299
  %1364 = vst [vmem:[#allocation2 + $0xe8] sm:$0xff] %v1300
  %1365 = vst [vmem:[#allocation2 + $0xf0] sm:$0xff] %v1301
  %1366 = vst [vmem:[#allocation2 + $0xf8] sm:$0xff] %v1302
  %1367 = vst [vmem:[#allocation2 + $0x100] sm:$0xff] %v1303
  %1368 = vst [vmem:[#allocation2 + $0x108] sm:$0xff] %v1304
  %1369 = vst [vmem:[#allocation2 + $0x110] sm:$0xff] %v1305
  %1370 = vst [vmem:[#allocation2 + $0x118] sm:$0xff] %v1306
  %1371 = vst [vmem:[#allocation2 + $0x120] sm:$0xff] %v1307
  %1372 = vst [vmem:[#allocation2 + $0x128] sm:$0xff] %v1308
  %1373 = vst [vmem:[#allocation2 + $0x130] sm:$0xff] %v1309
  %1374 = vst [vmem:[#allocation2 + $0x138] sm:$0xff] %v1310
  %1375 = vst [vmem:[#allocation2 + $0x140] sm:$0xff] %v1311
  %1376 = vst [vmem:[#allocation2 + $0x148] sm:$0xff] %v1312
  %1377 = vst [vmem:[#allocation2 + $0x150] sm:$0xff] %v1313
  %1378 = vst [vmem:[#allocation2 + $0x158] sm:$0xff] %v1314
  %1379 = vst [vmem:[#allocation2 + $0x160] sm:$0xff] %v1315
  %1380 = vst [vmem:[#allocation2 + $0x168] sm:$0xff] %v1316
  %1381 = vst [vmem:[#allocation2 + $0x170] sm:$0xff] %v1317
  %1382 = vst [vmem:[#allocation2 + $0x178] sm:$0xff] %v1318
  %1383 = vst [vmem:[#allocation2 + $0x180] sm:$0xff] %v1319
  %1384 = vst [vmem:[#allocation2 + $0x188] sm:$0xff] %v1320
  %1385 = vst [vmem:[#allocation2 + $0x190] sm:$0xff] %v1321
  %1386 = vst [vmem:[#allocation2 + $0x198] sm:$0xff] %v1322
  %1387 = vst [vmem:[#allocation2 + $0x1a0] sm:$0xff] %v1323
  %1388 = vst [vmem:[#allocation2 + $0x1a8] sm:$0xff] %v1324
  %1389 = vst [vmem:[#allocation2 + $0x1b0] sm:$0xff] %v1325
  %1390 = vst [vmem:[#allocation2 + $0x1b8] sm:$0xff] %v1326
  %1391 = vst [vmem:[#allocation2 + $0x1c0] sm:$0xff] %v1327
  %1392 = vst [vmem:[#allocation2 + $0x1c8] sm:$0xff] %v1328
  %1393 = vst [vmem:[#allocation2 + $0x1d0] sm:$0xff] %v1329
  %1394 = vst [vmem:[#allocation2 + $0x1d8] sm:$0xff] %v1330
  %1395 = vst [vmem:[#allocation2 + $0x1e0] sm:$0xff] %v1331
  %1396 = vst [vmem:[#allocation2 + $0x1e8] sm:$0xff] %v1332
  %1397 = vst [vmem:[#allocation2 + $0x1f0] sm:$0xff] %v1333
  %1398 = vst [vmem:[#allocation2 + $0x1f8] sm:$0xff] %v1334
  %1399 = vst [vmem:[#allocation2 + $0x200] sm:$0xff] %v1335
  %s1400 = scalar_lea.vmem [#allocation2], 6
  %v1401 = vld [vmem:[%s1400] ss:$2 sm:$0xff]
  %s1402 = scalar_lea.vmem [#allocation2], 22
  %v1403 = vld [vmem:[%s1402] ss:$2 sm:$0xff]
  %s1404 = scalar_lea.vmem [#allocation2], 38
  %v1405 = vld [vmem:[%s1404] ss:$2 sm:$0xff]
  %s1406 = scalar_lea.vmem [#allocation2], 54
  %v1407 = vld [vmem:[%s1406] ss:$2 sm:$0xff]
  %s1408 = scalar_lea.vmem [#allocation2], 70
  %v1409 = vld [vmem:[%s1408] ss:$2 sm:$0xff]
  %s1410 = scalar_lea.vmem [#allocation2], 86
  %v1411 = vld [vmem:[%s1410] ss:$2 sm:$0xff]
  %s1412 = scalar_lea.vmem [#allocation2], 102
  %v1413 = vld [vmem:[%s1412] ss:$2 sm:$0xff]
  %s1414 = scalar_lea.vmem [#allocation2], 118
  %v1415 = vld [vmem:[%s1414] ss:$2 sm:$0xff]
  %s1416 = scalar_lea.vmem [#allocation2], 134
  %v1417 = vld [vmem:[%s1416] ss:$2 sm:$0xff]
  %s1418 = scalar_lea.vmem [#allocation2], 150
  %v1419 = vld [vmem:[%s1418] ss:$2 sm:$0xff]
  %s1420 = scalar_lea.vmem [#allocation2], 166
  %v1421 = vld [vmem:[%s1420] ss:$2 sm:$0xff]
  %s1422 = scalar_lea.vmem [#allocation2], 182
  %v1423 = vld [vmem:[%s1422] ss:$2 sm:$0xff]
  %s1424 = scalar_lea.vmem [#allocation2], 198
  %v1425 = vld [vmem:[%s1424] ss:$2 sm:$0xff]
  %s1426 = scalar_lea.vmem [#allocation2], 214
  %v1427 = vld [vmem:[%s1426] ss:$2 sm:$0xff]
  %s1428 = scalar_lea.vmem [#allocation2], 230
  %v1429 = vld [vmem:[%s1428] ss:$2 sm:$0xff]
  %s1430 = scalar_lea.vmem [#allocation2], 246
  %v1431 = vld [vmem:[%s1430] ss:$2 sm:$0xff]
  %s1432 = scalar_lea.vmem [#allocation2], 262
  %v1433 = vld [vmem:[%s1432] ss:$2 sm:$0xff]
  %s1434 = scalar_lea.vmem [#allocation2], 278
  %v1435 = vld [vmem:[%s1434] ss:$2 sm:$0xff]
  %s1436 = scalar_lea.vmem [#allocation2], 294
  %v1437 = vld [vmem:[%s1436] ss:$2 sm:$0xff]
  %s1438 = scalar_lea.vmem [#allocation2], 310
  %v1439 = vld [vmem:[%s1438] ss:$2 sm:$0xff]
  %s1440 = scalar_lea.vmem [#allocation2], 326
  %v1441 = vld [vmem:[%s1440] ss:$2 sm:$0xff]
  %s1442 = scalar_lea.vmem [#allocation2], 342
  %v1443 = vld [vmem:[%s1442] ss:$2 sm:$0xff]
  %s1444 = scalar_lea.vmem [#allocation2], 358
  %v1445 = vld [vmem:[%s1444] ss:$2 sm:$0xff]
  %s1446 = scalar_lea.vmem [#allocation2], 374
  %v1447 = vld [vmem:[%s1446] ss:$2 sm:$0xff]
  %s1448 = scalar_lea.vmem [#allocation2], 390
  %v1449 = vld [vmem:[%s1448] ss:$2 sm:$0xff]
  %s1450 = scalar_lea.vmem [#allocation2], 406
  %v1451 = vld [vmem:[%s1450] ss:$2 sm:$0xff]
  %s1452 = scalar_lea.vmem [#allocation2], 422
  %v1453 = vld [vmem:[%s1452] ss:$2 sm:$0xff]
  %s1454 = scalar_lea.vmem [#allocation2], 438
  %v1455 = vld [vmem:[%s1454] ss:$2 sm:$0xff]
  %s1456 = scalar_lea.vmem [#allocation2], 454
  %v1457 = vld [vmem:[%s1456] ss:$2 sm:$0xff]
  %s1458 = scalar_lea.vmem [#allocation2], 470
  %v1459 = vld [vmem:[%s1458] ss:$2 sm:$0xff]
  %s1460 = scalar_lea.vmem [#allocation2], 486
  %v1461 = vld [vmem:[%s1460] ss:$2 sm:$0xff]
  %s1462 = scalar_lea.vmem [#allocation2], 502
  %v1463 = vld [vmem:[%s1462] ss:$2 sm:$0xff]
  %s1464 = scalar_lea.vmem [#allocation2], 7
  %v1465 = vld [vmem:[%s1464] ss:$2 sm:$0xff]
  %s1466 = scalar_lea.vmem [#allocation2], 23
  %v1467 = vld [vmem:[%s1466] ss:$2 sm:$0xff]
  %s1468 = scalar_lea.vmem [#allocation2], 39
  %v1469 = vld [vmem:[%s1468] ss:$2 sm:$0xff]
  %s1470 = scalar_lea.vmem [#allocation2], 55
  %v1471 = vld [vmem:[%s1470] ss:$2 sm:$0xff]
  %s1472 = scalar_lea.vmem [#allocation2], 71
  %v1473 = vld [vmem:[%s1472] ss:$2 sm:$0xff]
  %s1474 = scalar_lea.vmem [#allocation2], 87
  %v1475 = vld [vmem:[%s1474] ss:$2 sm:$0xff]
  %s1476 = scalar_lea.vmem [#allocation2], 103
  %v1477 = vld [vmem:[%s1476] ss:$2 sm:$0xff]
  %s1478 = scalar_lea.vmem [#allocation2], 119
  %v1479 = vld [vmem:[%s1478] ss:$2 sm:$0xff]
  %s1480 = scalar_lea.vmem [#allocation2], 135
  %v1481 = vld [vmem:[%s1480] ss:$2 sm:$0xff]
  %s1482 = scalar_lea.vmem [#allocation2], 151
  %v1483 = vld [vmem:[%s1482] ss:$2 sm:$0xff]
  %s1484 = scalar_lea.vmem [#allocation2], 167
  %v1485 = vld [vmem:[%s1484] ss:$2 sm:$0xff]
  %s1486 = scalar_lea.vmem [#allocation2], 183
  %v1487 = vld [vmem:[%s1486] ss:$2 sm:$0xff]
  %s1488 = scalar_lea.vmem [#allocation2], 199
  %v1489 = vld [vmem:[%s1488] ss:$2 sm:$0xff]
  %s1490 = scalar_lea.vmem [#allocation2], 215
  %v1491 = vld [vmem:[%s1490] ss:$2 sm:$0xff]
  %s1492 = scalar_lea.vmem [#allocation2], 231
  %v1493 = vld [vmem:[%s1492] ss:$2 sm:$0xff]
  %s1494 = scalar_lea.vmem [#allocation2], 247
  %v1495 = vld [vmem:[%s1494] ss:$2 sm:$0xff]
  %s1496 = scalar_lea.vmem [#allocation2], 263
  %v1497 = vld [vmem:[%s1496] ss:$2 sm:$0xff]
  %s1498 = scalar_lea.vmem [#allocation2], 279
  %v1499 = vld [vmem:[%s1498] ss:$2 sm:$0xff]
  %s1500 = scalar_lea.vmem [#allocation2], 295
  %v1501 = vld [vmem:[%s1500] ss:$2 sm:$0xff]
  %s1502 = scalar_lea.vmem [#allocation2], 311
  %v1503 = vld [vmem:[%s1502] ss:$2 sm:$0xff]
  %s1504 = scalar_lea.vmem [#allocation2], 327
  %v1505 = vld [vmem:[%s1504] ss:$2 sm:$0xff]
  %s1506 = scalar_lea.vmem [#allocation2], 343
  %v1507 = vld [vmem:[%s1506] ss:$2 sm:$0xff]
  %s1508 = scalar_lea.vmem [#allocation2], 359
  %v1509 = vld [vmem:[%s1508] ss:$2 sm:$0xff]
  %s1510 = scalar_lea.vmem [#allocation2], 375
  %v1511 = vld [vmem:[%s1510] ss:$2 sm:$0xff]
  %s1512 = scalar_lea.vmem [#allocation2], 391
  %v1513 = vld [vmem:[%s1512] ss:$2 sm:$0xff]
  %s1514 = scalar_lea.vmem [#allocation2], 407
  %v1515 = vld [vmem:[%s1514] ss:$2 sm:$0xff]
  %s1516 = scalar_lea.vmem [#allocation2], 423
  %v1517 = vld [vmem:[%s1516] ss:$2 sm:$0xff]
  %s1518 = scalar_lea.vmem [#allocation2], 439
  %v1519 = vld [vmem:[%s1518] ss:$2 sm:$0xff]
  %s1520 = scalar_lea.vmem [#allocation2], 455
  %v1521 = vld [vmem:[%s1520] ss:$2 sm:$0xff]
  %s1522 = scalar_lea.vmem [#allocation2], 471
  %v1523 = vld [vmem:[%s1522] ss:$2 sm:$0xff]
  %s1524 = scalar_lea.vmem [#allocation2], 487
  %v1525 = vld [vmem:[%s1524] ss:$2 sm:$0xff]
  %s1526 = scalar_lea.vmem [#allocation2], 503
  %v1527 = vld [vmem:[%s1526] ss:$2 sm:$0xff]
  %s1528 = scalar_lea.vmem [#allocation2], 8
  %v1529 = vld [vmem:[%s1528] ss:$2 sm:$0xff]
  %s1530 = scalar_lea.vmem [#allocation2], 24
  %v1531 = vld [vmem:[%s1530] ss:$2 sm:$0xff]
  %s1532 = scalar_lea.vmem [#allocation2], 40
  %v1533 = vld [vmem:[%s1532] ss:$2 sm:$0xff]
  %s1534 = scalar_lea.vmem [#allocation2], 56
  %v1535 = vld [vmem:[%s1534] ss:$2 sm:$0xff]
  %s1536 = scalar_lea.vmem [#allocation2], 72
  %v1537 = vld [vmem:[%s1536] ss:$2 sm:$0xff]
  %s1538 = scalar_lea.vmem [#allocation2], 88
  %v1539 = vld [vmem:[%s1538] ss:$2 sm:$0xff]
  %s1540 = scalar_lea.vmem [#allocation2], 104
  %v1541 = vld [vmem:[%s1540] ss:$2 sm:$0xff]
  %s1542 = scalar_lea.vmem [#allocation2], 120
  %v1543 = vld [vmem:[%s1542] ss:$2 sm:$0xff]
  %s1544 = scalar_lea.vmem [#allocation2], 136
  %v1545 = vld [vmem:[%s1544] ss:$2 sm:$0xff]
  %s1546 = scalar_lea.vmem [#allocation2], 152
  %v1547 = vld [vmem:[%s1546] ss:$2 sm:$0xff]
  %s1548 = scalar_lea.vmem [#allocation2], 168
  %v1549 = vld [vmem:[%s1548] ss:$2 sm:$0xff]
  %s1550 = scalar_lea.vmem [#allocation2], 184
  %v1551 = vld [vmem:[%s1550] ss:$2 sm:$0xff]
  %s1552 = scalar_lea.vmem [#allocation2], 200
  %v1553 = vld [vmem:[%s1552] ss:$2 sm:$0xff]
  %s1554 = scalar_lea.vmem [#allocation2], 216
  %v1555 = vld [vmem:[%s1554] ss:$2 sm:$0xff]
  %s1556 = scalar_lea.vmem [#allocation2], 232
  %v1557 = vld [vmem:[%s1556] ss:$2 sm:$0xff]
  %s1558 = scalar_lea.vmem [#allocation2], 248
  %v1559 = vld [vmem:[%s1558] ss:$2 sm:$0xff]
  %s1560 = scalar_lea.vmem [#allocation2], 264
  %v1561 = vld [vmem:[%s1560] ss:$2 sm:$0xff]
  %s1562 = scalar_lea.vmem [#allocation2], 280
  %v1563 = vld [vmem:[%s1562] ss:$2 sm:$0xff]
  %s1564 = scalar_lea.vmem [#allocation2], 296
  %v1565 = vld [vmem:[%s1564] ss:$2 sm:$0xff]
  %s1566 = scalar_lea.vmem [#allocation2], 312
  %v1567 = vld [vmem:[%s1566] ss:$2 sm:$0xff]
  %s1568 = scalar_lea.vmem [#allocation2], 328
  %v1569 = vld [vmem:[%s1568] ss:$2 sm:$0xff]
  %s1570 = scalar_lea.vmem [#allocation2], 344
  %v1571 = vld [vmem:[%s1570] ss:$2 sm:$0xff]
  %s1572 = scalar_lea.vmem [#allocation2], 360
  %v1573 = vld [vmem:[%s1572] ss:$2 sm:$0xff]
  %s1574 = scalar_lea.vmem [#allocation2], 376
  %v1575 = vld [vmem:[%s1574] ss:$2 sm:$0xff]
  %s1576 = scalar_lea.vmem [#allocation2], 392
  %v1577 = vld [vmem:[%s1576] ss:$2 sm:$0xff]
  %s1578 = scalar_lea.vmem [#allocation2], 408
  %v1579 = vld [vmem:[%s1578] ss:$2 sm:$0xff]
  %s1580 = scalar_lea.vmem [#allocation2], 424
  %v1581 = vld [vmem:[%s1580] ss:$2 sm:$0xff]
  %s1582 = scalar_lea.vmem [#allocation2], 440
  %v1583 = vld [vmem:[%s1582] ss:$2 sm:$0xff]
  %s1584 = scalar_lea.vmem [#allocation2], 456
  %v1585 = vld [vmem:[%s1584] ss:$2 sm:$0xff]
  %s1586 = scalar_lea.vmem [#allocation2], 472
  %v1587 = vld [vmem:[%s1586] ss:$2 sm:$0xff]
  %s1588 = scalar_lea.vmem [#allocation2], 488
  %v1589 = vld [vmem:[%s1588] ss:$2 sm:$0xff]
  %s1590 = scalar_lea.vmem [#allocation2], 504
  %v1591 = vld [vmem:[%s1590] ss:$2 sm:$0xff]
  %vm1592 = vcmp.lt.s32.totalorder %v44, 16
  %vm1593 = vcmp.lt.s32.totalorder %v44, 32
  %v1594 = vsel %vm1593, 1, 0
  %vm1595 = vcmp.eq.s32.totalorder %v1594, 1
  %v1596 = vsel %vm1595, %v1465, %v1529
  %v1597 = vsel %vm1595, %v1467, %v1531
  %v1598 = vsel %vm1595, %v1469, %v1533
  %v1599 = vsel %vm1595, %v1471, %v1535
  %v1600 = vsel %vm1595, %v1473, %v1537
  %v1601 = vsel %vm1595, %v1475, %v1539
  %v1602 = vsel %vm1595, %v1477, %v1541
  %v1603 = vsel %vm1595, %v1479, %v1543
  %v1604 = vsel %vm1595, %v1481, %v1545
  %v1605 = vsel %vm1595, %v1483, %v1547
  %v1606 = vsel %vm1595, %v1485, %v1549
  %v1607 = vsel %vm1595, %v1487, %v1551
  %v1608 = vsel %vm1595, %v1489, %v1553
  %v1609 = vsel %vm1595, %v1491, %v1555
  %v1610 = vsel %vm1595, %v1493, %v1557
  %v1611 = vsel %vm1595, %v1495, %v1559
  %v1612 = vsel %vm1595, %v1497, %v1561
  %v1613 = vsel %vm1595, %v1499, %v1563
  %v1614 = vsel %vm1595, %v1501, %v1565
  %v1615 = vsel %vm1595, %v1503, %v1567
  %v1616 = vsel %vm1595, %v1505, %v1569
  %v1617 = vsel %vm1595, %v1507, %v1571
  %v1618 = vsel %vm1595, %v1509, %v1573
  %v1619 = vsel %vm1595, %v1511, %v1575
  %v1620 = vsel %vm1595, %v1513, %v1577
  %v1621 = vsel %vm1595, %v1515, %v1579
  %v1622 = vsel %vm1595, %v1517, %v1581
  %v1623 = vsel %vm1595, %v1519, %v1583
  %v1624 = vsel %vm1595, %v1521, %v1585
  %v1625 = vsel %vm1595, %v1523, %v1587
  %v1626 = vsel %vm1595, %v1525, %v1589
  %v1627 = vsel %vm1595, %v1527, %v1591
  %v1628 = vsel %vm1592, 1, 0
  %vm1629 = vcmp.eq.s32.totalorder %v1628, 1
  %v1630 = vsel %vm1629, %v1401, %v1596
  %v1631 = vsel %vm1629, %v1403, %v1597
  %v1632 = vsel %vm1629, %v1405, %v1598
  %v1633 = vsel %vm1629, %v1407, %v1599
  %v1634 = vsel %vm1629, %v1409, %v1600
  %v1635 = vsel %vm1629, %v1411, %v1601
  %v1636 = vsel %vm1629, %v1413, %v1602
  %v1637 = vsel %vm1629, %v1415, %v1603
  %v1638 = vsel %vm1629, %v1417, %v1604
  %v1639 = vsel %vm1629, %v1419, %v1605
  %v1640 = vsel %vm1629, %v1421, %v1606
  %v1641 = vsel %vm1629, %v1423, %v1607
  %v1642 = vsel %vm1629, %v1425, %v1608
  %v1643 = vsel %vm1629, %v1427, %v1609
  %v1644 = vsel %vm1629, %v1429, %v1610
  %v1645 = vsel %vm1629, %v1431, %v1611
  %v1646 = vsel %vm1629, %v1433, %v1612
  %v1647 = vsel %vm1629, %v1435, %v1613
  %v1648 = vsel %vm1629, %v1437, %v1614
  %v1649 = vsel %vm1629, %v1439, %v1615
  %v1650 = vsel %vm1629, %v1441, %v1616
  %v1651 = vsel %vm1629, %v1443, %v1617
  %v1652 = vsel %vm1629, %v1445, %v1618
  %v1653 = vsel %vm1629, %v1447, %v1619
  %v1654 = vsel %vm1629, %v1449, %v1620
  %v1655 = vsel %vm1629, %v1451, %v1621
  %v1656 = vsel %vm1629, %v1453, %v1622
  %v1657 = vsel %vm1629, %v1455, %v1623
  %v1658 = vsel %vm1629, %v1457, %v1624
  %v1659 = vsel %vm1629, %v1459, %v1625
  %v1660 = vsel %vm1629, %v1461, %v1626
  %v1661 = vsel %vm1629, %v1463, %v1627
  %v1662 = vld [vmem:[%s3] sm:$0xff]
  %v1663 = vld [vmem:[%s3 + $0x8] sm:$0xff]
  %v1664 = vld [vmem:[%s3 + $0x10] sm:$0xff]
  %v1665 = vld [vmem:[%s3 + $0x18] sm:$0xff]
  %v1666 = vld [vmem:[%s3 + $0x20] sm:$0xff]
  %v1667 = vld [vmem:[%s3 + $0x28] sm:$0xff]
  %v1668 = vld [vmem:[%s3 + $0x30] sm:$0xff]
  %v1669 = vld [vmem:[%s3 + $0x38] sm:$0xff]
  %v1670 = vld [vmem:[%s3 + $0x40] sm:$0xff]
  %v1671 = vld [vmem:[%s3 + $0x48] sm:$0xff]
  %v1672 = vld [vmem:[%s3 + $0x50] sm:$0xff]
  %v1673 = vld [vmem:[%s3 + $0x58] sm:$0xff]
  %v1674 = vld [vmem:[%s3 + $0x60] sm:$0xff]
  %v1675 = vld [vmem:[%s3 + $0x68] sm:$0xff]
  %v1676 = vld [vmem:[%s3 + $0x70] sm:$0xff]
  %v1677 = vld [vmem:[%s3 + $0x78] sm:$0xff]
  %v1678 = vld [vmem:[%s4] sm:$0x1]
  %v1680 = vlaneseq
  %v1681 = vshrl.u32 %v1680, 7
  %v1682 = vsub.s32 0, %v1681
  %v1683 = vrot.slane %v1678, %v1682
  %1685 = vmatprep.subr.mxu0 0.0
  %1686 = vmatpush1.msra.mxu0 %v1677
  %1687 = vmatprep.subr.mxu0 0.0
  %1688 = vmatpush1.msra.mxu0 %v1676
  %1689 = vmatprep.subr.mxu0 0.0
  %1690 = vmatpush1.msra.mxu0 %v1675
  %1691 = vmatprep.subr.mxu0 0.0
  %1692 = vmatpush1.msra.mxu0 %v1674
  %1693 = vmatprep.subr.mxu0 0.0
  %1694 = vmatpush1.msra.mxu0 %v1673
  %1695 = vmatprep.subr.mxu0 0.0
  %1696 = vmatpush1.msra.mxu0 %v1672
  %1697 = vmatprep.subr.mxu0 0.0
  %1698 = vmatpush1.msra.mxu0 %v1671
  %1699 = vmatprep.subr.mxu0 0.0
  %1700 = vmatpush1.msra.mxu0 %v1670
  %1701 = vmatprep.subr.mxu0 0.0
  %1702 = vmatpush1.msra.mxu0 %v1669
  %1703 = vmatprep.subr.mxu0 0.0
  %1704 = vmatpush1.msra.mxu0 %v1668
  %1705 = vmatprep.subr.mxu0 0.0
  %1706 = vmatpush1.msra.mxu0 %v1667
  %1707 = vmatprep.subr.mxu0 0.0
  %1708 = vmatpush1.msra.mxu0 %v1666
  %1709 = vmatprep.subr.mxu0 0.0
  %1710 = vmatpush1.msra.mxu0 %v1665
  %1711 = vmatprep.subr.mxu0 0.0
  %1712 = vmatpush1.msra.mxu0 %v1664
  %1713 = vmatprep.subr.mxu0 0.0
  %1714 = vmatpush1.msra.mxu0 %v1663
  %1715 = vmatprep.subr.mxu0 0.0
  %1716 = vmatpush1.msra.mxu0 %v1662
  %1717 = vmatprep.subr.mxu0 0.0
  %1718 = vmatpush2.msra.mxu0 0.0
  %1719 = vmatprep.subr.mxu0 0.0
  %1720 = vmatpush2.msra.mxu0 0.0
  %1721 = vmatprep.subr.mxu0 0.0
  %1722 = vmatpush2.msra.mxu0 0.0
  %1723 = vmatprep.subr.mxu0 0.0
  %1724 = vmatpush2.msra.mxu0 0.0
  %1725 = vmatprep.subr.mxu0 0.0
  %1726 = vmatpush2.msra.mxu0 0.0
  %1727 = vmatprep.subr.mxu0 0.0
  %1728 = vmatpush2.msra.mxu0 0.0
  %1729 = vmatprep.subr.mxu0 0.0
  %1730 = vmatpush2.msra.mxu0 0.0
  %1731 = vmatprep.subr.mxu0 0.0
  %1732 = vmatpush2.msra.mxu0 0.0
  %1733 = vmatprep.subr.mxu0 0.0
  %1734 = vmatpush2.msra.mxu0 0.0
  %1735 = vmatprep.subr.mxu0 0.0
  %1736 = vmatpush2.msra.mxu0 0.0
  %1737 = vmatprep.subr.mxu0 0.0
  %1738 = vmatpush2.msra.mxu0 0.0
  %1739 = vmatprep.subr.mxu0 0.0
  %1740 = vmatpush2.msra.mxu0 0.0
  %1741 = vmatprep.subr.mxu0 0.0
  %1742 = vmatpush2.msra.mxu0 0.0
  %1743 = vmatprep.subr.mxu0 0.0
  %1744 = vmatpush2.msra.mxu0 0.0
  %1745 = vmatprep.subr.mxu0 0.0
  %1746 = vmatpush2.msra.mxu0 0.0
  %1747 = vmatprep.subr.mxu0 0.0
  %1748 = vmatpush2.msra.mxu0 0.0
  %1749 = vmatprep.mubr.f32.mxu0 0.0
  %1750 = vmatmul.mubr.f32.gmra.mxu0 %v1630
  %v1751 = vpop.f32.mrf.mxu0
  %v1752 = vadd.f32 %v1683, %v1751
  %v1753 = vpop.f32.mrf.mxu0
  %1754 = vmatprep.mubr.f32.mxu0 0.0
  %1755 = vmatmul.mubr.f32.gmra.mxu0 %v1631
  %v1756 = vpop.f32.mrf.mxu0
  %v1757 = vadd.f32 %v1683, %v1756
  %v1758 = vpop.f32.mrf.mxu0
  %1759 = vmatprep.mubr.f32.mxu0 0.0
  %1760 = vmatmul.mubr.f32.gmra.mxu0 %v1632
  %v1761 = vpop.f32.mrf.mxu0
  %v1762 = vadd.f32 %v1683, %v1761
  %v1763 = vpop.f32.mrf.mxu0
  %1764 = vmatprep.mubr.f32.mxu0 0.0
  %1765 = vmatmul.mubr.f32.gmra.mxu0 %v1633
  %v1766 = vpop.f32.mrf.mxu0
  %v1767 = vadd.f32 %v1683, %v1766
  %v1768 = vpop.f32.mrf.mxu0
  %1769 = vmatprep.mubr.f32.mxu0 0.0
  %1770 = vmatmul.mubr.f32.gmra.mxu0 %v1634
  %v1771 = vpop.f32.mrf.mxu0
  %v1772 = vadd.f32 %v1683, %v1771
  %v1773 = vpop.f32.mrf.mxu0
  %1774 = vmatprep.mubr.f32.mxu0 0.0
  %1775 = vmatmul.mubr.f32.gmra.mxu0 %v1635
  %v1776 = vpop.f32.mrf.mxu0
  %v1777 = vadd.f32 %v1683, %v1776
  %v1778 = vpop.f32.mrf.mxu0
  %1779 = vmatprep.mubr.f32.mxu0 0.0
  %1780 = vmatmul.mubr.f32.gmra.mxu0 %v1636
  %v1781 = vpop.f32.mrf.mxu0
  %v1782 = vadd.f32 %v1683, %v1781
  %v1783 = vpop.f32.mrf.mxu0
  %1784 = vmatprep.mubr.f32.mxu0 0.0
  %1785 = vmatmul.mubr.f32.gmra.mxu0 %v1637
  %v1786 = vpop.f32.mrf.mxu0
  %v1787 = vadd.f32 %v1683, %v1786
  %v1788 = vpop.f32.mrf.mxu0
  %1789 = vmatprep.mubr.f32.mxu0 0.0
  %1790 = vmatmul.mubr.f32.gmra.mxu0 %v1638
  %v1791 = vpop.f32.mrf.mxu0
  %v1792 = vadd.f32 %v1683, %v1791
  %v1793 = vpop.f32.mrf.mxu0
  %1794 = vmatprep.mubr.f32.mxu0 0.0
  %1795 = vmatmul.mubr.f32.gmra.mxu0 %v1639
  %v1796 = vpop.f32.mrf.mxu0
  %v1797 = vadd.f32 %v1683, %v1796
  %v1798 = vpop.f32.mrf.mxu0
  %1799 = vmatprep.mubr.f32.mxu0 0.0
  %1800 = vmatmul.mubr.f32.gmra.mxu0 %v1640
  %v1801 = vpop.f32.mrf.mxu0
  %v1802 = vadd.f32 %v1683, %v1801
  %v1803 = vpop.f32.mrf.mxu0
  %1804 = vmatprep.mubr.f32.mxu0 0.0
  %1805 = vmatmul.mubr.f32.gmra.mxu0 %v1641
  %v1806 = vpop.f32.mrf.mxu0
  %v1807 = vadd.f32 %v1683, %v1806
  %v1808 = vpop.f32.mrf.mxu0
  %1809 = vmatprep.mubr.f32.mxu0 0.0
  %1810 = vmatmul.mubr.f32.gmra.mxu0 %v1642
  %v1811 = vpop.f32.mrf.mxu0
  %v1812 = vadd.f32 %v1683, %v1811
  %v1813 = vpop.f32.mrf.mxu0
  %1814 = vmatprep.mubr.f32.mxu0 0.0
  %1815 = vmatmul.mubr.f32.gmra.mxu0 %v1643
  %v1816 = vpop.f32.mrf.mxu0
  %v1817 = vadd.f32 %v1683, %v1816
  %v1818 = vpop.f32.mrf.mxu0
  %1819 = vmatprep.mubr.f32.mxu0 0.0
  %1820 = vmatmul.mubr.f32.gmra.mxu0 %v1644
  %v1821 = vpop.f32.mrf.mxu0
  %v1822 = vadd.f32 %v1683, %v1821
  %v1823 = vpop.f32.mrf.mxu0
  %1824 = vmatprep.mubr.f32.mxu0 0.0
  %1825 = vmatmul.mubr.f32.gmra.mxu0 %v1645
  %v1826 = vpop.f32.mrf.mxu0
  %v1827 = vadd.f32 %v1683, %v1826
  %v1828 = vpop.f32.mrf.mxu0
  %1829 = vmatprep.mubr.f32.mxu0 0.0
  %1830 = vmatmul.mubr.f32.gmra.mxu0 %v1646
  %v1831 = vpop.f32.mrf.mxu0
  %v1832 = vadd.f32 %v1683, %v1831
  %v1833 = vpop.f32.mrf.mxu0
  %1834 = vmatprep.mubr.f32.mxu0 0.0
  %1835 = vmatmul.mubr.f32.gmra.mxu0 %v1647
  %v1836 = vpop.f32.mrf.mxu0
  %v1837 = vadd.f32 %v1683, %v1836
  %v1838 = vpop.f32.mrf.mxu0
  %1839 = vmatprep.mubr.f32.mxu0 0.0
  %1840 = vmatmul.mubr.f32.gmra.mxu0 %v1648
  %v1841 = vpop.f32.mrf.mxu0
  %v1842 = vadd.f32 %v1683, %v1841
  %v1843 = vpop.f32.mrf.mxu0
  %1844 = vmatprep.mubr.f32.mxu0 0.0
  %1845 = vmatmul.mubr.f32.gmra.mxu0 %v1649
  %v1846 = vpop.f32.mrf.mxu0
  %v1847 = vadd.f32 %v1683, %v1846
  %v1848 = vpop.f32.mrf.mxu0
  %1849 = vmatprep.mubr.f32.mxu0 0.0
  %1850 = vmatmul.mubr.f32.gmra.mxu0 %v1650
  %v1851 = vpop.f32.mrf.mxu0
  %v1852 = vadd.f32 %v1683, %v1851
  %v1853 = vpop.f32.mrf.mxu0
  %1854 = vmatprep.mubr.f32.mxu0 0.0
  %1855 = vmatmul.mubr.f32.gmra.mxu0 %v1651
  %v1856 = vpop.f32.mrf.mxu0
  %v1857 = vadd.f32 %v1683, %v1856
  %v1858 = vpop.f32.mrf.mxu0
  %1859 = vmatprep.mubr.f32.mxu0 0.0
  %1860 = vmatmul.mubr.f32.gmra.mxu0 %v1652
  %v1861 = vpop.f32.mrf.mxu0
  %v1862 = vadd.f32 %v1683, %v1861
  %v1863 = vpop.f32.mrf.mxu0
  %1864 = vmatprep.mubr.f32.mxu0 0.0
  %1865 = vmatmul.mubr.f32.gmra.mxu0 %v1653
  %v1866 = vpop.f32.mrf.mxu0
  %v1867 = vadd.f32 %v1683, %v1866
  %v1868 = vpop.f32.mrf.mxu0
  %1869 = vmatprep.mubr.f32.mxu0 0.0
  %1870 = vmatmul.mubr.f32.gmra.mxu0 %v1654
  %v1871 = vpop.f32.mrf.mxu0
  %v1872 = vadd.f32 %v1683, %v1871
  %v1873 = vpop.f32.mrf.mxu0
  %1874 = vmatprep.mubr.f32.mxu0 0.0
  %1875 = vmatmul.mubr.f32.gmra.mxu0 %v1655
  %v1876 = vpop.f32.mrf.mxu0
  %v1877 = vadd.f32 %v1683, %v1876
  %v1878 = vpop.f32.mrf.mxu0
  %1879 = vmatprep.mubr.f32.mxu0 0.0
  %1880 = vmatmul.mubr.f32.gmra.mxu0 %v1656
  %v1881 = vpop.f32.mrf.mxu0
  %v1882 = vadd.f32 %v1683, %v1881
  %v1883 = vpop.f32.mrf.mxu0
  %1884 = vmatprep.mubr.f32.mxu0 0.0
  %1885 = vmatmul.mubr.f32.gmra.mxu0 %v1657
  %v1886 = vpop.f32.mrf.mxu0
  %v1887 = vadd.f32 %v1683, %v1886
  %v1888 = vpop.f32.mrf.mxu0
  %1889 = vmatprep.mubr.f32.mxu0 0.0
  %1890 = vmatmul.mubr.f32.gmra.mxu0 %v1658
  %v1891 = vpop.f32.mrf.mxu0
  %v1892 = vadd.f32 %v1683, %v1891
  %v1893 = vpop.f32.mrf.mxu0
  %1894 = vmatprep.mubr.f32.mxu0 0.0
  %1895 = vmatmul.mubr.f32.gmra.mxu0 %v1659
  %v1896 = vpop.f32.mrf.mxu0
  %v1897 = vadd.f32 %v1683, %v1896
  %v1898 = vpop.f32.mrf.mxu0
  %1899 = vmatprep.mubr.f32.mxu0 0.0
  %1900 = vmatmul.mubr.f32.gmra.mxu0 %v1660
  %v1901 = vpop.f32.mrf.mxu0
  %v1902 = vadd.f32 %v1683, %v1901
  %v1903 = vpop.f32.mrf.mxu0
  %1904 = vmatprep.mubr.f32.mxu0 0.0
  %1905 = vmatmul.mubr.f32.gmra.mxu0 %v1661
  %v1906 = vpop.f32.mrf.mxu0
  %v1907 = vadd.f32 %v1683, %v1906
  %v1908 = vpop.f32.mrf.mxu0
  %1909 = vdwg.mxu0
  %v1910 = vand.u32 %v696, 31
  %v1911 = vand.u32 %v697, 31
  %v1912 = vand.u32 %v698, 31
  %v1913 = vand.u32 %v699, 31
  %v1914 = vand.u32 %v700, 31
  %v1915 = vand.u32 %v701, 31
  %v1916 = vand.u32 %v702, 31
  %v1917 = vand.u32 %v703, 31
  %v1918 = vand.u32 %v704, 31
  %v1919 = vand.u32 %v705, 31
  %v1920 = vand.u32 %v706, 31
  %v1921 = vand.u32 %v707, 31
  %v1922 = vand.u32 %v708, 31
  %v1923 = vand.u32 %v709, 31
  %v1924 = vand.u32 %v710, 31
  %v1925 = vand.u32 %v711, 31
  %v1926 = vand.u32 %v712, 31
  %v1927 = vand.u32 %v713, 31
  %v1928 = vand.u32 %v714, 31
  %v1929 = vand.u32 %v715, 31
  %v1930 = vand.u32 %v716, 31
  %v1931 = vand.u32 %v717, 31
  %v1932 = vand.u32 %v718, 31
  %v1933 = vand.u32 %v719, 31
  %v1934 = vand.u32 %v720, 31
  %v1935 = vand.u32 %v721, 31
  %v1936 = vand.u32 %v722, 31
  %v1937 = vand.u32 %v723, 31
  %v1938 = vand.u32 %v724, 31
  %v1939 = vand.u32 %v725, 31
  %v1940 = vand.u32 %v726, 31
  %v1941 = vand.u32 %v727, 31
  %vm1942 = vcmp.ge.s32.totalorder %v1910, 1
  %vm1943 = vcmp.ge.s32.totalorder %v1911, 1
  %vm1944 = vcmp.ge.s32.totalorder %v1912, 1
  %vm1945 = vcmp.ge.s32.totalorder %v1913, 1
  %vm1946 = vcmp.ge.s32.totalorder %v1914, 1
  %vm1947 = vcmp.ge.s32.totalorder %v1915, 1
  %vm1948 = vcmp.ge.s32.totalorder %v1916, 1
  %vm1949 = vcmp.ge.s32.totalorder %v1917, 1
  %vm1950 = vcmp.ge.s32.totalorder %v1918, 1
  %vm1951 = vcmp.ge.s32.totalorder %v1919, 1
  %vm1952 = vcmp.ge.s32.totalorder %v1920, 1
  %vm1953 = vcmp.ge.s32.totalorder %v1921, 1
  %vm1954 = vcmp.ge.s32.totalorder %v1922, 1
  %vm1955 = vcmp.ge.s32.totalorder %v1923, 1
  %vm1956 = vcmp.ge.s32.totalorder %v1924, 1
  %vm1957 = vcmp.ge.s32.totalorder %v1925, 1
  %vm1958 = vcmp.ge.s32.totalorder %v1926, 1
  %vm1959 = vcmp.ge.s32.totalorder %v1927, 1
  %vm1960 = vcmp.ge.s32.totalorder %v1928, 1
  %vm1961 = vcmp.ge.s32.totalorder %v1929, 1
  %vm1962 = vcmp.ge.s32.totalorder %v1930, 1
  %vm1963 = vcmp.ge.s32.totalorder %v1931, 1
  %vm1964 = vcmp.ge.s32.totalorder %v1932, 1
  %vm1965 = vcmp.ge.s32.totalorder %v1933, 1
  %vm1966 = vcmp.ge.s32.totalorder %v1934, 1
  %vm1967 = vcmp.ge.s32.totalorder %v1935, 1
  %vm1968 = vcmp.ge.s32.totalorder %v1936, 1
  %vm1969 = vcmp.ge.s32.totalorder %v1937, 1
  %vm1970 = vcmp.ge.s32.totalorder %v1938, 1
  %vm1971 = vcmp.ge.s32.totalorder %v1939, 1
  %vm1972 = vcmp.ge.s32.totalorder %v1940, 1
  %vm1973 = vcmp.ge.s32.totalorder %v1941, 1
  %vm1974 = vcmp.le.s32.totalorder %v1910, 25
  %vm1975 = vcmp.le.s32.totalorder %v1911, 25
  %vm1976 = vcmp.le.s32.totalorder %v1912, 25
  %vm1977 = vcmp.le.s32.totalorder %v1913, 25
  %vm1978 = vcmp.le.s32.totalorder %v1914, 25
  %vm1979 = vcmp.le.s32.totalorder %v1915, 25
  %vm1980 = vcmp.le.s32.totalorder %v1916, 25
  %vm1981 = vcmp.le.s32.totalorder %v1917, 25
  %vm1982 = vcmp.le.s32.totalorder %v1918, 25
  %vm1983 = vcmp.le.s32.totalorder %v1919, 25
  %vm1984 = vcmp.le.s32.totalorder %v1920, 25
  %vm1985 = vcmp.le.s32.totalorder %v1921, 25
  %vm1986 = vcmp.le.s32.totalorder %v1922, 25
  %vm1987 = vcmp.le.s32.totalorder %v1923, 25
  %vm1988 = vcmp.le.s32.totalorder %v1924, 25
  %vm1989 = vcmp.le.s32.totalorder %v1925, 25
  %vm1990 = vcmp.le.s32.totalorder %v1926, 25
  %vm1991 = vcmp.le.s32.totalorder %v1927, 25
  %vm1992 = vcmp.le.s32.totalorder %v1928, 25
  %vm1993 = vcmp.le.s32.totalorder %v1929, 25
  %vm1994 = vcmp.le.s32.totalorder %v1930, 25
  %vm1995 = vcmp.le.s32.totalorder %v1931, 25
  %vm1996 = vcmp.le.s32.totalorder %v1932, 25
  %vm1997 = vcmp.le.s32.totalorder %v1933, 25
  %vm1998 = vcmp.le.s32.totalorder %v1934, 25
  %vm1999 = vcmp.le.s32.totalorder %v1935, 25
  %vm2000 = vcmp.le.s32.totalorder %v1936, 25
  %vm2001 = vcmp.le.s32.totalorder %v1937, 25
  %vm2002 = vcmp.le.s32.totalorder %v1938, 25
  %vm2003 = vcmp.le.s32.totalorder %v1939, 25
  %vm2004 = vcmp.le.s32.totalorder %v1940, 25
  %vm2005 = vcmp.le.s32.totalorder %v1941, 25
  %vm2006 = vmand %vm1942, %vm1974
  %vm2007 = vmand %vm1943, %vm1975
  %vm2008 = vmand %vm1944, %vm1976
  %vm2009 = vmand %vm1945, %vm1977
  %vm2010 = vmand %vm1946, %vm1978
  %vm2011 = vmand %vm1947, %vm1979
  %vm2012 = vmand %vm1948, %vm1980
  %vm2013 = vmand %vm1949, %vm1981
  %vm2014 = vmand %vm1950, %vm1982
  %vm2015 = vmand %vm1951, %vm1983
  %vm2016 = vmand %vm1952, %vm1984
  %vm2017 = vmand %vm1953, %vm1985
  %vm2018 = vmand %vm1954, %vm1986
  %vm2019 = vmand %vm1955, %vm1987
  %vm2020 = vmand %vm1956, %vm1988
  %vm2021 = vmand %vm1957, %vm1989
  %vm2022 = vmand %vm1958, %vm1990
  %vm2023 = vmand %vm1959, %vm1991
  %vm2024 = vmand %vm1960, %vm1992
  %vm2025 = vmand %vm1961, %vm1993
  %vm2026 = vmand %vm1962, %vm1994
  %vm2027 = vmand %vm1963, %vm1995
  %vm2028 = vmand %vm1964, %vm1996
  %vm2029 = vmand %vm1965, %vm1997
  %vm2030 = vmand %vm1966, %vm1998
  %vm2031 = vmand %vm1967, %vm1999
  %vm2032 = vmand %vm1968, %vm2000
  %vm2033 = vmand %vm1969, %vm2001
  %vm2034 = vmand %vm1970, %vm2002
  %vm2035 = vmand %vm1971, %vm2003
  %vm2036 = vmand %vm1972, %vm2004
  %vm2037 = vmand %vm1973, %vm2005
  %v2038 = vmul.f32 %v1752, 0.2
  %v2039 = vmul.f32 %v1757, 0.2
  %v2040 = vmul.f32 %v1762, 0.2
  %v2041 = vmul.f32 %v1767, 0.2
  %v2042 = vmul.f32 %v1772, 0.2
  %v2043 = vmul.f32 %v1777, 0.2
  %v2044 = vmul.f32 %v1782, 0.2
  %v2045 = vmul.f32 %v1787, 0.2
  %v2046 = vmul.f32 %v1792, 0.2
  %v2047 = vmul.f32 %v1797, 0.2
  %v2048 = vmul.f32 %v1802, 0.2
  %v2049 = vmul.f32 %v1807, 0.2
  %v2050 = vmul.f32 %v1812, 0.2
  %v2051 = vmul.f32 %v1817, 0.2
  %v2052 = vmul.f32 %v1822, 0.2
  %v2053 = vmul.f32 %v1827, 0.2
  %v2054 = vmul.f32 %v1832, 0.2
  %v2055 = vmul.f32 %v1837, 0.2
  %v2056 = vmul.f32 %v1842, 0.2
  %v2057 = vmul.f32 %v1847, 0.2
  %v2058 = vmul.f32 %v1852, 0.2
  %v2059 = vmul.f32 %v1857, 0.2
  %v2060 = vmul.f32 %v1862, 0.2
  %v2061 = vmul.f32 %v1867, 0.2
  %v2062 = vmul.f32 %v1872, 0.2
  %v2063 = vmul.f32 %v1877, 0.2
  %v2064 = vmul.f32 %v1882, 0.2
  %v2065 = vmul.f32 %v1887, 0.2
  %v2066 = vmul.f32 %v1892, 0.2
  %v2067 = vmul.f32 %v1897, 0.2
  %v2068 = vmul.f32 %v1902, 0.2
  %v2069 = vmul.f32 %v1907, 0.2
  %v2070 = vmax.f32 %v1752, %v2038
  %v2071 = vmax.f32 %v1757, %v2039
  %v2072 = vmax.f32 %v1762, %v2040
  %v2073 = vmax.f32 %v1767, %v2041
  %v2074 = vmax.f32 %v1772, %v2042
  %v2075 = vmax.f32 %v1777, %v2043
  %v2076 = vmax.f32 %v1782, %v2044
  %v2077 = vmax.f32 %v1787, %v2045
  %v2078 = vmax.f32 %v1792, %v2046
  %v2079 = vmax.f32 %v1797, %v2047
  %v2080 = vmax.f32 %v1802, %v2048
  %v2081 = vmax.f32 %v1807, %v2049
  %v2082 = vmax.f32 %v1812, %v2050
  %v2083 = vmax.f32 %v1817, %v2051
  %v2084 = vmax.f32 %v1822, %v2052
  %v2085 = vmax.f32 %v1827, %v2053
  %v2086 = vmax.f32 %v1832, %v2054
  %v2087 = vmax.f32 %v1837, %v2055
  %v2088 = vmax.f32 %v1842, %v2056
  %v2089 = vmax.f32 %v1847, %v2057
  %v2090 = vmax.f32 %v1852, %v2058
  %v2091 = vmax.f32 %v1857, %v2059
  %v2092 = vmax.f32 %v1862, %v2060
  %v2093 = vmax.f32 %v1867, %v2061
  %v2094 = vmax.f32 %v1872, %v2062
  %v2095 = vmax.f32 %v1877, %v2063
  %v2096 = vmax.f32 %v1882, %v2064
  %v2097 = vmax.f32 %v1887, %v2065
  %v2098 = vmax.f32 %v1892, %v2066
  %v2099 = vmax.f32 %v1897, %v2067
  %v2100 = vmax.f32 %v1902, %v2068
  %v2101 = vmax.f32 %v1907, %v2069
  %v2102 = vsel %vm2006, 1, 0
  %v2103 = vsel %vm2007, 1, 0
  %v2104 = vsel %vm2008, 1, 0
  %v2105 = vsel %vm2009, 1, 0
  %v2106 = vsel %vm2010, 1, 0
  %v2107 = vsel %vm2011, 1, 0
  %v2108 = vsel %vm2012, 1, 0
  %v2109 = vsel %vm2013, 1, 0
  %v2110 = vsel %vm2014, 1, 0
  %v2111 = vsel %vm2015, 1, 0
  %v2112 = vsel %vm2016, 1, 0
  %v2113 = vsel %vm2017, 1, 0
  %v2114 = vsel %vm2018, 1, 0
  %v2115 = vsel %vm2019, 1, 0
  %v2116 = vsel %vm2020, 1, 0
  %v2117 = vsel %vm2021, 1, 0
  %v2118 = vsel %vm2022, 1, 0
  %v2119 = vsel %vm2023, 1, 0
  %v2120 = vsel %vm2024, 1, 0
  %v2121 = vsel %vm2025, 1, 0
  %v2122 = vsel %vm2026, 1, 0
  %v2123 = vsel %vm2027, 1, 0
  %v2124 = vsel %vm2028, 1, 0
  %v2125 = vsel %vm2029, 1, 0
  %v2126 = vsel %vm2030, 1, 0
  %v2127 = vsel %vm2031, 1, 0
  %v2128 = vsel %vm2032, 1, 0
  %v2129 = vsel %vm2033, 1, 0
  %v2130 = vsel %vm2034, 1, 0
  %v2131 = vsel %vm2035, 1, 0
  %v2132 = vsel %vm2036, 1, 0
  %v2133 = vsel %vm2037, 1, 0
  %vm2134 = vcmp.eq.s32.totalorder %v2102, 1
  %vm2135 = vcmp.eq.s32.totalorder %v2103, 1
  %vm2136 = vcmp.eq.s32.totalorder %v2104, 1
  %vm2137 = vcmp.eq.s32.totalorder %v2105, 1
  %vm2138 = vcmp.eq.s32.totalorder %v2106, 1
  %vm2139 = vcmp.eq.s32.totalorder %v2107, 1
  %vm2140 = vcmp.eq.s32.totalorder %v2108, 1
  %vm2141 = vcmp.eq.s32.totalorder %v2109, 1
  %vm2142 = vcmp.eq.s32.totalorder %v2110, 1
  %vm2143 = vcmp.eq.s32.totalorder %v2111, 1
  %vm2144 = vcmp.eq.s32.totalorder %v2112, 1
  %vm2145 = vcmp.eq.s32.totalorder %v2113, 1
  %vm2146 = vcmp.eq.s32.totalorder %v2114, 1
  %vm2147 = vcmp.eq.s32.totalorder %v2115, 1
  %vm2148 = vcmp.eq.s32.totalorder %v2116, 1
  %vm2149 = vcmp.eq.s32.totalorder %v2117, 1
  %vm2150 = vcmp.eq.s32.totalorder %v2118, 1
  %vm2151 = vcmp.eq.s32.totalorder %v2119, 1
  %vm2152 = vcmp.eq.s32.totalorder %v2120, 1
  %vm2153 = vcmp.eq.s32.totalorder %v2121, 1
  %vm2154 = vcmp.eq.s32.totalorder %v2122, 1
  %vm2155 = vcmp.eq.s32.totalorder %v2123, 1
  %vm2156 = vcmp.eq.s32.totalorder %v2124, 1
  %vm2157 = vcmp.eq.s32.totalorder %v2125, 1
  %vm2158 = vcmp.eq.s32.totalorder %v2126, 1
  %vm2159 = vcmp.eq.s32.totalorder %v2127, 1
  %vm2160 = vcmp.eq.s32.totalorder %v2128, 1
  %vm2161 = vcmp.eq.s32.totalorder %v2129, 1
  %vm2162 = vcmp.eq.s32.totalorder %v2130, 1
  %vm2163 = vcmp.eq.s32.totalorder %v2131, 1
  %vm2164 = vcmp.eq.s32.totalorder %v2132, 1
  %vm2165 = vcmp.eq.s32.totalorder %v2133, 1
  %v2166 = vsel %vm2134, %v2070, 0.0
  %v2167 = vsel %vm2135, %v2071, 0.0
  %v2168 = vsel %vm2136, %v2072, 0.0
  %v2169 = vsel %vm2137, %v2073, 0.0
  %v2170 = vsel %vm2138, %v2074, 0.0
  %v2171 = vsel %vm2139, %v2075, 0.0
  %v2172 = vsel %vm2140, %v2076, 0.0
  %v2173 = vsel %vm2141, %v2077, 0.0
  %v2174 = vsel %vm2142, %v2078, 0.0
  %v2175 = vsel %vm2143, %v2079, 0.0
  %v2176 = vsel %vm2144, %v2080, 0.0
  %v2177 = vsel %vm2145, %v2081, 0.0
  %v2178 = vsel %vm2146, %v2082, 0.0
  %v2179 = vsel %vm2147, %v2083, 0.0
  %v2180 = vsel %vm2148, %v2084, 0.0
  %v2181 = vsel %vm2149, %v2085, 0.0
  %v2182 = vsel %vm2150, %v2086, 0.0
  %v2183 = vsel %vm2151, %v2087, 0.0
  %v2184 = vsel %vm2152, %v2088, 0.0
  %v2185 = vsel %vm2153, %v2089, 0.0
  %v2186 = vsel %vm2154, %v2090, 0.0
  %v2187 = vsel %vm2155, %v2091, 0.0
  %v2188 = vsel %vm2156, %v2092, 0.0
  %v2189 = vsel %vm2157, %v2093, 0.0
  %v2190 = vsel %vm2158, %v2094, 0.0
  %v2191 = vsel %vm2159, %v2095, 0.0
  %v2192 = vsel %vm2160, %v2096, 0.0
  %v2193 = vsel %vm2161, %v2097, 0.0
  %v2194 = vsel %vm2162, %v2098, 0.0
  %v2195 = vsel %vm2163, %v2099, 0.0
  %v2196 = vsel %vm2164, %v2100, 0.0
  %v2197 = vsel %vm2165, %v2101, 0.0
  %2198 = vst [vmem:[#allocation3 + $0x8] sm:$0xff] %v2166
  %2199 = vst [vmem:[#allocation3 + $0x10] sm:$0xff] %v2167
  %2200 = vst [vmem:[#allocation3 + $0x18] sm:$0xff] %v2168
  %2201 = vst [vmem:[#allocation3 + $0x20] sm:$0xff] %v2169
  %2202 = vst [vmem:[#allocation3 + $0x28] sm:$0xff] %v2170
  %2203 = vst [vmem:[#allocation3 + $0x30] sm:$0xff] %v2171
  %2204 = vst [vmem:[#allocation3 + $0x38] sm:$0xff] %v2172
  %2205 = vst [vmem:[#allocation3 + $0x40] sm:$0xff] %v2173
  %2206 = vst [vmem:[#allocation3 + $0x48] sm:$0xff] %v2174
  %2207 = vst [vmem:[#allocation3 + $0x50] sm:$0xff] %v2175
  %2208 = vst [vmem:[#allocation3 + $0x58] sm:$0xff] %v2176
  %2209 = vst [vmem:[#allocation3 + $0x60] sm:$0xff] %v2177
  %2210 = vst [vmem:[#allocation3 + $0x68] sm:$0xff] %v2178
  %2211 = vst [vmem:[#allocation3 + $0x70] sm:$0xff] %v2179
  %2212 = vst [vmem:[#allocation3 + $0x78] sm:$0xff] %v2180
  %2213 = vst [vmem:[#allocation3 + $0x80] sm:$0xff] %v2181
  %2214 = vst [vmem:[#allocation3 + $0x88] sm:$0xff] %v2182
  %2215 = vst [vmem:[#allocation3 + $0x90] sm:$0xff] %v2183
  %2216 = vst [vmem:[#allocation3 + $0x98] sm:$0xff] %v2184
  %2217 = vst [vmem:[#allocation3 + $0xa0] sm:$0xff] %v2185
  %2218 = vst [vmem:[#allocation3 + $0xa8] sm:$0xff] %v2186
  %2219 = vst [vmem:[#allocation3 + $0xb0] sm:$0xff] %v2187
  %2220 = vst [vmem:[#allocation3 + $0xb8] sm:$0xff] %v2188
  %2221 = vst [vmem:[#allocation3 + $0xc0] sm:$0xff] %v2189
  %2222 = vst [vmem:[#allocation3 + $0xc8] sm:$0xff] %v2190
  %2223 = vst [vmem:[#allocation3 + $0xd0] sm:$0xff] %v2191
  %2224 = vst [vmem:[#allocation3 + $0xd8] sm:$0xff] %v2192
  %2225 = vst [vmem:[#allocation3 + $0xe0] sm:$0xff] %v2193
  %2226 = vst [vmem:[#allocation3 + $0xe8] sm:$0xff] %v2194
  %2227 = vst [vmem:[#allocation3 + $0xf0] sm:$0xff] %v2195
  %2228 = vst [vmem:[#allocation3 + $0xf8] sm:$0xff] %v2196
  %2229 = vst [vmem:[#allocation3 + $0x100] sm:$0xff] %v2197
  %s2230 = scalar_lea.vmem [#allocation3], 6
  %v2231 = vld [vmem:[%s2230] ss:$2 sm:$0xff]
  %s2232 = scalar_lea.vmem [#allocation3], 22
  %v2233 = vld [vmem:[%s2232] ss:$2 sm:$0xff]
  %s2234 = scalar_lea.vmem [#allocation3], 38
  %v2235 = vld [vmem:[%s2234] ss:$2 sm:$0xff]
  %s2236 = scalar_lea.vmem [#allocation3], 54
  %v2237 = vld [vmem:[%s2236] ss:$2 sm:$0xff]
  %s2238 = scalar_lea.vmem [#allocation3], 70
  %v2239 = vld [vmem:[%s2238] ss:$2 sm:$0xff]
  %s2240 = scalar_lea.vmem [#allocation3], 86
  %v2241 = vld [vmem:[%s2240] ss:$2 sm:$0xff]
  %s2242 = scalar_lea.vmem [#allocation3], 102
  %v2243 = vld [vmem:[%s2242] ss:$2 sm:$0xff]
  %s2244 = scalar_lea.vmem [#allocation3], 118
  %v2245 = vld [vmem:[%s2244] ss:$2 sm:$0xff]
  %s2246 = scalar_lea.vmem [#allocation3], 134
  %v2247 = vld [vmem:[%s2246] ss:$2 sm:$0xff]
  %s2248 = scalar_lea.vmem [#allocation3], 150
  %v2249 = vld [vmem:[%s2248] ss:$2 sm:$0xff]
  %s2250 = scalar_lea.vmem [#allocation3], 166
  %v2251 = vld [vmem:[%s2250] ss:$2 sm:$0xff]
  %s2252 = scalar_lea.vmem [#allocation3], 182
  %v2253 = vld [vmem:[%s2252] ss:$2 sm:$0xff]
  %s2254 = scalar_lea.vmem [#allocation3], 198
  %v2255 = vld [vmem:[%s2254] ss:$2 sm:$0xff]
  %s2256 = scalar_lea.vmem [#allocation3], 214
  %v2257 = vld [vmem:[%s2256] ss:$2 sm:$0xff]
  %s2258 = scalar_lea.vmem [#allocation3], 230
  %v2259 = vld [vmem:[%s2258] ss:$2 sm:$0xff]
  %s2260 = scalar_lea.vmem [#allocation3], 246
  %v2261 = vld [vmem:[%s2260] ss:$2 sm:$0xff]
  %s2262 = scalar_lea.vmem [#allocation3], 7
  %v2263 = vld [vmem:[%s2262] ss:$2 sm:$0xff]
  %s2264 = scalar_lea.vmem [#allocation3], 23
  %v2265 = vld [vmem:[%s2264] ss:$2 sm:$0xff]
  %s2266 = scalar_lea.vmem [#allocation3], 39
  %v2267 = vld [vmem:[%s2266] ss:$2 sm:$0xff]
  %s2268 = scalar_lea.vmem [#allocation3], 55
  %v2269 = vld [vmem:[%s2268] ss:$2 sm:$0xff]
  %s2270 = scalar_lea.vmem [#allocation3], 71
  %v2271 = vld [vmem:[%s2270] ss:$2 sm:$0xff]
  %s2272 = scalar_lea.vmem [#allocation3], 87
  %v2273 = vld [vmem:[%s2272] ss:$2 sm:$0xff]
  %s2274 = scalar_lea.vmem [#allocation3], 103
  %v2275 = vld [vmem:[%s2274] ss:$2 sm:$0xff]
  %s2276 = scalar_lea.vmem [#allocation3], 119
  %v2277 = vld [vmem:[%s2276] ss:$2 sm:$0xff]
  %s2278 = scalar_lea.vmem [#allocation3], 135
  %v2279 = vld [vmem:[%s2278] ss:$2 sm:$0xff]
  %s2280 = scalar_lea.vmem [#allocation3], 151
  %v2281 = vld [vmem:[%s2280] ss:$2 sm:$0xff]
  %s2282 = scalar_lea.vmem [#allocation3], 167
  %v2283 = vld [vmem:[%s2282] ss:$2 sm:$0xff]
  %s2284 = scalar_lea.vmem [#allocation3], 183
  %v2285 = vld [vmem:[%s2284] ss:$2 sm:$0xff]
  %s2286 = scalar_lea.vmem [#allocation3], 199
  %v2287 = vld [vmem:[%s2286] ss:$2 sm:$0xff]
  %s2288 = scalar_lea.vmem [#allocation3], 215
  %v2289 = vld [vmem:[%s2288] ss:$2 sm:$0xff]
  %s2290 = scalar_lea.vmem [#allocation3], 231
  %v2291 = vld [vmem:[%s2290] ss:$2 sm:$0xff]
  %s2292 = scalar_lea.vmem [#allocation3], 247
  %v2293 = vld [vmem:[%s2292] ss:$2 sm:$0xff]
  %s2294 = scalar_lea.vmem [#allocation3], 8
  %v2295 = vld [vmem:[%s2294] ss:$2 sm:$0xff]
  %s2296 = scalar_lea.vmem [#allocation3], 24
  %v2297 = vld [vmem:[%s2296] ss:$2 sm:$0xff]
  %s2298 = scalar_lea.vmem [#allocation3], 40
  %v2299 = vld [vmem:[%s2298] ss:$2 sm:$0xff]
  %s2300 = scalar_lea.vmem [#allocation3], 56
  %v2301 = vld [vmem:[%s2300] ss:$2 sm:$0xff]
  %s2302 = scalar_lea.vmem [#allocation3], 72
  %v2303 = vld [vmem:[%s2302] ss:$2 sm:$0xff]
  %s2304 = scalar_lea.vmem [#allocation3], 88
  %v2305 = vld [vmem:[%s2304] ss:$2 sm:$0xff]
  %s2306 = scalar_lea.vmem [#allocation3], 104
  %v2307 = vld [vmem:[%s2306] ss:$2 sm:$0xff]
  %s2308 = scalar_lea.vmem [#allocation3], 120
  %v2309 = vld [vmem:[%s2308] ss:$2 sm:$0xff]
  %s2310 = scalar_lea.vmem [#allocation3], 136
  %v2311 = vld [vmem:[%s2310] ss:$2 sm:$0xff]
  %s2312 = scalar_lea.vmem [#allocation3], 152
  %v2313 = vld [vmem:[%s2312] ss:$2 sm:$0xff]
  %s2314 = scalar_lea.vmem [#allocation3], 168
  %v2315 = vld [vmem:[%s2314] ss:$2 sm:$0xff]
  %s2316 = scalar_lea.vmem [#allocation3], 184
  %v2317 = vld [vmem:[%s2316] ss:$2 sm:$0xff]
  %s2318 = scalar_lea.vmem [#allocation3], 200
  %v2319 = vld [vmem:[%s2318] ss:$2 sm:$0xff]
  %s2320 = scalar_lea.vmem [#allocation3], 216
  %v2321 = vld [vmem:[%s2320] ss:$2 sm:$0xff]
  %s2322 = scalar_lea.vmem [#allocation3], 232
  %v2323 = vld [vmem:[%s2322] ss:$2 sm:$0xff]
  %s2324 = scalar_lea.vmem [#allocation3], 248
  %v2325 = vld [vmem:[%s2324] ss:$2 sm:$0xff]
  %vm2326 = vcmp.lt.s32.totalorder %v44, 64
  %v2327 = vsel %vm2326, 1, 0
  %vm2328 = vcmp.eq.s32.totalorder %v2327, 1
  %v2329 = vsel %vm2328, %v2263, %v2295
  %v2330 = vsel %vm2328, %v2265, %v2297
  %v2331 = vsel %vm2328, %v2267, %v2299
  %v2332 = vsel %vm2328, %v2269, %v2301
  %v2333 = vsel %vm2328, %v2271, %v2303
  %v2334 = vsel %vm2328, %v2273, %v2305
  %v2335 = vsel %vm2328, %v2275, %v2307
  %v2336 = vsel %vm2328, %v2277, %v2309
  %v2337 = vsel %vm2328, %v2279, %v2311
  %v2338 = vsel %vm2328, %v2281, %v2313
  %v2339 = vsel %vm2328, %v2283, %v2315
  %v2340 = vsel %vm2328, %v2285, %v2317
  %v2341 = vsel %vm2328, %v2287, %v2319
  %v2342 = vsel %vm2328, %v2289, %v2321
  %v2343 = vsel %vm2328, %v2291, %v2323
  %v2344 = vsel %vm2328, %v2293, %v2325
  %v2345 = vsel %vm1595, %v2231, %v2329
  %v2346 = vsel %vm1595, %v2233, %v2330
  %v2347 = vsel %vm1595, %v2235, %v2331
  %v2348 = vsel %vm1595, %v2237, %v2332
  %v2349 = vsel %vm1595, %v2239, %v2333
  %v2350 = vsel %vm1595, %v2241, %v2334
  %v2351 = vsel %vm1595, %v2243, %v2335
  %v2352 = vsel %vm1595, %v2245, %v2336
  %v2353 = vsel %vm1595, %v2247, %v2337
  %v2354 = vsel %vm1595, %v2249, %v2338
  %v2355 = vsel %vm1595, %v2251, %v2339
  %v2356 = vsel %vm1595, %v2253, %v2340
  %v2357 = vsel %vm1595, %v2255, %v2341
  %v2358 = vsel %vm1595, %v2257, %v2342
  %v2359 = vsel %vm1595, %v2259, %v2343
  %v2360 = vsel %vm1595, %v2261, %v2344
  %v2361 = vld [vmem:[%s5] sm:$0xff]
  %v2362 = vld [vmem:[%s5 + $0x8] sm:$0xff]
  %v2363 = vld [vmem:[%s5 + $0x10] sm:$0xff]
  %v2364 = vld [vmem:[%s5 + $0x18] sm:$0xff]
  %v2365 = vld [vmem:[%s5 + $0x20] sm:$0xff]
  %v2366 = vld [vmem:[%s5 + $0x28] sm:$0xff]
  %v2367 = vld [vmem:[%s5 + $0x30] sm:$0xff]
  %v2368 = vld [vmem:[%s5 + $0x38] sm:$0xff]
  %v2369 = vld [vmem:[%s5 + $0x40] sm:$0xff]
  %v2370 = vld [vmem:[%s5 + $0x48] sm:$0xff]
  %v2371 = vld [vmem:[%s5 + $0x50] sm:$0xff]
  %v2372 = vld [vmem:[%s5 + $0x58] sm:$0xff]
  %v2373 = vld [vmem:[%s5 + $0x60] sm:$0xff]
  %v2374 = vld [vmem:[%s5 + $0x68] sm:$0xff]
  %v2375 = vld [vmem:[%s5 + $0x70] sm:$0xff]
  %v2376 = vld [vmem:[%s5 + $0x78] sm:$0xff]
  %v2377 = vld [vmem:[%s6] sm:$0x1]
  %v2379 = vlaneseq
  %v2380 = vshrl.u32 %v2379, 7
  %v2381 = vsub.s32 0, %v2380
  %v2382 = vrot.slane %v2377, %v2381
  %2384 = vmatprep.subr.mxu0 0.0
  %2385 = vmatpush1.msra.mxu0 %v2376
  %2386 = vmatprep.subr.mxu0 0.0
  %2387 = vmatpush1.msra.mxu0 %v2375
  %2388 = vmatprep.subr.mxu0 0.0
  %2389 = vmatpush1.msra.mxu0 %v2374
  %2390 = vmatprep.subr.mxu0 0.0
  %2391 = vmatpush1.msra.mxu0 %v2373
  %2392 = vmatprep.subr.mxu0 0.0
  %2393 = vmatpush1.msra.mxu0 %v2372
  %2394 = vmatprep.subr.mxu0 0.0
  %2395 = vmatpush1.msra.mxu0 %v2371
  %2396 = vmatprep.subr.mxu0 0.0
  %2397 = vmatpush1.msra.mxu0 %v2370
  %2398 = vmatprep.subr.mxu0 0.0
  %2399 = vmatpush1.msra.mxu0 %v2369
  %2400 = vmatprep.subr.mxu0 0.0
  %2401 = vmatpush1.msra.mxu0 %v2368
  %2402 = vmatprep.subr.mxu0 0.0
  %2403 = vmatpush1.msra.mxu0 %v2367
  %2404 = vmatprep.subr.mxu0 0.0
  %2405 = vmatpush1.msra.mxu0 %v2366
  %2406 = vmatprep.subr.mxu0 0.0
  %2407 = vmatpush1.msra.mxu0 %v2365
  %2408 = vmatprep.subr.mxu0 0.0
  %2409 = vmatpush1.msra.mxu0 %v2364
  %2410 = vmatprep.subr.mxu0 0.0
  %2411 = vmatpush1.msra.mxu0 %v2363
  %2412 = vmatprep.subr.mxu0 0.0
  %2413 = vmatpush1.msra.mxu0 %v2362
  %2414 = vmatprep.subr.mxu0 0.0
  %2415 = vmatpush1.msra.mxu0 %v2361
  %2416 = vmatprep.subr.mxu0 0.0
  %2417 = vmatpush2.msra.mxu0 0.0
  %2418 = vmatprep.subr.mxu0 0.0
  %2419 = vmatpush2.msra.mxu0 0.0
  %2420 = vmatprep.subr.mxu0 0.0
  %2421 = vmatpush2.msra.mxu0 0.0
  %2422 = vmatprep.subr.mxu0 0.0
  %2423 = vmatpush2.msra.mxu0 0.0
  %2424 = vmatprep.subr.mxu0 0.0
  %2425 = vmatpush2.msra.mxu0 0.0
  %2426 = vmatprep.subr.mxu0 0.0
  %2427 = vmatpush2.msra.mxu0 0.0
  %2428 = vmatprep.subr.mxu0 0.0
  %2429 = vmatpush2.msra.mxu0 0.0
  %2430 = vmatprep.subr.mxu0 0.0
  %2431 = vmatpush2.msra.mxu0 0.0
  %2432 = vmatprep.subr.mxu0 0.0
  %2433 = vmatpush2.msra.mxu0 0.0
  %2434 = vmatprep.subr.mxu0 0.0
  %2435 = vmatpush2.msra.mxu0 0.0
  %2436 = vmatprep.subr.mxu0 0.0
  %2437 = vmatpush2.msra.mxu0 0.0
  %2438 = vmatprep.subr.mxu0 0.0
  %2439 = vmatpush2.msra.mxu0 0.0
  %2440 = vmatprep.subr.mxu0 0.0
  %2441 = vmatpush2.msra.mxu0 0.0
  %2442 = vmatprep.subr.mxu0 0.0
  %2443 = vmatpush2.msra.mxu0 0.0
  %2444 = vmatprep.subr.mxu0 0.0
  %2445 = vmatpush2.msra.mxu0 0.0
  %2446 = vmatprep.subr.mxu0 0.0
  %2447 = vmatpush2.msra.mxu0 0.0
  %2448 = vmatprep.mubr.f32.mxu0 0.0
  %2449 = vmatmul.mubr.f32.gmra.mxu0 %v2345
  %v2450 = vpop.f32.mrf.mxu0
  %v2451 = vadd.f32 %v2382, %v2450
  %v2452 = vpop.f32.mrf.mxu0
  %2453 = vmatprep.mubr.f32.mxu0 0.0
  %2454 = vmatmul.mubr.f32.gmra.mxu0 %v2346
  %v2455 = vpop.f32.mrf.mxu0
  %v2456 = vadd.f32 %v2382, %v2455
  %v2457 = vpop.f32.mrf.mxu0
  %2458 = vmatprep.mubr.f32.mxu0 0.0
  %2459 = vmatmul.mubr.f32.gmra.mxu0 %v2347
  %v2460 = vpop.f32.mrf.mxu0
  %v2461 = vadd.f32 %v2382, %v2460
  %v2462 = vpop.f32.mrf.mxu0
  %2463 = vmatprep.mubr.f32.mxu0 0.0
  %2464 = vmatmul.mubr.f32.gmra.mxu0 %v2348
  %v2465 = vpop.f32.mrf.mxu0
  %v2466 = vadd.f32 %v2382, %v2465
  %v2467 = vpop.f32.mrf.mxu0
  %2468 = vmatprep.mubr.f32.mxu0 0.0
  %2469 = vmatmul.mubr.f32.gmra.mxu0 %v2349
  %v2470 = vpop.f32.mrf.mxu0
  %v2471 = vadd.f32 %v2382, %v2470
  %v2472 = vpop.f32.mrf.mxu0
  %2473 = vmatprep.mubr.f32.mxu0 0.0
  %2474 = vmatmul.mubr.f32.gmra.mxu0 %v2350
  %v2475 = vpop.f32.mrf.mxu0
  %v2476 = vadd.f32 %v2382, %v2475
  %v2477 = vpop.f32.mrf.mxu0
  %2478 = vmatprep.mubr.f32.mxu0 0.0
  %2479 = vmatmul.mubr.f32.gmra.mxu0 %v2351
  %v2480 = vpop.f32.mrf.mxu0
  %v2481 = vadd.f32 %v2382, %v2480
  %v2482 = vpop.f32.mrf.mxu0
  %2483 = vmatprep.mubr.f32.mxu0 0.0
  %2484 = vmatmul.mubr.f32.gmra.mxu0 %v2352
  %v2485 = vpop.f32.mrf.mxu0
  %v2486 = vadd.f32 %v2382, %v2485
  %v2487 = vpop.f32.mrf.mxu0
  %2488 = vmatprep.mubr.f32.mxu0 0.0
  %2489 = vmatmul.mubr.f32.gmra.mxu0 %v2353
  %v2490 = vpop.f32.mrf.mxu0
  %v2491 = vadd.f32 %v2382, %v2490
  %v2492 = vpop.f32.mrf.mxu0
  %2493 = vmatprep.mubr.f32.mxu0 0.0
  %2494 = vmatmul.mubr.f32.gmra.mxu0 %v2354
  %v2495 = vpop.f32.mrf.mxu0
  %v2496 = vadd.f32 %v2382, %v2495
  %v2497 = vpop.f32.mrf.mxu0
  %2498 = vmatprep.mubr.f32.mxu0 0.0
  %2499 = vmatmul.mubr.f32.gmra.mxu0 %v2355
  %v2500 = vpop.f32.mrf.mxu0
  %v2501 = vadd.f32 %v2382, %v2500
  %v2502 = vpop.f32.mrf.mxu0
  %2503 = vmatprep.mubr.f32.mxu0 0.0
  %2504 = vmatmul.mubr.f32.gmra.mxu0 %v2356
  %v2505 = vpop.f32.mrf.mxu0
  %v2506 = vadd.f32 %v2382, %v2505
  %v2507 = vpop.f32.mrf.mxu0
  %2508 = vmatprep.mubr.f32.mxu0 0.0
  %2509 = vmatmul.mubr.f32.gmra.mxu0 %v2357
  %v2510 = vpop.f32.mrf.mxu0
  %v2511 = vadd.f32 %v2382, %v2510
  %v2512 = vpop.f32.mrf.mxu0
  %2513 = vmatprep.mubr.f32.mxu0 0.0
  %2514 = vmatmul.mubr.f32.gmra.mxu0 %v2358
  %v2515 = vpop.f32.mrf.mxu0
  %v2516 = vadd.f32 %v2382, %v2515
  %v2517 = vpop.f32.mrf.mxu0
  %2518 = vmatprep.mubr.f32.mxu0 0.0
  %2519 = vmatmul.mubr.f32.gmra.mxu0 %v2359
  %v2520 = vpop.f32.mrf.mxu0
  %v2521 = vadd.f32 %v2382, %v2520
  %v2522 = vpop.f32.mrf.mxu0
  %2523 = vmatprep.mubr.f32.mxu0 0.0
  %2524 = vmatmul.mubr.f32.gmra.mxu0 %v2360
  %v2525 = vpop.f32.mrf.mxu0
  %v2526 = vadd.f32 %v2382, %v2525
  %v2527 = vpop.f32.mrf.mxu0
  %2528 = vdwg.mxu0
  %v2529 = vand.u32 %v696, 15
  %v2530 = vand.u32 %v697, 15
  %v2531 = vand.u32 %v698, 15
  %v2532 = vand.u32 %v699, 15
  %v2533 = vand.u32 %v700, 15
  %v2534 = vand.u32 %v701, 15
  %v2535 = vand.u32 %v702, 15
  %v2536 = vand.u32 %v703, 15
  %v2537 = vand.u32 %v704, 15
  %v2538 = vand.u32 %v705, 15
  %v2539 = vand.u32 %v706, 15
  %v2540 = vand.u32 %v707, 15
  %v2541 = vand.u32 %v708, 15
  %v2542 = vand.u32 %v709, 15
  %v2543 = vand.u32 %v710, 15
  %v2544 = vand.u32 %v711, 15
  %vm2545 = vcmp.ge.s32.totalorder %v2529, 1
  %vm2546 = vcmp.ge.s32.totalorder %v2530, 1
  %vm2547 = vcmp.ge.s32.totalorder %v2531, 1
  %vm2548 = vcmp.ge.s32.totalorder %v2532, 1
  %vm2549 = vcmp.ge.s32.totalorder %v2533, 1
  %vm2550 = vcmp.ge.s32.totalorder %v2534, 1
  %vm2551 = vcmp.ge.s32.totalorder %v2535, 1
  %vm2552 = vcmp.ge.s32.totalorder %v2536, 1
  %vm2553 = vcmp.ge.s32.totalorder %v2537, 1
  %vm2554 = vcmp.ge.s32.totalorder %v2538, 1
  %vm2555 = vcmp.ge.s32.totalorder %v2539, 1
  %vm2556 = vcmp.ge.s32.totalorder %v2540, 1
  %vm2557 = vcmp.ge.s32.totalorder %v2541, 1
  %vm2558 = vcmp.ge.s32.totalorder %v2542, 1
  %vm2559 = vcmp.ge.s32.totalorder %v2543, 1
  %vm2560 = vcmp.ge.s32.totalorder %v2544, 1
  %vm2561 = vcmp.le.s32.totalorder %v2529, 13
  %vm2562 = vcmp.le.s32.totalorder %v2530, 13
  %vm2563 = vcmp.le.s32.totalorder %v2531, 13
  %vm2564 = vcmp.le.s32.totalorder %v2532, 13
  %vm2565 = vcmp.le.s32.totalorder %v2533, 13
  %vm2566 = vcmp.le.s32.totalorder %v2534, 13
  %vm2567 = vcmp.le.s32.totalorder %v2535, 13
  %vm2568 = vcmp.le.s32.totalorder %v2536, 13
  %vm2569 = vcmp.le.s32.totalorder %v2537, 13
  %vm2570 = vcmp.le.s32.totalorder %v2538, 13
  %vm2571 = vcmp.le.s32.totalorder %v2539, 13
  %vm2572 = vcmp.le.s32.totalorder %v2540, 13
  %vm2573 = vcmp.le.s32.totalorder %v2541, 13
  %vm2574 = vcmp.le.s32.totalorder %v2542, 13
  %vm2575 = vcmp.le.s32.totalorder %v2543, 13
  %vm2576 = vcmp.le.s32.totalorder %v2544, 13
  %vm2577 = vmand %vm2545, %vm2561
  %vm2578 = vmand %vm2546, %vm2562
  %vm2579 = vmand %vm2547, %vm2563
  %vm2580 = vmand %vm2548, %vm2564
  %vm2581 = vmand %vm2549, %vm2565
  %vm2582 = vmand %vm2550, %vm2566
  %vm2583 = vmand %vm2551, %vm2567
  %vm2584 = vmand %vm2552, %vm2568
  %vm2585 = vmand %vm2553, %vm2569
  %vm2586 = vmand %vm2554, %vm2570
  %vm2587 = vmand %vm2555, %vm2571
  %vm2588 = vmand %vm2556, %vm2572
  %vm2589 = vmand %vm2557, %vm2573
  %vm2590 = vmand %vm2558, %vm2574
  %vm2591 = vmand %vm2559, %vm2575
  %vm2592 = vmand %vm2560, %vm2576
  %v2593 = vmul.f32 %v2451, 0.2
  %v2594 = vmul.f32 %v2456, 0.2
  %v2595 = vmul.f32 %v2461, 0.2
  %v2596 = vmul.f32 %v2466, 0.2
  %v2597 = vmul.f32 %v2471, 0.2
  %v2598 = vmul.f32 %v2476, 0.2
  %v2599 = vmul.f32 %v2481, 0.2
  %v2600 = vmul.f32 %v2486, 0.2
  %v2601 = vmul.f32 %v2491, 0.2
  %v2602 = vmul.f32 %v2496, 0.2
  %v2603 = vmul.f32 %v2501, 0.2
  %v2604 = vmul.f32 %v2506, 0.2
  %v2605 = vmul.f32 %v2511, 0.2
  %v2606 = vmul.f32 %v2516, 0.2
  %v2607 = vmul.f32 %v2521, 0.2
  %v2608 = vmul.f32 %v2526, 0.2
  %v2609 = vmax.f32 %v2451, %v2593
  %v2610 = vmax.f32 %v2456, %v2594
  %v2611 = vmax.f32 %v2461, %v2595
  %v2612 = vmax.f32 %v2466, %v2596
  %v2613 = vmax.f32 %v2471, %v2597
  %v2614 = vmax.f32 %v2476, %v2598
  %v2615 = vmax.f32 %v2481, %v2599
  %v2616 = vmax.f32 %v2486, %v2600
  %v2617 = vmax.f32 %v2491, %v2601
  %v2618 = vmax.f32 %v2496, %v2602
  %v2619 = vmax.f32 %v2501, %v2603
  %v2620 = vmax.f32 %v2506, %v2604
  %v2621 = vmax.f32 %v2511, %v2605
  %v2622 = vmax.f32 %v2516, %v2606
  %v2623 = vmax.f32 %v2521, %v2607
  %v2624 = vmax.f32 %v2526, %v2608
  %v2625 = vsel %vm2577, 1, 0
  %v2626 = vsel %vm2578, 1, 0
  %v2627 = vsel %vm2579, 1, 0
  %v2628 = vsel %vm2580, 1, 0
  %v2629 = vsel %vm2581, 1, 0
  %v2630 = vsel %vm2582, 1, 0
  %v2631 = vsel %vm2583, 1, 0
  %v2632 = vsel %vm2584, 1, 0
  %v2633 = vsel %vm2585, 1, 0
  %v2634 = vsel %vm2586, 1, 0
  %v2635 = vsel %vm2587, 1, 0
  %v2636 = vsel %vm2588, 1, 0
  %v2637 = vsel %vm2589, 1, 0
  %v2638 = vsel %vm2590, 1, 0
  %v2639 = vsel %vm2591, 1, 0
  %v2640 = vsel %vm2592, 1, 0
  %vm2641 = vcmp.eq.s32.totalorder %v2625, 1
  %vm2642 = vcmp.eq.s32.totalorder %v2626, 1
  %vm2643 = vcmp.eq.s32.totalorder %v2627, 1
  %vm2644 = vcmp.eq.s32.totalorder %v2628, 1
  %vm2645 = vcmp.eq.s32.totalorder %v2629, 1
  %vm2646 = vcmp.eq.s32.totalorder %v2630, 1
  %vm2647 = vcmp.eq.s32.totalorder %v2631, 1
  %vm2648 = vcmp.eq.s32.totalorder %v2632, 1
  %vm2649 = vcmp.eq.s32.totalorder %v2633, 1
  %vm2650 = vcmp.eq.s32.totalorder %v2634, 1
  %vm2651 = vcmp.eq.s32.totalorder %v2635, 1
  %vm2652 = vcmp.eq.s32.totalorder %v2636, 1
  %vm2653 = vcmp.eq.s32.totalorder %v2637, 1
  %vm2654 = vcmp.eq.s32.totalorder %v2638, 1
  %vm2655 = vcmp.eq.s32.totalorder %v2639, 1
  %vm2656 = vcmp.eq.s32.totalorder %v2640, 1
  %v2657 = vsel %vm2641, %v2609, 0.0
  %v2658 = vsel %vm2642, %v2610, 0.0
  %v2659 = vsel %vm2643, %v2611, 0.0
  %v2660 = vsel %vm2644, %v2612, 0.0
  %v2661 = vsel %vm2645, %v2613, 0.0
  %v2662 = vsel %vm2646, %v2614, 0.0
  %v2663 = vsel %vm2647, %v2615, 0.0
  %v2664 = vsel %vm2648, %v2616, 0.0
  %v2665 = vsel %vm2649, %v2617, 0.0
  %v2666 = vsel %vm2650, %v2618, 0.0
  %v2667 = vsel %vm2651, %v2619, 0.0
  %v2668 = vsel %vm2652, %v2620, 0.0
  %v2669 = vsel %vm2653, %v2621, 0.0
  %v2670 = vsel %vm2654, %v2622, 0.0
  %v2671 = vsel %vm2655, %v2623, 0.0
  %v2672 = vsel %vm2656, %v2624, 0.0
  %2673 = vst [vmem:[#allocation4 + $0x8] sm:$0xff] %v2657
  %2674 = vst [vmem:[#allocation4 + $0x10] sm:$0xff] %v2658
  %2675 = vst [vmem:[#allocation4 + $0x18] sm:$0xff] %v2659
  %2676 = vst [vmem:[#allocation4 + $0x20] sm:$0xff] %v2660
  %2677 = vst [vmem:[#allocation4 + $0x28] sm:$0xff] %v2661
  %2678 = vst [vmem:[#allocation4 + $0x30] sm:$0xff] %v2662
  %2679 = vst [vmem:[#allocation4 + $0x38] sm:$0xff] %v2663
  %2680 = vst [vmem:[#allocation4 + $0x40] sm:$0xff] %v2664
  %2681 = vst [vmem:[#allocation4 + $0x48] sm:$0xff] %v2665
  %2682 = vst [vmem:[#allocation4 + $0x50] sm:$0xff] %v2666
  %2683 = vst [vmem:[#allocation4 + $0x58] sm:$0xff] %v2667
  %2684 = vst [vmem:[#allocation4 + $0x60] sm:$0xff] %v2668
  %2685 = vst [vmem:[#allocation4 + $0x68] sm:$0xff] %v2669
  %2686 = vst [vmem:[#allocation4 + $0x70] sm:$0xff] %v2670
  %2687 = vst [vmem:[#allocation4 + $0x78] sm:$0xff] %v2671
  %2688 = vst [vmem:[#allocation4 + $0x80] sm:$0xff] %v2672
  %s2689 = scalar_lea.vmem [#allocation4], 6
  %v2690 = vld [vmem:[%s2689] ss:$2 sm:$0xff]
  %s2691 = scalar_lea.vmem [#allocation4], 22
  %v2692 = vld [vmem:[%s2691] ss:$2 sm:$0xff]
  %s2693 = scalar_lea.vmem [#allocation4], 38
  %v2694 = vld [vmem:[%s2693] ss:$2 sm:$0xff]
  %s2695 = scalar_lea.vmem [#allocation4], 54
  %v2696 = vld [vmem:[%s2695] ss:$2 sm:$0xff]
  %s2697 = scalar_lea.vmem [#allocation4], 70
  %v2698 = vld [vmem:[%s2697] ss:$2 sm:$0xff]
  %s2699 = scalar_lea.vmem [#allocation4], 86
  %v2700 = vld [vmem:[%s2699] ss:$2 sm:$0xff]
  %s2701 = scalar_lea.vmem [#allocation4], 102
  %v2702 = vld [vmem:[%s2701] ss:$2 sm:$0xff]
  %s2703 = scalar_lea.vmem [#allocation4], 118
  %v2704 = vld [vmem:[%s2703] ss:$2 sm:$0xff]
  %s2705 = scalar_lea.vmem [#allocation4], 7
  %v2706 = vld [vmem:[%s2705] ss:$2 sm:$0xff]
  %s2707 = scalar_lea.vmem [#allocation4], 23
  %v2708 = vld [vmem:[%s2707] ss:$2 sm:$0xff]
  %s2709 = scalar_lea.vmem [#allocation4], 39
  %v2710 = vld [vmem:[%s2709] ss:$2 sm:$0xff]
  %s2711 = scalar_lea.vmem [#allocation4], 55
  %v2712 = vld [vmem:[%s2711] ss:$2 sm:$0xff]
  %s2713 = scalar_lea.vmem [#allocation4], 71
  %v2714 = vld [vmem:[%s2713] ss:$2 sm:$0xff]
  %s2715 = scalar_lea.vmem [#allocation4], 87
  %v2716 = vld [vmem:[%s2715] ss:$2 sm:$0xff]
  %s2717 = scalar_lea.vmem [#allocation4], 103
  %v2718 = vld [vmem:[%s2717] ss:$2 sm:$0xff]
  %s2719 = scalar_lea.vmem [#allocation4], 119
  %v2720 = vld [vmem:[%s2719] ss:$2 sm:$0xff]
  %s2721 = scalar_lea.vmem [#allocation4], 8
  %v2722 = vld [vmem:[%s2721] ss:$2 sm:$0xff]
  %s2723 = scalar_lea.vmem [#allocation4], 24
  %v2724 = vld [vmem:[%s2723] ss:$2 sm:$0xff]
  %s2725 = scalar_lea.vmem [#allocation4], 40
  %v2726 = vld [vmem:[%s2725] ss:$2 sm:$0xff]
  %s2727 = scalar_lea.vmem [#allocation4], 56
  %v2728 = vld [vmem:[%s2727] ss:$2 sm:$0xff]
  %s2729 = scalar_lea.vmem [#allocation4], 72
  %v2730 = vld [vmem:[%s2729] ss:$2 sm:$0xff]
  %s2731 = scalar_lea.vmem [#allocation4], 88
  %v2732 = vld [vmem:[%s2731] ss:$2 sm:$0xff]
  %s2733 = scalar_lea.vmem [#allocation4], 104
  %v2734 = vld [vmem:[%s2733] ss:$2 sm:$0xff]
  %s2735 = scalar_lea.vmem [#allocation4], 120
  %v2736 = vld [vmem:[%s2735] ss:$2 sm:$0xff]
  %v2737 = vsel %vm2328, %v2690, %v2706
  %v2738 = vsel %vm2328, %v2692, %v2708
  %v2739 = vsel %vm2328, %v2694, %v2710
  %v2740 = vsel %vm2328, %v2696, %v2712
  %v2741 = vsel %vm2328, %v2698, %v2714
  %v2742 = vsel %vm2328, %v2700, %v2716
  %v2743 = vsel %vm2328, %v2702, %v2718
  %v2744 = vsel %vm2328, %v2704, %v2720
  %v2745 = vld [vmem:[%s7] sm:$0xff]
  %v2746 = vld [vmem:[%s7 + $0x8] sm:$0xff]
  %v2747 = vld [vmem:[%s7 + $0x10] sm:$0xff]
  %v2748 = vld [vmem:[%s7 + $0x18] sm:$0xff]
  %v2749 = vld [vmem:[%s7 + $0x20] sm:$0xff]
  %v2750 = vld [vmem:[%s7 + $0x28] sm:$0xff]
  %v2751 = vld [vmem:[%s7 + $0x30] sm:$0xff]
  %v2752 = vld [vmem:[%s7 + $0x38] sm:$0xff]
  %v2753 = vld [vmem:[%s7 + $0x40] sm:$0xff]
  %v2754 = vld [vmem:[%s7 + $0x48] sm:$0xff]
  %v2755 = vld [vmem:[%s7 + $0x50] sm:$0xff]
  %v2756 = vld [vmem:[%s7 + $0x58] sm:$0xff]
  %v2757 = vld [vmem:[%s7 + $0x60] sm:$0xff]
  %v2758 = vld [vmem:[%s7 + $0x68] sm:$0xff]
  %v2759 = vld [vmem:[%s7 + $0x70] sm:$0xff]
  %v2760 = vld [vmem:[%s7 + $0x78] sm:$0xff]
  %v2761 = vld [vmem:[%s7 + $0x80] sm:$0xff]
  %v2762 = vld [vmem:[%s7 + $0x88] sm:$0xff]
  %v2763 = vld [vmem:[%s7 + $0x90] sm:$0xff]
  %v2764 = vld [vmem:[%s7 + $0x98] sm:$0xff]
  %v2765 = vld [vmem:[%s7 + $0xa0] sm:$0xff]
  %v2766 = vld [vmem:[%s7 + $0xa8] sm:$0xff]
  %v2767 = vld [vmem:[%s7 + $0xb0] sm:$0xff]
  %v2768 = vld [vmem:[%s7 + $0xb8] sm:$0xff]
  %v2769 = vld [vmem:[%s7 + $0xc0] sm:$0xff]
  %v2770 = vld [vmem:[%s7 + $0xc8] sm:$0xff]
  %v2771 = vld [vmem:[%s7 + $0xd0] sm:$0xff]
  %v2772 = vld [vmem:[%s7 + $0xd8] sm:$0xff]
  %v2773 = vld [vmem:[%s7 + $0xe0] sm:$0xff]
  %v2774 = vld [vmem:[%s7 + $0xe8] sm:$0xff]
  %v2775 = vld [vmem:[%s7 + $0xf0] sm:$0xff]
  %v2776 = vld [vmem:[%s7 + $0xf8] sm:$0xff]
  %v2777 = vld [vmem:[%s8] sm:$0x1]
  %v2779 = vlaneseq
  %v2780 = vshrl.u32 %v2779, 7
  %v2781 = vsub.s32 0, %v2780
  %v2782 = vrot.slane %v2777, %v2781
  %2784 = vmatprep.subr.mxu0 0.0
  %2785 = vmatpush1.msra.mxu0 %v2760
  %2786 = vmatprep.subr.mxu0 0.0
  %2787 = vmatpush1.msra.mxu0 %v2759
  %2788 = vmatprep.subr.mxu0 0.0
  %2789 = vmatpush1.msra.mxu0 %v2758
  %2790 = vmatprep.subr.mxu0 0.0
  %2791 = vmatpush1.msra.mxu0 %v2757
  %2792 = vmatprep.subr.mxu0 0.0
  %2793 = vmatpush1.msra.mxu0 %v2756
  %2794 = vmatprep.subr.mxu0 0.0
  %2795 = vmatpush1.msra.mxu0 %v2755
  %2796 = vmatprep.subr.mxu0 0.0
  %2797 = vmatpush1.msra.mxu0 %v2754
  %2798 = vmatprep.subr.mxu0 0.0
  %2799 = vmatpush1.msra.mxu0 %v2753
  %2800 = vmatprep.subr.mxu0 0.0
  %2801 = vmatpush1.msra.mxu0 %v2752
  %2802 = vmatprep.subr.mxu0 0.0
  %2803 = vmatpush1.msra.mxu0 %v2751
  %2804 = vmatprep.subr.mxu0 0.0
  %2805 = vmatpush1.msra.mxu0 %v2750
  %2806 = vmatprep.subr.mxu0 0.0
  %2807 = vmatpush1.msra.mxu0 %v2749
  %2808 = vmatprep.subr.mxu0 0.0
  %2809 = vmatpush1.msra.mxu0 %v2748
  %2810 = vmatprep.subr.mxu0 0.0
  %2811 = vmatpush1.msra.mxu0 %v2747
  %2812 = vmatprep.subr.mxu0 0.0
  %2813 = vmatpush1.msra.mxu0 %v2746
  %2814 = vmatprep.subr.mxu0 0.0
  %2815 = vmatpush1.msra.mxu0 %v2745
  %2816 = vmatprep.subr.mxu0 0.0
  %2817 = vmatpush2.msra.mxu0 %v2776
  %2818 = vmatprep.subr.mxu0 0.0
  %2819 = vmatpush2.msra.mxu0 %v2775
  %2820 = vmatprep.subr.mxu0 0.0
  %2821 = vmatpush2.msra.mxu0 %v2774
  %2822 = vmatprep.subr.mxu0 0.0
  %2823 = vmatpush2.msra.mxu0 %v2773
  %2824 = vmatprep.subr.mxu0 0.0
  %2825 = vmatpush2.msra.mxu0 %v2772
  %2826 = vmatprep.subr.mxu0 0.0
  %2827 = vmatpush2.msra.mxu0 %v2771
  %2828 = vmatprep.subr.mxu0 0.0
  %2829 = vmatpush2.msra.mxu0 %v2770
  %2830 = vmatprep.subr.mxu0 0.0
  %2831 = vmatpush2.msra.mxu0 %v2769
  %2832 = vmatprep.subr.mxu0 0.0
  %2833 = vmatpush2.msra.mxu0 %v2768
  %2834 = vmatprep.subr.mxu0 0.0
  %2835 = vmatpush2.msra.mxu0 %v2767
  %2836 = vmatprep.subr.mxu0 0.0
  %2837 = vmatpush2.msra.mxu0 %v2766
  %2838 = vmatprep.subr.mxu0 0.0
  %2839 = vmatpush2.msra.mxu0 %v2765
  %2840 = vmatprep.subr.mxu0 0.0
  %2841 = vmatpush2.msra.mxu0 %v2764
  %2842 = vmatprep.subr.mxu0 0.0
  %2843 = vmatpush2.msra.mxu0 %v2763
  %2844 = vmatprep.subr.mxu0 0.0
  %2845 = vmatpush2.msra.mxu0 %v2762
  %2846 = vmatprep.subr.mxu0 0.0
  %2847 = vmatpush2.msra.mxu0 %v2761
  %2848 = vmatprep.mubr.f32.mxu0 %v2722
  %2849 = vmatmul.mubr.f32.gmra.mxu0 %v2737
  %v2850 = vpop.f32.mrf.mxu0
  %v2851 = vadd.f32 %v2782, %v2850
  %v2852 = vpop.f32.mrf.mxu0
  %2853 = vmatprep.mubr.f32.mxu0 %v2724
  %2854 = vmatmul.mubr.f32.gmra.mxu0 %v2738
  %v2855 = vpop.f32.mrf.mxu0
  %v2856 = vadd.f32 %v2782, %v2855
  %v2857 = vpop.f32.mrf.mxu0
  %2858 = vmatprep.mubr.f32.mxu0 %v2726
  %2859 = vmatmul.mubr.f32.gmra.mxu0 %v2739
  %v2860 = vpop.f32.mrf.mxu0
  %v2861 = vadd.f32 %v2782, %v2860
  %v2862 = vpop.f32.mrf.mxu0
  %2863 = vmatprep.mubr.f32.mxu0 %v2728
  %2864 = vmatmul.mubr.f32.gmra.mxu0 %v2740
  %v2865 = vpop.f32.mrf.mxu0
  %v2866 = vadd.f32 %v2782, %v2865
  %v2867 = vpop.f32.mrf.mxu0
  %2868 = vmatprep.mubr.f32.mxu0 %v2730
  %2869 = vmatmul.mubr.f32.gmra.mxu0 %v2741
  %v2870 = vpop.f32.mrf.mxu0
  %v2871 = vadd.f32 %v2782, %v2870
  %v2872 = vpop.f32.mrf.mxu0
  %2873 = vmatprep.mubr.f32.mxu0 %v2732
  %2874 = vmatmul.mubr.f32.gmra.mxu0 %v2742
  %v2875 = vpop.f32.mrf.mxu0
  %v2876 = vadd.f32 %v2782, %v2875
  %v2877 = vpop.f32.mrf.mxu0
  %2878 = vmatprep.mubr.f32.mxu0 %v2734
  %2879 = vmatmul.mubr.f32.gmra.mxu0 %v2743
  %v2880 = vpop.f32.mrf.mxu0
  %v2881 = vadd.f32 %v2782, %v2880
  %v2882 = vpop.f32.mrf.mxu0
  %2883 = vmatprep.mubr.f32.mxu0 %v2736
  %2884 = vmatmul.mubr.f32.gmra.mxu0 %v2744
  %v2885 = vpop.f32.mrf.mxu0
  %v2886 = vadd.f32 %v2782, %v2885
  %v2887 = vpop.f32.mrf.mxu0
  %2888 = vdwg.mxu0
  %v2889 = vand.u32 %v696, 7
  %v2890 = vand.u32 %v697, 7
  %v2891 = vand.u32 %v698, 7
  %v2892 = vand.u32 %v699, 7
  %v2893 = vand.u32 %v700, 7
  %v2894 = vand.u32 %v701, 7
  %v2895 = vand.u32 %v702, 7
  %v2896 = vand.u32 %v703, 7
  %vm2897 = vcmp.ge.s32.totalorder %v2889, 1
  %vm2898 = vcmp.ge.s32.totalorder %v2890, 1
  %vm2899 = vcmp.ge.s32.totalorder %v2891, 1
  %vm2900 = vcmp.ge.s32.totalorder %v2892, 1
  %vm2901 = vcmp.ge.s32.totalorder %v2893, 1
  %vm2902 = vcmp.ge.s32.totalorder %v2894, 1
  %vm2903 = vcmp.ge.s32.totalorder %v2895, 1
  %vm2904 = vcmp.ge.s32.totalorder %v2896, 1
  %vm2905 = vcmp.le.s32.totalorder %v2889, 7
  %vm2906 = vcmp.le.s32.totalorder %v2890, 7
  %vm2907 = vcmp.le.s32.totalorder %v2891, 7
  %vm2908 = vcmp.le.s32.totalorder %v2892, 7
  %vm2909 = vcmp.le.s32.totalorder %v2893, 7
  %vm2910 = vcmp.le.s32.totalorder %v2894, 7
  %vm2911 = vcmp.le.s32.totalorder %v2895, 7
  %vm2912 = vcmp.le.s32.totalorder %v2896, 7
  %vm2913 = vmand %vm2897, %vm2905
  %vm2914 = vmand %vm2898, %vm2906
  %vm2915 = vmand %vm2899, %vm2907
  %vm2916 = vmand %vm2900, %vm2908
  %vm2917 = vmand %vm2901, %vm2909
  %vm2918 = vmand %vm2902, %vm2910
  %vm2919 = vmand %vm2903, %vm2911
  %vm2920 = vmand %vm2904, %vm2912
  %v2921 = vmul.f32 %v2851, 0.2
  %v2922 = vmul.f32 %v2856, 0.2
  %v2923 = vmul.f32 %v2861, 0.2
  %v2924 = vmul.f32 %v2866, 0.2
  %v2925 = vmul.f32 %v2871, 0.2
  %v2926 = vmul.f32 %v2876, 0.2
  %v2927 = vmul.f32 %v2881, 0.2
  %v2928 = vmul.f32 %v2886, 0.2
  %v2929 = vmax.f32 %v2851, %v2921
  %v2930 = vmax.f32 %v2856, %v2922
  %v2931 = vmax.f32 %v2861, %v2923
  %v2932 = vmax.f32 %v2866, %v2924
  %v2933 = vmax.f32 %v2871, %v2925
  %v2934 = vmax.f32 %v2876, %v2926
  %v2935 = vmax.f32 %v2881, %v2927
  %v2936 = vmax.f32 %v2886, %v2928
  %v2937 = vsel %vm2913, 1, 0
  %v2938 = vsel %vm2914, 1, 0
  %v2939 = vsel %vm2915, 1, 0
  %v2940 = vsel %vm2916, 1, 0
  %v2941 = vsel %vm2917, 1, 0
  %v2942 = vsel %vm2918, 1, 0
  %v2943 = vsel %vm2919, 1, 0
  %v2944 = vsel %vm2920, 1, 0
  %vm2945 = vcmp.eq.s32.totalorder %v2937, 1
  %vm2946 = vcmp.eq.s32.totalorder %v2938, 1
  %vm2947 = vcmp.eq.s32.totalorder %v2939, 1
  %vm2948 = vcmp.eq.s32.totalorder %v2940, 1
  %vm2949 = vcmp.eq.s32.totalorder %v2941, 1
  %vm2950 = vcmp.eq.s32.totalorder %v2942, 1
  %vm2951 = vcmp.eq.s32.totalorder %v2943, 1
  %vm2952 = vcmp.eq.s32.totalorder %v2944, 1
  %v2953 = vsel %vm2945, %v2929, 0.0
  %v2954 = vsel %vm2946, %v2930, 0.0
  %v2955 = vsel %vm2947, %v2931, 0.0
  %v2956 = vsel %vm2948, %v2932, 0.0
  %v2957 = vsel %vm2949, %v2933, 0.0
  %v2958 = vsel %vm2950, %v2934, 0.0
  %v2959 = vsel %vm2951, %v2935, 0.0
  %v2960 = vsel %vm2952, %v2936, 0.0
  %v2961 = vld [vmem:[%s9] sm:$0xff]
  %v2962 = vmul.f32 %v2953, %v2961
  %v2963 = vmul.f32 %v2954, %v2961
  %v2964 = vmul.f32 %v2955, %v2961
  %v2965 = vmul.f32 %v2956, %v2961
  %v2966 = vmul.f32 %v2957, %v2961
  %v2967 = vmul.f32 %v2958, %v2961
  %v2968 = vmul.f32 %v2959, %v2961
  %v2969 = vmul.f32 %v2960, %v2961
  %2970 = vadd.xlane.f32.xlu0 %v2962
  %v2971 = vpop.xlane.xlu0 %2970
  %2972 = vadd.xlane.f32.xlu0 %v2963
  %v2973 = vpop.xlane.xlu0 %2972
  %2974 = vadd.xlane.f32.xlu0 %v2964
  %v2975 = vpop.xlane.xlu0 %2974
  %2976 = vadd.xlane.f32.xlu0 %v2965
  %v2977 = vpop.xlane.xlu0 %2976
  %2978 = vadd.xlane.f32.xlu0 %v2966
  %v2979 = vpop.xlane.xlu0 %2978
  %2980 = vadd.xlane.f32.xlu0 %v2967
  %v2981 = vpop.xlane.xlu0 %2980
  %2982 = vadd.xlane.f32.xlu0 %v2968
  %v2983 = vpop.xlane.xlu0 %2982
  %2984 = vadd.xlane.f32.xlu0 %v2969
  %v2985 = vpop.xlane.xlu0 %2984
  %v2994 = vlaneseq
  %v2995 = vshrl.u32 %v2994, 7
  %v2996 = vsub.s32 %v44, %v2995
  %v2997 = vrot.slane %v2971, %v2996
  %v2998 = vlaneseq
  %v2999 = vshrl.u32 %v2998, 7
  %v3000 = vsub.s32 %v44, %v2999
  %v3001 = vrot.slane %v2973, %v3000
  %v3002 = vlaneseq
  %v3003 = vshrl.u32 %v3002, 7
  %v3004 = vsub.s32 %v44, %v3003
  %v3005 = vrot.slane %v2975, %v3004
  %v3006 = vlaneseq
  %v3007 = vshrl.u32 %v3006, 7
  %v3008 = vsub.s32 %v44, %v3007
  %v3009 = vrot.slane %v2977, %v3008
  %v3010 = vlaneseq
  %v3011 = vshrl.u32 %v3010, 7
  %v3012 = vsub.s32 %v44, %v3011
  %v3013 = vrot.slane %v2979, %v3012
  %v3014 = vlaneseq
  %v3015 = vshrl.u32 %v3014, 7
  %v3016 = vsub.s32 %v44, %v3015
  %v3017 = vrot.slane %v2981, %v3016
  %v3018 = vlaneseq
  %v3019 = vshrl.u32 %v3018, 7
  %v3020 = vsub.s32 %v44, %v3019
  %v3021 = vrot.slane %v2983, %v3020
  %v3022 = vlaneseq
  %v3023 = vshrl.u32 %v3022, 7
  %v3024 = vsub.s32 %v44, %v3023
  %v3025 = vrot.slane %v2985, %v3024
  %vm3026 = vcmask 1041409
  %v3027 = vsel %vm3026, %v3001, %v2997
  %vm3028 = vcmask 1042434
  %v3029 = vsel %vm3028, %v3005, %v3027
  %vm3030 = vcmask 1043459
  %v3031 = vsel %vm3030, %v3009, %v3029
  %vm3032 = vcmask 1044484
  %v3033 = vsel %vm3032, %v3013, %v3031
  %vm3034 = vcmask 1045509
  %v3035 = vsel %vm3034, %v3017, %v3033
  %vm3036 = vcmask 1046534
  %v3037 = vsel %vm3036, %v3021, %v3035
  %vm3038 = vcmask 1047559
  %v3039 = vsel %vm3038, %v3025, %v3037
  %3041 = vxpose.xlu0.b32.start [1/16] %v3039, 128
  %3042 = vxpose.xlu0.b32.cont [2/16] 0.0, 128
  %3043 = vxpose.xlu0.b32.cont [3/16] 0.0, 128
  %3044 = vxpose.xlu0.b32.cont [4/16] 0.0, 128
  %3045 = vxpose.xlu0.b32.cont [5/16] 0.0, 128
  %3046 = vxpose.xlu0.b32.cont [6/16] 0.0, 128
  %3047 = vxpose.xlu0.b32.cont [7/16] 0.0, 128
  %3048 = vxpose.xlu0.b32.cont [8/16] 0.0, 128
  %3049 = vxpose.xlu0.b32.cont [9/16] 0.0, 128
  %3050 = vxpose.xlu0.b32.cont [10/16] 0.0, 128
  %3051 = vxpose.xlu0.b32.cont [11/16] 0.0, 128
  %3052 = vxpose.xlu0.b32.cont [12/16] 0.0, 128
  %3053 = vxpose.xlu0.b32.cont [13/16] 0.0, 128
  %3054 = vxpose.xlu0.b32.cont [14/16] 0.0, 128
  %3055 = vxpose.xlu0.b32.cont [15/16] 0.0, 128
  %3056 = vxpose.xlu0.b32.end [16/16] 0.0, 128
  %v3057 = vpop.trf.xlu0
  %v3058 = vpop.trf.xlu0
  %v3059 = vpop.trf.xlu0
  %v3060 = vpop.trf.xlu0
  %v3061 = vpop.trf.xlu0
  %v3062 = vpop.trf.xlu0
  %v3063 = vpop.trf.xlu0
  %v3064 = vpop.trf.xlu0
  %v3065 = vpop.trf.xlu0
  %v3066 = vpop.trf.xlu0
  %v3067 = vpop.trf.xlu0
  %v3068 = vpop.trf.xlu0
  %v3069 = vpop.trf.xlu0
  %v3070 = vpop.trf.xlu0
  %v3071 = vpop.trf.xlu0
  %v3072 = vpop.trf.xlu0
  %v3073 = vsel %vm117, %v3057, 0.0
  %v3074 = vrot.slane %v3073, 4
  %v3075 = vadd.f32 %v3073, %v3074
  %v3076 = vrot.slane %v3075, 2
  %v3077 = vadd.f32 %v3075, %v3076
  %v3078 = vrot.slane %v3077, 1
  %v3079 = vadd.f32 %v3077, %v3078
  %v3080 = vld [vmem:[#allocation5] sm:$0x1]
  %3082 = vset.pattern.permute.xlu0 0
  %3083 = vperm.xlu0 %3082, %v3080
  %v3084 = vpop.permute.xlu0 %3083
  %v3086 = vlaneseq
  %v3087 = vshrl.u32 %v3086, 7
  %v3088 = vsub.s32 0, %v3087
  %v3089 = vrot.slane %v3084, %v3088
  %v3090 = vadd.f32 %v3079, %v3089
  %vm3091 = vcmask 57344
  %3092 = vst.msk [vmem:[%s11] sm:$0x1] %vm3091, %v3090
  // Predicated region
  $region46: #{discriminator_forward.1} parent=0 // pred_check
    _
  $region47: #{discriminator_forward.1} parent=0 // pred_check_branch
    %3094 = sbr.rel (0) target = $region49
  $region48: #{discriminator_forward.1} parent=0 // pred_region
    _
  $region49: #{discriminator_forward.1} parent=0 // pred_fallthru
    _
  // Predicated region
  $region50: #{discriminator_forward.1} parent=0 // pred_check
    _
  $region51: #{discriminator_forward.1} parent=0 // pred_check_branch
    %3096 = sbr.rel (0) target = $region53
  $region52: #{discriminator_forward.1} parent=0 // pred_region
    _
  $region53: #{discriminator_forward.1} parent=0 // pred_fallthru
    _

</llo_original>
